<compile_context>
chip_gen: v7x
topology: tpu7x:2x2x1
jax: 0.10.0
libtpu: 0.0.40
codegen_flags: <defaults>
</compile_context>

<pallas_src>
import jax
import jax.numpy as jnp
from jax import lax
from jax.experimental import pallas as pl
from jax.experimental.pallas import tpu as pltpu

D_MODEL = 32
NHEAD = 4
KQV_DIM = 8            # per-head dim, NHEAD * KQV_DIM == D_MODEL
DIM_FF = 64
LAYER_NUM = 2
LN_EPS = 1e-5          # torch.nn.LayerNorm default
NEG_INF = -1e9

# --- packed-parameter layout --------------------------------------------------
PACK_COLS = 128                                   # full lane width
# matrix slab: per-layer row offsets (all matrices stored (in, out), lane-padded)
MAT_WQKV = 0                                      # (D_MODEL, 3*D_MODEL) fused Q|K|V
MAT_WO = D_MODEL                                  # (D_MODEL, D_MODEL)
MAT_W1 = 2 * D_MODEL                              # (D_MODEL, DIM_FF)
MAT_W2 = 3 * D_MODEL                              # (DIM_FF, D_MODEL)
MAT_ROWS = 3 * D_MODEL + DIM_FF                   # rows per layer = 160 (8-aligned)
# vector slab: one row per bias / LayerNorm parameter, 8 rows/layer (8-aligned)
(VEC_BQKV, VEC_BO, VEC_LN1G, VEC_LN1B,
 VEC_B1, VEC_B2, VEC_LN2G, VEC_LN2B) = range(8)
VEC_ROWS = 8


def _layer_norm(x, gamma, beta):
    mean = jnp.mean(x, axis=-1, keepdims=True)
    var = jnp.mean((x - mean) ** 2, axis=-1, keepdims=True)
    return (x - mean) * lax.rsqrt(var + LN_EPS) * gamma + beta


def encoder_forward(embeddings, mask, wmat, wvec):
    """Full Encoder.forward (partition=False): LAYER_NUM layers + shift-concat fused."""
    B, S, D = embeddings.shape
    assert D == D_MODEL and NHEAD * KQV_DIM == D_MODEL
    half = D // 2
    scale = 1.0 / (KQV_DIM ** 0.5)

    def kernel(x_ref, amask_ref, wmat_ref, wvec_ref, out_ref):
        h = x_ref[...]                                        # (B*S, D)

        # hoisted: additive key-mask broadcast to (S, S), once per batch element
        masks = [jnp.broadcast_to(amask_ref[b:b + 1, :], (S, S)) for b in range(B)]
        # hoisted: lane iota for the shift-concat epilogue
        out_cols = lax.broadcasted_iota(jnp.int32, (S - 1, D), 1)

        for l in range(LAYER_NUM):                            # static layer loop
            mb = l * MAT_ROWS
            vb = l * VEC_ROWS
            wqkv = wmat_ref[mb + MAT_WQKV:mb + MAT_WQKV + D, 0:3 * D]
            wo = wmat_ref[mb + MAT_WO:mb + MAT_WO + D, 0:D]
            w1 = wmat_ref[mb + MAT_W1:mb + MAT_W1 + D, 0:DIM_FF]
            w2 = wmat_ref[mb + MAT_W2:mb + MAT_W2 + DIM_FF, 0:D]
            bqkv = wvec_ref[vb + VEC_BQKV:vb + VEC_BQKV + 1, 0:3 * D]
            bo = wvec_ref[vb + VEC_BO:vb + VEC_BO + 1, 0:D]
            ln1g = wvec_ref[vb + VEC_LN1G:vb + VEC_LN1G + 1, 0:D]
            ln1b = wvec_ref[vb + VEC_LN1B:vb + VEC_LN1B + 1, 0:D]
            b1 = wvec_ref[vb + VEC_B1:vb + VEC_B1 + 1, 0:DIM_FF]
            b2 = wvec_ref[vb + VEC_B2:vb + VEC_B2 + 1, 0:D]
            ln2g = wvec_ref[vb + VEC_LN2G:vb + VEC_LN2G + 1, 0:D]
            ln2b = wvec_ref[vb + VEC_LN2B:vb + VEC_LN2B + 1, 0:D]

            # fused Q|K|V projection over the whole (B*S, D) slab: one MXU matmul
            qkv = jnp.dot(h, wqkv, preferred_element_type=jnp.float32) + bqkv
            q = qkv[:, 0:D] * scale                           # fold 1/sqrt(dk) once
            k = qkv[:, D:2 * D]
            v = qkv[:, 2 * D:3 * D]

            ctx_rows = []
            for b in range(B):                                # static batch loop
                r0 = b * S
                qb, kb, vbv = q[r0:r0 + S], k[r0:r0 + S], v[r0:r0 + S]
                ctx_tiles = []
                for hd in range(NHEAD):                       # static head loop
                    c0 = hd * KQV_DIM
                    qh = qb[:, c0:c0 + KQV_DIM]
                    kh = kb[:, c0:c0 + KQV_DIM]
                    vh = vbv[:, c0:c0 + KQV_DIM]
                    # QK^T via dot_general (contract last dims) -> no XLU transpose
                    s = lax.dot_general(qh, kh, (((1,), (1,)), ((), ())),
                                        preferred_element_type=jnp.float32)
                    s = s + masks[b]
                    s = s - jnp.max(s, axis=-1, keepdims=True)
                    p = jnp.exp(s)
                    p = p * pl.reciprocal(jnp.sum(p, axis=-1, keepdims=True),
                                          approx=True)        # EUP, frees VALU slots
                    ctx_tiles.append(jnp.dot(p, vh, preferred_element_type=jnp.float32))
                ctx_rows.append(jnp.concatenate(ctx_tiles, axis=-1))   # (S, D)
            ctx = jnp.concatenate(ctx_rows, axis=0)                     # (B*S, D)

            # single output-projection matmul for all heads
            attn_out = jnp.dot(ctx, wo, preferred_element_type=jnp.float32) + bo
            h1 = _layer_norm(h + attn_out, ln1g, ln1b)

            ff = jnp.dot(h1, w1, preferred_element_type=jnp.float32) + b1
            ff = jnp.maximum(ff, 0.0)                          # relu
            ff = jnp.dot(ff, w2, preferred_element_type=jnp.float32) + b2
            h = _layer_norm(h1 + ff, ln2g, ln2b)

        # fused shift_concat epilogue as a lane-select:
        # out[b, s, :half] = h[b, s, :half]; out[b, s, half:] = h[b, s+1, half:]
        for b in range(B):
            r0 = b * S
            top = h[r0:r0 + S - 1, :]          # rows s
            bot = h[r0 + 1:r0 + S, :]          # rows s+1
            out_ref[b] = jnp.where(out_cols < half, top, bot)   # one full-width store

    x2d = embeddings.reshape(B * S, D).astype(jnp.float32)     # fold batch into sublanes
    add_mask = ((1.0 - mask) * NEG_INF).astype(jnp.float32)    # (B, S) additive key mask

    # Single grid step: everything fits in VMEM, so one launch / one DMA per buffer.
    # TODO(synk): for large production B, add a leading "parallel" grid axis sized to
    # a multiple of 2 so v7x's two TensorCores each take half the batch.
    return pl.pallas_call(
        kernel,
        out_shape=jax.ShapeDtypeStruct((B, S - 1, D), jnp.float32),
        grid=(1,),
        in_specs=[pl.BlockSpec((B * S, D), lambda i: (0, 0)),
                  pl.BlockSpec((B, S), lambda i: (0, 0)),
                  pl.BlockSpec(wmat.shape, lambda i: (0, 0)),
                  pl.BlockSpec(wvec.shape, lambda i: (0, 0))],
        out_specs=pl.BlockSpec((B, S - 1, D), lambda i: (0, 0, 0)),
        compiler_params=pltpu.CompilerParams(
            dimension_semantics=("arbitrary",)),
    )(x2d, add_mask, wmat, wvec)


def init_params(key):
    """Deterministic synthetic transformer weights; per-layer dicts."""
    def w(k_, shape):
        return (0.02 * jax.random.normal(k_, shape)).astype(jnp.float32)

    kqv = NHEAD * KQV_DIM
    layers = []
    for l in range(LAYER_NUM):
        ks = jax.random.split(jax.random.fold_in(key, l), 6)
        layers.append(dict(
            wq=w(ks[0], (D_MODEL, kqv)), bq=jnp.zeros((1, kqv), jnp.float32),
            wk=w(ks[1], (D_MODEL, kqv)), bk=jnp.zeros((1, kqv), jnp.float32),
            wv=w(ks[2], (D_MODEL, kqv)), bv=jnp.zeros((1, kqv), jnp.float32),
            wo=w(ks[3], (kqv, D_MODEL)), bo=jnp.zeros((1, D_MODEL), jnp.float32),
            ln1g=jnp.ones((1, D_MODEL), jnp.float32),
            ln1b=jnp.zeros((1, D_MODEL), jnp.float32),
            w1=w(ks[4], (D_MODEL, DIM_FF)), b1=jnp.zeros((1, DIM_FF), jnp.float32),
            w2=w(ks[5], (DIM_FF, D_MODEL)), b2=jnp.zeros((1, D_MODEL), jnp.float32),
            ln2g=jnp.ones((1, D_MODEL), jnp.float32),
            ln2b=jnp.zeros((1, D_MODEL), jnp.float32),
        ))
    return layers


def pack_params(layers):
    """Pack all per-layer params into one matrix slab and one vector slab (2 inputs)."""
    def pad_cols(a):
        return jnp.pad(a, ((0, 0), (0, PACK_COLS - a.shape[1])))

    mat_rows, vec_rows = [], []
    for p in layers:
        wqkv = jnp.concatenate([p["wq"], p["wk"], p["wv"]], axis=1)   # (D, 3D)
        bqkv = jnp.concatenate([p["bq"], p["bk"], p["bv"]], axis=1)   # (1, 3D)
        mat_rows += [pad_cols(m) for m in (wqkv, p["wo"], p["w1"], p["w2"])]
        vec_rows += [pad_cols(v) for v in (bqkv, p["bo"], p["ln1g"], p["ln1b"],
                                           p["b1"], p["b2"], p["ln2g"], p["ln2b"])]
    wmat = jnp.concatenate(mat_rows, axis=0)      # (LAYER_NUM * 160, 128)
    wvec = jnp.concatenate(vec_rows, axis=0)      # (LAYER_NUM * 8, 128)
    return wmat, wvec


if __name__ == "__main__":
    B, S = 2, 8
    key = jax.random.PRNGKey(0)
    k_emb, k_par = jax.random.split(key)

    embeddings = jax.random.normal(k_emb, (B, S, D_MODEL), dtype=jnp.float32)
    mask = jnp.ones((B, S), dtype=jnp.float32)    # 1 = valid token

    wmat, wvec = pack_params(init_params(k_par))
    out = encoder_forward(embeddings, mask, wmat, wvec)
    jax.block_until_ready(out)

    assert out.shape == (B, S - 1, D_MODEL), out.shape
    assert bool(jnp.all(jnp.isfinite(out)))
    print("KERNEL_OK")
</pallas_src>

<mosaic_0001>
module attributes {stable_mosaic.version = 11 : i64} {
  func.func @kernel(%arg0: i32, %arg1: memref<16x32xf32, #tpu.memory_space<vmem>>, %arg2: memref<2x8xf32, #tpu.memory_space<vmem>>, %arg3: memref<320x128xf32, #tpu.memory_space<vmem>>, %arg4: memref<16x128xf32, #tpu.memory_space<vmem>>, %arg5: memref<2x7x32xf32, #tpu.memory_space<vmem>>) attributes {dimension_semantics = [#tpu.dimension_semantics<arbitrary>], iteration_bounds = array<i64: 1>, scalar_prefetch = 0 : i64, scratch_operands = 0 : i64, tpu.core_type = #tpu.core_type<tc>, window_params = [{pipeline_mode = #tpu.pipeline_mode<synchronous>, transform_indices = @transform_0, window_bounds = array<i64: 16, 32>}, {pipeline_mode = #tpu.pipeline_mode<synchronous>, transform_indices = @transform_1, window_bounds = array<i64: 2, 8>}, {pipeline_mode = #tpu.pipeline_mode<synchronous>, transform_indices = @transform_2, window_bounds = array<i64: 320, 128>}, {pipeline_mode = #tpu.pipeline_mode<synchronous>, transform_indices = @transform_3, window_bounds = array<i64: 16, 128>}, {pipeline_mode = #tpu.pipeline_mode<synchronous>, transform_indices = @transform_4, window_bounds = array<i64: 2, 7, 32>}]} {
    %c0 = arith.constant 0 : index
    %c0_0 = arith.constant 0 : index
    %0 = vector.load %arg1[%c0, %c0_0] : memref<16x32xf32, #tpu.memory_space<vmem>>, vector<16x32xf32>
    %c0_1 = arith.constant 0 : index
    %c0_2 = arith.constant 0 : index
    %1 = vector.load %arg2[%c0_1, %c0_2] : memref<2x8xf32, #tpu.memory_space<vmem>>, vector<1x8xf32>
    %2 = vector.shape_cast %1 : vector<1x8xf32> to vector<1x8xf32>
    %3 = vector.broadcast %2 : vector<1x8xf32> to vector<8x8xf32>
    %c1 = arith.constant 1 : index
    %c0_3 = arith.constant 0 : index
    %4 = vector.load %arg2[%c1, %c0_3] : memref<2x8xf32, #tpu.memory_space<vmem>>, vector<1x8xf32>
    %5 = vector.shape_cast %4 : vector<1x8xf32> to vector<1x8xf32>
    %6 = vector.broadcast %5 : vector<1x8xf32> to vector<8x8xf32>
    %7 = tpu.iota {dimensions = array<i32: 1>} : vector<7x32xi32>
    %c0_4 = arith.constant 0 : index
    %c0_5 = arith.constant 0 : index
    %8 = vector.load %arg3[%c0_4, %c0_5] : memref<320x128xf32, #tpu.memory_space<vmem>>, vector<32x96xf32>
    %c32 = arith.constant 32 : index
    %c0_6 = arith.constant 0 : index
    %9 = vector.load %arg3[%c32, %c0_6] : memref<320x128xf32, #tpu.memory_space<vmem>>, vector<32x32xf32>
    %c64 = arith.constant 64 : index
    %c0_7 = arith.constant 0 : index
    %10 = vector.load %arg3[%c64, %c0_7] : memref<320x128xf32, #tpu.memory_space<vmem>>, vector<32x64xf32>
    %c96 = arith.constant 96 : index
    %c0_8 = arith.constant 0 : index
    %11 = vector.load %arg3[%c96, %c0_8] : memref<320x128xf32, #tpu.memory_space<vmem>>, vector<64x32xf32>
    %c0_9 = arith.constant 0 : index
    %c0_10 = arith.constant 0 : index
    %12 = vector.load %arg4[%c0_9, %c0_10] : memref<16x128xf32, #tpu.memory_space<vmem>>, vector<1x96xf32>
    %c1_11 = arith.constant 1 : index
    %c0_12 = arith.constant 0 : index
    %13 = vector.load %arg4[%c1_11, %c0_12] : memref<16x128xf32, #tpu.memory_space<vmem>>, vector<1x32xf32>
    %c2 = arith.constant 2 : index
    %c0_13 = arith.constant 0 : index
    %14 = vector.load %arg4[%c2, %c0_13] : memref<16x128xf32, #tpu.memory_space<vmem>>, vector<1x32xf32>
    %c3 = arith.constant 3 : index
    %c0_14 = arith.constant 0 : index
    %15 = vector.load %arg4[%c3, %c0_14] : memref<16x128xf32, #tpu.memory_space<vmem>>, vector<1x32xf32>
    %c4 = arith.constant 4 : index
    %c0_15 = arith.constant 0 : index
    %16 = vector.load %arg4[%c4, %c0_15] : memref<16x128xf32, #tpu.memory_space<vmem>>, vector<1x64xf32>
    %c5 = arith.constant 5 : index
    %c0_16 = arith.constant 0 : index
    %17 = vector.load %arg4[%c5, %c0_16] : memref<16x128xf32, #tpu.memory_space<vmem>>, vector<1x32xf32>
    %c6 = arith.constant 6 : index
    %c0_17 = arith.constant 0 : index
    %18 = vector.load %arg4[%c6, %c0_17] : memref<16x128xf32, #tpu.memory_space<vmem>>, vector<1x32xf32>
    %c7 = arith.constant 7 : index
    %c0_18 = arith.constant 0 : index
    %19 = vector.load %arg4[%c7, %c0_18] : memref<16x128xf32, #tpu.memory_space<vmem>>, vector<1x32xf32>
    %cst = arith.constant dense<0.000000e+00> : vector<16x96xf32>
    %20 = tpu.matmul %0, %8, %cst {dimension_numbers = #tpu.dot_dimension_numbers<[1], [0], [0], [1], [0, 0, 1, 1], [], []>} : vector<16x32xf32>, vector<32x96xf32>, vector<16x96xf32> -> vector<16x96xf32>
    %21 = vector.broadcast %12 : vector<1x96xf32> to vector<16x96xf32>
    %22 = arith.addf %20, %21 : vector<16x96xf32>
    %23 = vector.extract_strided_slice %22 {offsets = [0, 0], sizes = [16, 32], strides = [1, 1]} : vector<16x96xf32> to vector<16x32xf32>
    %cst_19 = arith.constant 0.353553385 : f32
    %24 = vector.broadcast %cst_19 : f32 to vector<16x32xf32>
    %25 = arith.mulf %23, %24 : vector<16x32xf32>
    %26 = vector.extract_strided_slice %22 {offsets = [0, 32], sizes = [16, 32], strides = [1, 1]} : vector<16x96xf32> to vector<16x32xf32>
    %27 = vector.extract_strided_slice %22 {offsets = [0, 64], sizes = [16, 32], strides = [1, 1]} : vector<16x96xf32> to vector<16x32xf32>
    %28 = vector.extract_strided_slice %25 {offsets = [0, 0], sizes = [8, 32], strides = [1, 1]} : vector<16x32xf32> to vector<8x32xf32>
    %29 = vector.extract_strided_slice %26 {offsets = [0, 0], sizes = [8, 32], strides = [1, 1]} : vector<16x32xf32> to vector<8x32xf32>
    %30 = vector.extract_strided_slice %27 {offsets = [0, 0], sizes = [8, 32], strides = [1, 1]} : vector<16x32xf32> to vector<8x32xf32>
    %31 = vector.extract_strided_slice %28 {offsets = [0, 0], sizes = [8, 8], strides = [1, 1]} : vector<8x32xf32> to vector<8x8xf32>
    %32 = vector.extract_strided_slice %29 {offsets = [0, 0], sizes = [8, 8], strides = [1, 1]} : vector<8x32xf32> to vector<8x8xf32>
    %33 = vector.extract_strided_slice %30 {offsets = [0, 0], sizes = [8, 8], strides = [1, 1]} : vector<8x32xf32> to vector<8x8xf32>
    %cst_20 = arith.constant dense<0.000000e+00> : vector<8x8xf32>
    %34 = tpu.matmul %31, %32, %cst_20 {dimension_numbers = #tpu.dot_dimension_numbers<[1], [1], [0], [0], [0, 0, 1, 0], [], []>} : vector<8x8xf32>, vector<8x8xf32>, vector<8x8xf32> -> vector<8x8xf32>
    %35 = arith.addf %34, %3 : vector<8x8xf32>
    %cst_21 = arith.constant dense<0xFF800000> : vector<8xf32>
    %36 = vector.multi_reduction <maximumf>, %35, %cst_21 [1] : vector<8x8xf32> to vector<8xf32>
    %37 = vector.shape_cast %36 : vector<8xf32> to vector<8x1xf32>
    %38 = vector.broadcast %37 : vector<8x1xf32> to vector<8x8xf32>
    %39 = arith.subf %35, %38 : vector<8x8xf32>
    %40 = math.exp %39 : vector<8x8xf32>
    %cst_22 = arith.constant dense<0.000000e+00> : vector<8xf32>
    %41 = vector.multi_reduction <add>, %40, %cst_22 [1] : vector<8x8xf32> to vector<8xf32>
    %42 = vector.shape_cast %41 : vector<8xf32> to vector<8x1xf32>
    %43 = tpu.reciprocal %42 {approx = true} : vector<8x1xf32> -> vector<8x1xf32>
    %44 = vector.broadcast %43 : vector<8x1xf32> to vector<8x8xf32>
    %45 = arith.mulf %40, %44 : vector<8x8xf32>
    %cst_23 = arith.constant dense<0.000000e+00> : vector<8x8xf32>
    %46 = tpu.matmul %45, %33, %cst_23 {dimension_numbers = #tpu.dot_dimension_numbers<[1], [0], [0], [1], [0, 0, 1, 1], [], []>} : vector<8x8xf32>, vector<8x8xf32>, vector<8x8xf32> -> vector<8x8xf32>
    %47 = vector.extract_strided_slice %28 {offsets = [0, 8], sizes = [8, 8], strides = [1, 1]} : vector<8x32xf32> to vector<8x8xf32>
    %48 = vector.extract_strided_slice %29 {offsets = [0, 8], sizes = [8, 8], strides = [1, 1]} : vector<8x32xf32> to vector<8x8xf32>
    %49 = vector.extract_strided_slice %30 {offsets = [0, 8], sizes = [8, 8], strides = [1, 1]} : vector<8x32xf32> to vector<8x8xf32>
    %cst_24 = arith.constant dense<0.000000e+00> : vector<8x8xf32>
    %50 = tpu.matmul %47, %48, %cst_24 {dimension_numbers = #tpu.dot_dimension_numbers<[1], [1], [0], [0], [0, 0, 1, 0], [], []>} : vector<8x8xf32>, vector<8x8xf32>, vector<8x8xf32> -> vector<8x8xf32>
    %51 = arith.addf %50, %3 : vector<8x8xf32>
    %cst_25 = arith.constant dense<0xFF800000> : vector<8xf32>
    %52 = vector.multi_reduction <maximumf>, %51, %cst_25 [1] : vector<8x8xf32> to vector<8xf32>
    %53 = vector.shape_cast %52 : vector<8xf32> to vector<8x1xf32>
    %54 = vector.broadcast %53 : vector<8x1xf32> to vector<8x8xf32>
    %55 = arith.subf %51, %54 : vector<8x8xf32>
    %56 = math.exp %55 : vector<8x8xf32>
    %cst_26 = arith.constant dense<0.000000e+00> : vector<8xf32>
    %57 = vector.multi_reduction <add>, %56, %cst_26 [1] : vector<8x8xf32> to vector<8xf32>
    %58 = vector.shape_cast %57 : vector<8xf32> to vector<8x1xf32>
    %59 = tpu.reciprocal %58 {approx = true} : vector<8x1xf32> -> vector<8x1xf32>
    %60 = vector.broadcast %59 : vector<8x1xf32> to vector<8x8xf32>
    %61 = arith.mulf %56, %60 : vector<8x8xf32>
    %cst_27 = arith.constant dense<0.000000e+00> : vector<8x8xf32>
    %62 = tpu.matmul %61, %49, %cst_27 {dimension_numbers = #tpu.dot_dimension_numbers<[1], [0], [0], [1], [0, 0, 1, 1], [], []>} : vector<8x8xf32>, vector<8x8xf32>, vector<8x8xf32> -> vector<8x8xf32>
    %63 = vector.extract_strided_slice %28 {offsets = [0, 16], sizes = [8, 8], strides = [1, 1]} : vector<8x32xf32> to vector<8x8xf32>
    %64 = vector.extract_strided_slice %29 {offsets = [0, 16], sizes = [8, 8], strides = [1, 1]} : vector<8x32xf32> to vector<8x8xf32>
    %65 = vector.extract_strided_slice %30 {offsets = [0, 16], sizes = [8, 8], strides = [1, 1]} : vector<8x32xf32> to vector<8x8xf32>
    %cst_28 = arith.constant dense<0.000000e+00> : vector<8x8xf32>
    %66 = tpu.matmul %63, %64, %cst_28 {dimension_numbers = #tpu.dot_dimension_numbers<[1], [1], [0], [0], [0, 0, 1, 0], [], []>} : vector<8x8xf32>, vector<8x8xf32>, vector<8x8xf32> -> vector<8x8xf32>
    %67 = arith.addf %66, %3 : vector<8x8xf32>
    %cst_29 = arith.constant dense<0xFF800000> : vector<8xf32>
    %68 = vector.multi_reduction <maximumf>, %67, %cst_29 [1] : vector<8x8xf32> to vector<8xf32>
    %69 = vector.shape_cast %68 : vector<8xf32> to vector<8x1xf32>
    %70 = vector.broadcast %69 : vector<8x1xf32> to vector<8x8xf32>
    %71 = arith.subf %67, %70 : vector<8x8xf32>
    %72 = math.exp %71 : vector<8x8xf32>
    %cst_30 = arith.constant dense<0.000000e+00> : vector<8xf32>
    %73 = vector.multi_reduction <add>, %72, %cst_30 [1] : vector<8x8xf32> to vector<8xf32>
    %74 = vector.shape_cast %73 : vector<8xf32> to vector<8x1xf32>
    %75 = tpu.reciprocal %74 {approx = true} : vector<8x1xf32> -> vector<8x1xf32>
    %76 = vector.broadcast %75 : vector<8x1xf32> to vector<8x8xf32>
    %77 = arith.mulf %72, %76 : vector<8x8xf32>
    %cst_31 = arith.constant dense<0.000000e+00> : vector<8x8xf32>
    %78 = tpu.matmul %77, %65, %cst_31 {dimension_numbers = #tpu.dot_dimension_numbers<[1], [0], [0], [1], [0, 0, 1, 1], [], []>} : vector<8x8xf32>, vector<8x8xf32>, vector<8x8xf32> -> vector<8x8xf32>
    %79 = vector.extract_strided_slice %28 {offsets = [0, 24], sizes = [8, 8], strides = [1, 1]} : vector<8x32xf32> to vector<8x8xf32>
    %80 = vector.extract_strided_slice %29 {offsets = [0, 24], sizes = [8, 8], strides = [1, 1]} : vector<8x32xf32> to vector<8x8xf32>
    %81 = vector.extract_strided_slice %30 {offsets = [0, 24], sizes = [8, 8], strides = [1, 1]} : vector<8x32xf32> to vector<8x8xf32>
    %cst_32 = arith.constant dense<0.000000e+00> : vector<8x8xf32>
    %82 = tpu.matmul %79, %80, %cst_32 {dimension_numbers = #tpu.dot_dimension_numbers<[1], [1], [0], [0], [0, 0, 1, 0], [], []>} : vector<8x8xf32>, vector<8x8xf32>, vector<8x8xf32> -> vector<8x8xf32>
    %83 = arith.addf %82, %3 : vector<8x8xf32>
    %cst_33 = arith.constant dense<0xFF800000> : vector<8xf32>
    %84 = vector.multi_reduction <maximumf>, %83, %cst_33 [1] : vector<8x8xf32> to vector<8xf32>
    %85 = vector.shape_cast %84 : vector<8xf32> to vector<8x1xf32>
    %86 = vector.broadcast %85 : vector<8x1xf32> to vector<8x8xf32>
    %87 = arith.subf %83, %86 : vector<8x8xf32>
    %88 = math.exp %87 : vector<8x8xf32>
    %cst_34 = arith.constant dense<0.000000e+00> : vector<8xf32>
    %89 = vector.multi_reduction <add>, %88, %cst_34 [1] : vector<8x8xf32> to vector<8xf32>
    %90 = vector.shape_cast %89 : vector<8xf32> to vector<8x1xf32>
    %91 = tpu.reciprocal %90 {approx = true} : vector<8x1xf32> -> vector<8x1xf32>
    %92 = vector.broadcast %91 : vector<8x1xf32> to vector<8x8xf32>
    %93 = arith.mulf %88, %92 : vector<8x8xf32>
    %cst_35 = arith.constant dense<0.000000e+00> : vector<8x8xf32>
    %94 = tpu.matmul %93, %81, %cst_35 {dimension_numbers = #tpu.dot_dimension_numbers<[1], [0], [0], [1], [0, 0, 1, 1], [], []>} : vector<8x8xf32>, vector<8x8xf32>, vector<8x8xf32> -> vector<8x8xf32>
    %95 = tpu.concatenate %46, %62, %78, %94 in 1 : vector<8x8xf32>, vector<8x8xf32>, vector<8x8xf32>, vector<8x8xf32> -> vector<8x32xf32>
    %96 = vector.extract_strided_slice %25 {offsets = [8, 0], sizes = [8, 32], strides = [1, 1]} : vector<16x32xf32> to vector<8x32xf32>
    %97 = vector.extract_strided_slice %26 {offsets = [8, 0], sizes = [8, 32], strides = [1, 1]} : vector<16x32xf32> to vector<8x32xf32>
    %98 = vector.extract_strided_slice %27 {offsets = [8, 0], sizes = [8, 32], strides = [1, 1]} : vector<16x32xf32> to vector<8x32xf32>
    %99 = vector.extract_strided_slice %96 {offsets = [0, 0], sizes = [8, 8], strides = [1, 1]} : vector<8x32xf32> to vector<8x8xf32>
    %100 = vector.extract_strided_slice %97 {offsets = [0, 0], sizes = [8, 8], strides = [1, 1]} : vector<8x32xf32> to vector<8x8xf32>
    %101 = vector.extract_strided_slice %98 {offsets = [0, 0], sizes = [8, 8], strides = [1, 1]} : vector<8x32xf32> to vector<8x8xf32>
    %cst_36 = arith.constant dense<0.000000e+00> : vector<8x8xf32>
    %102 = tpu.matmul %99, %100, %cst_36 {dimension_numbers = #tpu.dot_dimension_numbers<[1], [1], [0], [0], [0, 0, 1, 0], [], []>} : vector<8x8xf32>, vector<8x8xf32>, vector<8x8xf32> -> vector<8x8xf32>
    %103 = arith.addf %102, %6 : vector<8x8xf32>
    %cst_37 = arith.constant dense<0xFF800000> : vector<8xf32>
    %104 = vector.multi_reduction <maximumf>, %103, %cst_37 [1] : vector<8x8xf32> to vector<8xf32>
    %105 = vector.shape_cast %104 : vector<8xf32> to vector<8x1xf32>
    %106 = vector.broadcast %105 : vector<8x1xf32> to vector<8x8xf32>
    %107 = arith.subf %103, %106 : vector<8x8xf32>
    %108 = math.exp %107 : vector<8x8xf32>
    %cst_38 = arith.constant dense<0.000000e+00> : vector<8xf32>
    %109 = vector.multi_reduction <add>, %108, %cst_38 [1] : vector<8x8xf32> to vector<8xf32>
    %110 = vector.shape_cast %109 : vector<8xf32> to vector<8x1xf32>
    %111 = tpu.reciprocal %110 {approx = true} : vector<8x1xf32> -> vector<8x1xf32>
    %112 = vector.broadcast %111 : vector<8x1xf32> to vector<8x8xf32>
    %113 = arith.mulf %108, %112 : vector<8x8xf32>
    %cst_39 = arith.constant dense<0.000000e+00> : vector<8x8xf32>
    %114 = tpu.matmul %113, %101, %cst_39 {dimension_numbers = #tpu.dot_dimension_numbers<[1], [0], [0], [1], [0, 0, 1, 1], [], []>} : vector<8x8xf32>, vector<8x8xf32>, vector<8x8xf32> -> vector<8x8xf32>
    %115 = vector.extract_strided_slice %96 {offsets = [0, 8], sizes = [8, 8], strides = [1, 1]} : vector<8x32xf32> to vector<8x8xf32>
    %116 = vector.extract_strided_slice %97 {offsets = [0, 8], sizes = [8, 8], strides = [1, 1]} : vector<8x32xf32> to vector<8x8xf32>
    %117 = vector.extract_strided_slice %98 {offsets = [0, 8], sizes = [8, 8], strides = [1, 1]} : vector<8x32xf32> to vector<8x8xf32>
    %cst_40 = arith.constant dense<0.000000e+00> : vector<8x8xf32>
    %118 = tpu.matmul %115, %116, %cst_40 {dimension_numbers = #tpu.dot_dimension_numbers<[1], [1], [0], [0], [0, 0, 1, 0], [], []>} : vector<8x8xf32>, vector<8x8xf32>, vector<8x8xf32> -> vector<8x8xf32>
    %119 = arith.addf %118, %6 : vector<8x8xf32>
    %cst_41 = arith.constant dense<0xFF800000> : vector<8xf32>
    %120 = vector.multi_reduction <maximumf>, %119, %cst_41 [1] : vector<8x8xf32> to vector<8xf32>
    %121 = vector.shape_cast %120 : vector<8xf32> to vector<8x1xf32>
    %122 = vector.broadcast %121 : vector<8x1xf32> to vector<8x8xf32>
    %123 = arith.subf %119, %122 : vector<8x8xf32>
    %124 = math.exp %123 : vector<8x8xf32>
    %cst_42 = arith.constant dense<0.000000e+00> : vector<8xf32>
    %125 = vector.multi_reduction <add>, %124, %cst_42 [1] : vector<8x8xf32> to vector<8xf32>
    %126 = vector.shape_cast %125 : vector<8xf32> to vector<8x1xf32>
    %127 = tpu.reciprocal %126 {approx = true} : vector<8x1xf32> -> vector<8x1xf32>
    %128 = vector.broadcast %127 : vector<8x1xf32> to vector<8x8xf32>
    %129 = arith.mulf %124, %128 : vector<8x8xf32>
    %cst_43 = arith.constant dense<0.000000e+00> : vector<8x8xf32>
    %130 = tpu.matmul %129, %117, %cst_43 {dimension_numbers = #tpu.dot_dimension_numbers<[1], [0], [0], [1], [0, 0, 1, 1], [], []>} : vector<8x8xf32>, vector<8x8xf32>, vector<8x8xf32> -> vector<8x8xf32>
    %131 = vector.extract_strided_slice %96 {offsets = [0, 16], sizes = [8, 8], strides = [1, 1]} : vector<8x32xf32> to vector<8x8xf32>
    %132 = vector.extract_strided_slice %97 {offsets = [0, 16], sizes = [8, 8], strides = [1, 1]} : vector<8x32xf32> to vector<8x8xf32>
    %133 = vector.extract_strided_slice %98 {offsets = [0, 16], sizes = [8, 8], strides = [1, 1]} : vector<8x32xf32> to vector<8x8xf32>
    %cst_44 = arith.constant dense<0.000000e+00> : vector<8x8xf32>
    %134 = tpu.matmul %131, %132, %cst_44 {dimension_numbers = #tpu.dot_dimension_numbers<[1], [1], [0], [0], [0, 0, 1, 0], [], []>} : vector<8x8xf32>, vector<8x8xf32>, vector<8x8xf32> -> vector<8x8xf32>
    %135 = arith.addf %134, %6 : vector<8x8xf32>
    %cst_45 = arith.constant dense<0xFF800000> : vector<8xf32>
    %136 = vector.multi_reduction <maximumf>, %135, %cst_45 [1] : vector<8x8xf32> to vector<8xf32>
    %137 = vector.shape_cast %136 : vector<8xf32> to vector<8x1xf32>
    %138 = vector.broadcast %137 : vector<8x1xf32> to vector<8x8xf32>
    %139 = arith.subf %135, %138 : vector<8x8xf32>
    %140 = math.exp %139 : vector<8x8xf32>
    %cst_46 = arith.constant dense<0.000000e+00> : vector<8xf32>
    %141 = vector.multi_reduction <add>, %140, %cst_46 [1] : vector<8x8xf32> to vector<8xf32>
    %142 = vector.shape_cast %141 : vector<8xf32> to vector<8x1xf32>
    %143 = tpu.reciprocal %142 {approx = true} : vector<8x1xf32> -> vector<8x1xf32>
    %144 = vector.broadcast %143 : vector<8x1xf32> to vector<8x8xf32>
    %145 = arith.mulf %140, %144 : vector<8x8xf32>
    %cst_47 = arith.constant dense<0.000000e+00> : vector<8x8xf32>
    %146 = tpu.matmul %145, %133, %cst_47 {dimension_numbers = #tpu.dot_dimension_numbers<[1], [0], [0], [1], [0, 0, 1, 1], [], []>} : vector<8x8xf32>, vector<8x8xf32>, vector<8x8xf32> -> vector<8x8xf32>
    %147 = vector.extract_strided_slice %96 {offsets = [0, 24], sizes = [8, 8], strides = [1, 1]} : vector<8x32xf32> to vector<8x8xf32>
    %148 = vector.extract_strided_slice %97 {offsets = [0, 24], sizes = [8, 8], strides = [1, 1]} : vector<8x32xf32> to vector<8x8xf32>
    %149 = vector.extract_strided_slice %98 {offsets = [0, 24], sizes = [8, 8], strides = [1, 1]} : vector<8x32xf32> to vector<8x8xf32>
    %cst_48 = arith.constant dense<0.000000e+00> : vector<8x8xf32>
    %150 = tpu.matmul %147, %148, %cst_48 {dimension_numbers = #tpu.dot_dimension_numbers<[1], [1], [0], [0], [0, 0, 1, 0], [], []>} : vector<8x8xf32>, vector<8x8xf32>, vector<8x8xf32> -> vector<8x8xf32>
    %151 = arith.addf %150, %6 : vector<8x8xf32>
    %cst_49 = arith.constant dense<0xFF800000> : vector<8xf32>
    %152 = vector.multi_reduction <maximumf>, %151, %cst_49 [1] : vector<8x8xf32> to vector<8xf32>
    %153 = vector.shape_cast %152 : vector<8xf32> to vector<8x1xf32>
    %154 = vector.broadcast %153 : vector<8x1xf32> to vector<8x8xf32>
    %155 = arith.subf %151, %154 : vector<8x8xf32>
    %156 = math.exp %155 : vector<8x8xf32>
    %cst_50 = arith.constant dense<0.000000e+00> : vector<8xf32>
    %157 = vector.multi_reduction <add>, %156, %cst_50 [1] : vector<8x8xf32> to vector<8xf32>
    %158 = vector.shape_cast %157 : vector<8xf32> to vector<8x1xf32>
    %159 = tpu.reciprocal %158 {approx = true} : vector<8x1xf32> -> vector<8x1xf32>
    %160 = vector.broadcast %159 : vector<8x1xf32> to vector<8x8xf32>
    %161 = arith.mulf %156, %160 : vector<8x8xf32>
    %cst_51 = arith.constant dense<0.000000e+00> : vector<8x8xf32>
    %162 = tpu.matmul %161, %149, %cst_51 {dimension_numbers = #tpu.dot_dimension_numbers<[1], [0], [0], [1], [0, 0, 1, 1], [], []>} : vector<8x8xf32>, vector<8x8xf32>, vector<8x8xf32> -> vector<8x8xf32>
    %163 = tpu.concatenate %114, %130, %146, %162 in 1 : vector<8x8xf32>, vector<8x8xf32>, vector<8x8xf32>, vector<8x8xf32> -> vector<8x32xf32>
    %164 = tpu.concatenate %95, %163 in 0 : vector<8x32xf32>, vector<8x32xf32> -> vector<16x32xf32>
    %cst_52 = arith.constant dense<0.000000e+00> : vector<16x32xf32>
    %165 = tpu.matmul %164, %9, %cst_52 {dimension_numbers = #tpu.dot_dimension_numbers<[1], [0], [0], [1], [0, 0, 1, 1], [], []>} : vector<16x32xf32>, vector<32x32xf32>, vector<16x32xf32> -> vector<16x32xf32>
    %166 = vector.broadcast %13 : vector<1x32xf32> to vector<16x32xf32>
    %167 = arith.addf %165, %166 : vector<16x32xf32>
    %168 = arith.addf %0, %167 : vector<16x32xf32>
    %cst_53 = arith.constant dense<0.000000e+00> : vector<16xf32>
    %169 = vector.multi_reduction <add>, %168, %cst_53 [1] : vector<16x32xf32> to vector<16xf32>
    %170 = vector.shape_cast %169 : vector<16xf32> to vector<16x1xf32>
    %cst_54 = arith.constant 3.200000e+01 : f32
    %171 = vector.broadcast %cst_54 : f32 to vector<16x1xf32>
    %172 = arith.divf %170, %171 : vector<16x1xf32>
    %173 = vector.broadcast %172 : vector<16x1xf32> to vector<16x32xf32>
    %174 = arith.subf %168, %173 : vector<16x32xf32>
    %175 = arith.mulf %174, %174 : vector<16x32xf32>
    %cst_55 = arith.constant dense<0.000000e+00> : vector<16xf32>
    %176 = vector.multi_reduction <add>, %175, %cst_55 [1] : vector<16x32xf32> to vector<16xf32>
    %177 = vector.shape_cast %176 : vector<16xf32> to vector<16x1xf32>
    %cst_56 = arith.constant 3.200000e+01 : f32
    %178 = vector.broadcast %cst_56 : f32 to vector<16x1xf32>
    %179 = arith.divf %177, %178 : vector<16x1xf32>
    %180 = vector.broadcast %172 : vector<16x1xf32> to vector<16x32xf32>
    %181 = arith.subf %168, %180 : vector<16x32xf32>
    %cst_57 = arith.constant 9.99999974E-6 : f32
    %182 = vector.broadcast %cst_57 : f32 to vector<16x1xf32>
    %183 = arith.addf %179, %182 : vector<16x1xf32>
    %184 = math.rsqrt %183 : vector<16x1xf32>
    %185 = vector.broadcast %184 : vector<16x1xf32> to vector<16x32xf32>
    %186 = arith.mulf %181, %185 : vector<16x32xf32>
    %187 = vector.broadcast %14 : vector<1x32xf32> to vector<16x32xf32>
    %188 = arith.mulf %186, %187 : vector<16x32xf32>
    %189 = vector.broadcast %15 : vector<1x32xf32> to vector<16x32xf32>
    %190 = arith.addf %188, %189 : vector<16x32xf32>
    %cst_58 = arith.constant dense<0.000000e+00> : vector<16x64xf32>
    %191 = tpu.matmul %190, %10, %cst_58 {dimension_numbers = #tpu.dot_dimension_numbers<[1], [0], [0], [1], [0, 0, 1, 1], [], []>} : vector<16x32xf32>, vector<32x64xf32>, vector<16x64xf32> -> vector<16x64xf32>
    %192 = vector.broadcast %16 : vector<1x64xf32> to vector<16x64xf32>
    %193 = arith.addf %191, %192 : vector<16x64xf32>
    %cst_59 = arith.constant 0.000000e+00 : f32
    %194 = vector.broadcast %cst_59 : f32 to vector<16x64xf32>
    %195 = arith.maximumf %193, %194 : vector<16x64xf32>
    %cst_60 = arith.constant dense<0.000000e+00> : vector<16x32xf32>
    %196 = tpu.matmul %195, %11, %cst_60 {dimension_numbers = #tpu.dot_dimension_numbers<[1], [0], [0], [1], [0, 0, 1, 1], [], []>} : vector<16x64xf32>, vector<64x32xf32>, vector<16x32xf32> -> vector<16x32xf32>
    %197 = vector.broadcast %17 : vector<1x32xf32> to vector<16x32xf32>
    %198 = arith.addf %196, %197 : vector<16x32xf32>
    %199 = arith.addf %190, %198 : vector<16x32xf32>
    %cst_61 = arith.constant dense<0.000000e+00> : vector<16xf32>
    %200 = vector.multi_reduction <add>, %199, %cst_61 [1] : vector<16x32xf32> to vector<16xf32>
    %201 = vector.shape_cast %200 : vector<16xf32> to vector<16x1xf32>
    %cst_62 = arith.constant 3.200000e+01 : f32
    %202 = vector.broadcast %cst_62 : f32 to vector<16x1xf32>
    %203 = arith.divf %201, %202 : vector<16x1xf32>
    %204 = vector.broadcast %203 : vector<16x1xf32> to vector<16x32xf32>
    %205 = arith.subf %199, %204 : vector<16x32xf32>
    %206 = arith.mulf %205, %205 : vector<16x32xf32>
    %cst_63 = arith.constant dense<0.000000e+00> : vector<16xf32>
    %207 = vector.multi_reduction <add>, %206, %cst_63 [1] : vector<16x32xf32> to vector<16xf32>
    %208 = vector.shape_cast %207 : vector<16xf32> to vector<16x1xf32>
    %cst_64 = arith.constant 3.200000e+01 : f32
    %209 = vector.broadcast %cst_64 : f32 to vector<16x1xf32>
    %210 = arith.divf %208, %209 : vector<16x1xf32>
    %211 = vector.broadcast %203 : vector<16x1xf32> to vector<16x32xf32>
    %212 = arith.subf %199, %211 : vector<16x32xf32>
    %cst_65 = arith.constant 9.99999974E-6 : f32
    %213 = vector.broadcast %cst_65 : f32 to vector<16x1xf32>
    %214 = arith.addf %210, %213 : vector<16x1xf32>
    %215 = math.rsqrt %214 : vector<16x1xf32>
    %216 = vector.broadcast %215 : vector<16x1xf32> to vector<16x32xf32>
    %217 = arith.mulf %212, %216 : vector<16x32xf32>
    %218 = vector.broadcast %18 : vector<1x32xf32> to vector<16x32xf32>
    %219 = arith.mulf %217, %218 : vector<16x32xf32>
    %220 = vector.broadcast %19 : vector<1x32xf32> to vector<16x32xf32>
    %221 = arith.addf %219, %220 : vector<16x32xf32>
    %c160 = arith.constant 160 : index
    %c0_66 = arith.constant 0 : index
    %222 = vector.load %arg3[%c160, %c0_66] : memref<320x128xf32, #tpu.memory_space<vmem>>, vector<32x96xf32>
    %c192 = arith.constant 192 : index
    %c0_67 = arith.constant 0 : index
    %223 = vector.load %arg3[%c192, %c0_67] : memref<320x128xf32, #tpu.memory_space<vmem>>, vector<32x32xf32>
    %c224 = arith.constant 224 : index
    %c0_68 = arith.constant 0 : index
    %224 = vector.load %arg3[%c224, %c0_68] : memref<320x128xf32, #tpu.memory_space<vmem>>, vector<32x64xf32>
    %c256 = arith.constant 256 : index
    %c0_69 = arith.constant 0 : index
    %225 = vector.load %arg3[%c256, %c0_69] : memref<320x128xf32, #tpu.memory_space<vmem>>, vector<64x32xf32>
    %c8 = arith.constant 8 : index
    %c0_70 = arith.constant 0 : index
    %226 = vector.load %arg4[%c8, %c0_70] : memref<16x128xf32, #tpu.memory_space<vmem>>, vector<1x96xf32>
    %c9 = arith.constant 9 : index
    %c0_71 = arith.constant 0 : index
    %227 = vector.load %arg4[%c9, %c0_71] : memref<16x128xf32, #tpu.memory_space<vmem>>, vector<1x32xf32>
    %c10 = arith.constant 10 : index
    %c0_72 = arith.constant 0 : index
    %228 = vector.load %arg4[%c10, %c0_72] : memref<16x128xf32, #tpu.memory_space<vmem>>, vector<1x32xf32>
    %c11 = arith.constant 11 : index
    %c0_73 = arith.constant 0 : index
    %229 = vector.load %arg4[%c11, %c0_73] : memref<16x128xf32, #tpu.memory_space<vmem>>, vector<1x32xf32>
    %c12 = arith.constant 12 : index
    %c0_74 = arith.constant 0 : index
    %230 = vector.load %arg4[%c12, %c0_74] : memref<16x128xf32, #tpu.memory_space<vmem>>, vector<1x64xf32>
    %c13 = arith.constant 13 : index
    %c0_75 = arith.constant 0 : index
    %231 = vector.load %arg4[%c13, %c0_75] : memref<16x128xf32, #tpu.memory_space<vmem>>, vector<1x32xf32>
    %c14 = arith.constant 14 : index
    %c0_76 = arith.constant 0 : index
    %232 = vector.load %arg4[%c14, %c0_76] : memref<16x128xf32, #tpu.memory_space<vmem>>, vector<1x32xf32>
    %c15 = arith.constant 15 : index
    %c0_77 = arith.constant 0 : index
    %233 = vector.load %arg4[%c15, %c0_77] : memref<16x128xf32, #tpu.memory_space<vmem>>, vector<1x32xf32>
    %cst_78 = arith.constant dense<0.000000e+00> : vector<16x96xf32>
    %234 = tpu.matmul %221, %222, %cst_78 {dimension_numbers = #tpu.dot_dimension_numbers<[1], [0], [0], [1], [0, 0, 1, 1], [], []>} : vector<16x32xf32>, vector<32x96xf32>, vector<16x96xf32> -> vector<16x96xf32>
    %235 = vector.broadcast %226 : vector<1x96xf32> to vector<16x96xf32>
    %236 = arith.addf %234, %235 : vector<16x96xf32>
    %237 = vector.extract_strided_slice %236 {offsets = [0, 0], sizes = [16, 32], strides = [1, 1]} : vector<16x96xf32> to vector<16x32xf32>
    %cst_79 = arith.constant 0.353553385 : f32
    %238 = vector.broadcast %cst_79 : f32 to vector<16x32xf32>
    %239 = arith.mulf %237, %238 : vector<16x32xf32>
    %240 = vector.extract_strided_slice %236 {offsets = [0, 32], sizes = [16, 32], strides = [1, 1]} : vector<16x96xf32> to vector<16x32xf32>
    %241 = vector.extract_strided_slice %236 {offsets = [0, 64], sizes = [16, 32], strides = [1, 1]} : vector<16x96xf32> to vector<16x32xf32>
    %242 = vector.extract_strided_slice %239 {offsets = [0, 0], sizes = [8, 32], strides = [1, 1]} : vector<16x32xf32> to vector<8x32xf32>
    %243 = vector.extract_strided_slice %240 {offsets = [0, 0], sizes = [8, 32], strides = [1, 1]} : vector<16x32xf32> to vector<8x32xf32>
    %244 = vector.extract_strided_slice %241 {offsets = [0, 0], sizes = [8, 32], strides = [1, 1]} : vector<16x32xf32> to vector<8x32xf32>
    %245 = vector.extract_strided_slice %242 {offsets = [0, 0], sizes = [8, 8], strides = [1, 1]} : vector<8x32xf32> to vector<8x8xf32>
    %246 = vector.extract_strided_slice %243 {offsets = [0, 0], sizes = [8, 8], strides = [1, 1]} : vector<8x32xf32> to vector<8x8xf32>
    %247 = vector.extract_strided_slice %244 {offsets = [0, 0], sizes = [8, 8], strides = [1, 1]} : vector<8x32xf32> to vector<8x8xf32>
    %cst_80 = arith.constant dense<0.000000e+00> : vector<8x8xf32>
    %248 = tpu.matmul %245, %246, %cst_80 {dimension_numbers = #tpu.dot_dimension_numbers<[1], [1], [0], [0], [0, 0, 1, 0], [], []>} : vector<8x8xf32>, vector<8x8xf32>, vector<8x8xf32> -> vector<8x8xf32>
    %249 = arith.addf %248, %3 : vector<8x8xf32>
    %cst_81 = arith.constant dense<0xFF800000> : vector<8xf32>
    %250 = vector.multi_reduction <maximumf>, %249, %cst_81 [1] : vector<8x8xf32> to vector<8xf32>
    %251 = vector.shape_cast %250 : vector<8xf32> to vector<8x1xf32>
    %252 = vector.broadcast %251 : vector<8x1xf32> to vector<8x8xf32>
    %253 = arith.subf %249, %252 : vector<8x8xf32>
    %254 = math.exp %253 : vector<8x8xf32>
    %cst_82 = arith.constant dense<0.000000e+00> : vector<8xf32>
    %255 = vector.multi_reduction <add>, %254, %cst_82 [1] : vector<8x8xf32> to vector<8xf32>
    %256 = vector.shape_cast %255 : vector<8xf32> to vector<8x1xf32>
    %257 = tpu.reciprocal %256 {approx = true} : vector<8x1xf32> -> vector<8x1xf32>
    %258 = vector.broadcast %257 : vector<8x1xf32> to vector<8x8xf32>
    %259 = arith.mulf %254, %258 : vector<8x8xf32>
    %cst_83 = arith.constant dense<0.000000e+00> : vector<8x8xf32>
    %260 = tpu.matmul %259, %247, %cst_83 {dimension_numbers = #tpu.dot_dimension_numbers<[1], [0], [0], [1], [0, 0, 1, 1], [], []>} : vector<8x8xf32>, vector<8x8xf32>, vector<8x8xf32> -> vector<8x8xf32>
    %261 = vector.extract_strided_slice %242 {offsets = [0, 8], sizes = [8, 8], strides = [1, 1]} : vector<8x32xf32> to vector<8x8xf32>
    %262 = vector.extract_strided_slice %243 {offsets = [0, 8], sizes = [8, 8], strides = [1, 1]} : vector<8x32xf32> to vector<8x8xf32>
    %263 = vector.extract_strided_slice %244 {offsets = [0, 8], sizes = [8, 8], strides = [1, 1]} : vector<8x32xf32> to vector<8x8xf32>
    %cst_84 = arith.constant dense<0.000000e+00> : vector<8x8xf32>
    %264 = tpu.matmul %261, %262, %cst_84 {dimension_numbers = #tpu.dot_dimension_numbers<[1], [1], [0], [0], [0, 0, 1, 0], [], []>} : vector<8x8xf32>, vector<8x8xf32>, vector<8x8xf32> -> vector<8x8xf32>
    %265 = arith.addf %264, %3 : vector<8x8xf32>
    %cst_85 = arith.constant dense<0xFF800000> : vector<8xf32>
    %266 = vector.multi_reduction <maximumf>, %265, %cst_85 [1] : vector<8x8xf32> to vector<8xf32>
    %267 = vector.shape_cast %266 : vector<8xf32> to vector<8x1xf32>
    %268 = vector.broadcast %267 : vector<8x1xf32> to vector<8x8xf32>
    %269 = arith.subf %265, %268 : vector<8x8xf32>
    %270 = math.exp %269 : vector<8x8xf32>
    %cst_86 = arith.constant dense<0.000000e+00> : vector<8xf32>
    %271 = vector.multi_reduction <add>, %270, %cst_86 [1] : vector<8x8xf32> to vector<8xf32>
    %272 = vector.shape_cast %271 : vector<8xf32> to vector<8x1xf32>
    %273 = tpu.reciprocal %272 {approx = true} : vector<8x1xf32> -> vector<8x1xf32>
    %274 = vector.broadcast %273 : vector<8x1xf32> to vector<8x8xf32>
    %275 = arith.mulf %270, %274 : vector<8x8xf32>
    %cst_87 = arith.constant dense<0.000000e+00> : vector<8x8xf32>
    %276 = tpu.matmul %275, %263, %cst_87 {dimension_numbers = #tpu.dot_dimension_numbers<[1], [0], [0], [1], [0, 0, 1, 1], [], []>} : vector<8x8xf32>, vector<8x8xf32>, vector<8x8xf32> -> vector<8x8xf32>
    %277 = vector.extract_strided_slice %242 {offsets = [0, 16], sizes = [8, 8], strides = [1, 1]} : vector<8x32xf32> to vector<8x8xf32>
    %278 = vector.extract_strided_slice %243 {offsets = [0, 16], sizes = [8, 8], strides = [1, 1]} : vector<8x32xf32> to vector<8x8xf32>
    %279 = vector.extract_strided_slice %244 {offsets = [0, 16], sizes = [8, 8], strides = [1, 1]} : vector<8x32xf32> to vector<8x8xf32>
    %cst_88 = arith.constant dense<0.000000e+00> : vector<8x8xf32>
    %280 = tpu.matmul %277, %278, %cst_88 {dimension_numbers = #tpu.dot_dimension_numbers<[1], [1], [0], [0], [0, 0, 1, 0], [], []>} : vector<8x8xf32>, vector<8x8xf32>, vector<8x8xf32> -> vector<8x8xf32>
    %281 = arith.addf %280, %3 : vector<8x8xf32>
    %cst_89 = arith.constant dense<0xFF800000> : vector<8xf32>
    %282 = vector.multi_reduction <maximumf>, %281, %cst_89 [1] : vector<8x8xf32> to vector<8xf32>
    %283 = vector.shape_cast %282 : vector<8xf32> to vector<8x1xf32>
    %284 = vector.broadcast %283 : vector<8x1xf32> to vector<8x8xf32>
    %285 = arith.subf %281, %284 : vector<8x8xf32>
    %286 = math.exp %285 : vector<8x8xf32>
    %cst_90 = arith.constant dense<0.000000e+00> : vector<8xf32>
    %287 = vector.multi_reduction <add>, %286, %cst_90 [1] : vector<8x8xf32> to vector<8xf32>
    %288 = vector.shape_cast %287 : vector<8xf32> to vector<8x1xf32>
    %289 = tpu.reciprocal %288 {approx = true} : vector<8x1xf32> -> vector<8x1xf32>
    %290 = vector.broadcast %289 : vector<8x1xf32> to vector<8x8xf32>
    %291 = arith.mulf %286, %290 : vector<8x8xf32>
    %cst_91 = arith.constant dense<0.000000e+00> : vector<8x8xf32>
    %292 = tpu.matmul %291, %279, %cst_91 {dimension_numbers = #tpu.dot_dimension_numbers<[1], [0], [0], [1], [0, 0, 1, 1], [], []>} : vector<8x8xf32>, vector<8x8xf32>, vector<8x8xf32> -> vector<8x8xf32>
    %293 = vector.extract_strided_slice %242 {offsets = [0, 24], sizes = [8, 8], strides = [1, 1]} : vector<8x32xf32> to vector<8x8xf32>
    %294 = vector.extract_strided_slice %243 {offsets = [0, 24], sizes = [8, 8], strides = [1, 1]} : vector<8x32xf32> to vector<8x8xf32>
    %295 = vector.extract_strided_slice %244 {offsets = [0, 24], sizes = [8, 8], strides = [1, 1]} : vector<8x32xf32> to vector<8x8xf32>
    %cst_92 = arith.constant dense<0.000000e+00> : vector<8x8xf32>
    %296 = tpu.matmul %293, %294, %cst_92 {dimension_numbers = #tpu.dot_dimension_numbers<[1], [1], [0], [0], [0, 0, 1, 0], [], []>} : vector<8x8xf32>, vector<8x8xf32>, vector<8x8xf32> -> vector<8x8xf32>
    %297 = arith.addf %296, %3 : vector<8x8xf32>
    %cst_93 = arith.constant dense<0xFF800000> : vector<8xf32>
    %298 = vector.multi_reduction <maximumf>, %297, %cst_93 [1] : vector<8x8xf32> to vector<8xf32>
    %299 = vector.shape_cast %298 : vector<8xf32> to vector<8x1xf32>
    %300 = vector.broadcast %299 : vector<8x1xf32> to vector<8x8xf32>
    %301 = arith.subf %297, %300 : vector<8x8xf32>
    %302 = math.exp %301 : vector<8x8xf32>
    %cst_94 = arith.constant dense<0.000000e+00> : vector<8xf32>
    %303 = vector.multi_reduction <add>, %302, %cst_94 [1] : vector<8x8xf32> to vector<8xf32>
    %304 = vector.shape_cast %303 : vector<8xf32> to vector<8x1xf32>
    %305 = tpu.reciprocal %304 {approx = true} : vector<8x1xf32> -> vector<8x1xf32>
    %306 = vector.broadcast %305 : vector<8x1xf32> to vector<8x8xf32>
    %307 = arith.mulf %302, %306 : vector<8x8xf32>
    %cst_95 = arith.constant dense<0.000000e+00> : vector<8x8xf32>
    %308 = tpu.matmul %307, %295, %cst_95 {dimension_numbers = #tpu.dot_dimension_numbers<[1], [0], [0], [1], [0, 0, 1, 1], [], []>} : vector<8x8xf32>, vector<8x8xf32>, vector<8x8xf32> -> vector<8x8xf32>
    %309 = tpu.concatenate %260, %276, %292, %308 in 1 : vector<8x8xf32>, vector<8x8xf32>, vector<8x8xf32>, vector<8x8xf32> -> vector<8x32xf32>
    %310 = vector.extract_strided_slice %239 {offsets = [8, 0], sizes = [8, 32], strides = [1, 1]} : vector<16x32xf32> to vector<8x32xf32>
    %311 = vector.extract_strided_slice %240 {offsets = [8, 0], sizes = [8, 32], strides = [1, 1]} : vector<16x32xf32> to vector<8x32xf32>
    %312 = vector.extract_strided_slice %241 {offsets = [8, 0], sizes = [8, 32], strides = [1, 1]} : vector<16x32xf32> to vector<8x32xf32>
    %313 = vector.extract_strided_slice %310 {offsets = [0, 0], sizes = [8, 8], strides = [1, 1]} : vector<8x32xf32> to vector<8x8xf32>
    %314 = vector.extract_strided_slice %311 {offsets = [0, 0], sizes = [8, 8], strides = [1, 1]} : vector<8x32xf32> to vector<8x8xf32>
    %315 = vector.extract_strided_slice %312 {offsets = [0, 0], sizes = [8, 8], strides = [1, 1]} : vector<8x32xf32> to vector<8x8xf32>
    %cst_96 = arith.constant dense<0.000000e+00> : vector<8x8xf32>
    %316 = tpu.matmul %313, %314, %cst_96 {dimension_numbers = #tpu.dot_dimension_numbers<[1], [1], [0], [0], [0, 0, 1, 0], [], []>} : vector<8x8xf32>, vector<8x8xf32>, vector<8x8xf32> -> vector<8x8xf32>
    %317 = arith.addf %316, %6 : vector<8x8xf32>
    %cst_97 = arith.constant dense<0xFF800000> : vector<8xf32>
    %318 = vector.multi_reduction <maximumf>, %317, %cst_97 [1] : vector<8x8xf32> to vector<8xf32>
    %319 = vector.shape_cast %318 : vector<8xf32> to vector<8x1xf32>
    %320 = vector.broadcast %319 : vector<8x1xf32> to vector<8x8xf32>
    %321 = arith.subf %317, %320 : vector<8x8xf32>
    %322 = math.exp %321 : vector<8x8xf32>
    %cst_98 = arith.constant dense<0.000000e+00> : vector<8xf32>
    %323 = vector.multi_reduction <add>, %322, %cst_98 [1] : vector<8x8xf32> to vector<8xf32>
    %324 = vector.shape_cast %323 : vector<8xf32> to vector<8x1xf32>
    %325 = tpu.reciprocal %324 {approx = true} : vector<8x1xf32> -> vector<8x1xf32>
    %326 = vector.broadcast %325 : vector<8x1xf32> to vector<8x8xf32>
    %327 = arith.mulf %322, %326 : vector<8x8xf32>
    %cst_99 = arith.constant dense<0.000000e+00> : vector<8x8xf32>
    %328 = tpu.matmul %327, %315, %cst_99 {dimension_numbers = #tpu.dot_dimension_numbers<[1], [0], [0], [1], [0, 0, 1, 1], [], []>} : vector<8x8xf32>, vector<8x8xf32>, vector<8x8xf32> -> vector<8x8xf32>
    %329 = vector.extract_strided_slice %310 {offsets = [0, 8], sizes = [8, 8], strides = [1, 1]} : vector<8x32xf32> to vector<8x8xf32>
    %330 = vector.extract_strided_slice %311 {offsets = [0, 8], sizes = [8, 8], strides = [1, 1]} : vector<8x32xf32> to vector<8x8xf32>
    %331 = vector.extract_strided_slice %312 {offsets = [0, 8], sizes = [8, 8], strides = [1, 1]} : vector<8x32xf32> to vector<8x8xf32>
    %cst_100 = arith.constant dense<0.000000e+00> : vector<8x8xf32>
    %332 = tpu.matmul %329, %330, %cst_100 {dimension_numbers = #tpu.dot_dimension_numbers<[1], [1], [0], [0], [0, 0, 1, 0], [], []>} : vector<8x8xf32>, vector<8x8xf32>, vector<8x8xf32> -> vector<8x8xf32>
    %333 = arith.addf %332, %6 : vector<8x8xf32>
    %cst_101 = arith.constant dense<0xFF800000> : vector<8xf32>
    %334 = vector.multi_reduction <maximumf>, %333, %cst_101 [1] : vector<8x8xf32> to vector<8xf32>
    %335 = vector.shape_cast %334 : vector<8xf32> to vector<8x1xf32>
    %336 = vector.broadcast %335 : vector<8x1xf32> to vector<8x8xf32>
    %337 = arith.subf %333, %336 : vector<8x8xf32>
    %338 = math.exp %337 : vector<8x8xf32>
    %cst_102 = arith.constant dense<0.000000e+00> : vector<8xf32>
    %339 = vector.multi_reduction <add>, %338, %cst_102 [1] : vector<8x8xf32> to vector<8xf32>
    %340 = vector.shape_cast %339 : vector<8xf32> to vector<8x1xf32>
    %341 = tpu.reciprocal %340 {approx = true} : vector<8x1xf32> -> vector<8x1xf32>
    %342 = vector.broadcast %341 : vector<8x1xf32> to vector<8x8xf32>
    %343 = arith.mulf %338, %342 : vector<8x8xf32>
    %cst_103 = arith.constant dense<0.000000e+00> : vector<8x8xf32>
    %344 = tpu.matmul %343, %331, %cst_103 {dimension_numbers = #tpu.dot_dimension_numbers<[1], [0], [0], [1], [0, 0, 1, 1], [], []>} : vector<8x8xf32>, vector<8x8xf32>, vector<8x8xf32> -> vector<8x8xf32>
    %345 = vector.extract_strided_slice %310 {offsets = [0, 16], sizes = [8, 8], strides = [1, 1]} : vector<8x32xf32> to vector<8x8xf32>
    %346 = vector.extract_strided_slice %311 {offsets = [0, 16], sizes = [8, 8], strides = [1, 1]} : vector<8x32xf32> to vector<8x8xf32>
    %347 = vector.extract_strided_slice %312 {offsets = [0, 16], sizes = [8, 8], strides = [1, 1]} : vector<8x32xf32> to vector<8x8xf32>
    %cst_104 = arith.constant dense<0.000000e+00> : vector<8x8xf32>
    %348 = tpu.matmul %345, %346, %cst_104 {dimension_numbers = #tpu.dot_dimension_numbers<[1], [1], [0], [0], [0, 0, 1, 0], [], []>} : vector<8x8xf32>, vector<8x8xf32>, vector<8x8xf32> -> vector<8x8xf32>
    %349 = arith.addf %348, %6 : vector<8x8xf32>
    %cst_105 = arith.constant dense<0xFF800000> : vector<8xf32>
    %350 = vector.multi_reduction <maximumf>, %349, %cst_105 [1] : vector<8x8xf32> to vector<8xf32>
    %351 = vector.shape_cast %350 : vector<8xf32> to vector<8x1xf32>
    %352 = vector.broadcast %351 : vector<8x1xf32> to vector<8x8xf32>
    %353 = arith.subf %349, %352 : vector<8x8xf32>
    %354 = math.exp %353 : vector<8x8xf32>
    %cst_106 = arith.constant dense<0.000000e+00> : vector<8xf32>
    %355 = vector.multi_reduction <add>, %354, %cst_106 [1] : vector<8x8xf32> to vector<8xf32>
    %356 = vector.shape_cast %355 : vector<8xf32> to vector<8x1xf32>
    %357 = tpu.reciprocal %356 {approx = true} : vector<8x1xf32> -> vector<8x1xf32>
    %358 = vector.broadcast %357 : vector<8x1xf32> to vector<8x8xf32>
    %359 = arith.mulf %354, %358 : vector<8x8xf32>
    %cst_107 = arith.constant dense<0.000000e+00> : vector<8x8xf32>
    %360 = tpu.matmul %359, %347, %cst_107 {dimension_numbers = #tpu.dot_dimension_numbers<[1], [0], [0], [1], [0, 0, 1, 1], [], []>} : vector<8x8xf32>, vector<8x8xf32>, vector<8x8xf32> -> vector<8x8xf32>
    %361 = vector.extract_strided_slice %310 {offsets = [0, 24], sizes = [8, 8], strides = [1, 1]} : vector<8x32xf32> to vector<8x8xf32>
    %362 = vector.extract_strided_slice %311 {offsets = [0, 24], sizes = [8, 8], strides = [1, 1]} : vector<8x32xf32> to vector<8x8xf32>
    %363 = vector.extract_strided_slice %312 {offsets = [0, 24], sizes = [8, 8], strides = [1, 1]} : vector<8x32xf32> to vector<8x8xf32>
    %cst_108 = arith.constant dense<0.000000e+00> : vector<8x8xf32>
    %364 = tpu.matmul %361, %362, %cst_108 {dimension_numbers = #tpu.dot_dimension_numbers<[1], [1], [0], [0], [0, 0, 1, 0], [], []>} : vector<8x8xf32>, vector<8x8xf32>, vector<8x8xf32> -> vector<8x8xf32>
    %365 = arith.addf %364, %6 : vector<8x8xf32>
    %cst_109 = arith.constant dense<0xFF800000> : vector<8xf32>
    %366 = vector.multi_reduction <maximumf>, %365, %cst_109 [1] : vector<8x8xf32> to vector<8xf32>
    %367 = vector.shape_cast %366 : vector<8xf32> to vector<8x1xf32>
    %368 = vector.broadcast %367 : vector<8x1xf32> to vector<8x8xf32>
    %369 = arith.subf %365, %368 : vector<8x8xf32>
    %370 = math.exp %369 : vector<8x8xf32>
    %cst_110 = arith.constant dense<0.000000e+00> : vector<8xf32>
    %371 = vector.multi_reduction <add>, %370, %cst_110 [1] : vector<8x8xf32> to vector<8xf32>
    %372 = vector.shape_cast %371 : vector<8xf32> to vector<8x1xf32>
    %373 = tpu.reciprocal %372 {approx = true} : vector<8x1xf32> -> vector<8x1xf32>
    %374 = vector.broadcast %373 : vector<8x1xf32> to vector<8x8xf32>
    %375 = arith.mulf %370, %374 : vector<8x8xf32>
    %cst_111 = arith.constant dense<0.000000e+00> : vector<8x8xf32>
    %376 = tpu.matmul %375, %363, %cst_111 {dimension_numbers = #tpu.dot_dimension_numbers<[1], [0], [0], [1], [0, 0, 1, 1], [], []>} : vector<8x8xf32>, vector<8x8xf32>, vector<8x8xf32> -> vector<8x8xf32>
    %377 = tpu.concatenate %328, %344, %360, %376 in 1 : vector<8x8xf32>, vector<8x8xf32>, vector<8x8xf32>, vector<8x8xf32> -> vector<8x32xf32>
    %378 = tpu.concatenate %309, %377 in 0 : vector<8x32xf32>, vector<8x32xf32> -> vector<16x32xf32>
    %cst_112 = arith.constant dense<0.000000e+00> : vector<16x32xf32>
    %379 = tpu.matmul %378, %223, %cst_112 {dimension_numbers = #tpu.dot_dimension_numbers<[1], [0], [0], [1], [0, 0, 1, 1], [], []>} : vector<16x32xf32>, vector<32x32xf32>, vector<16x32xf32> -> vector<16x32xf32>
    %380 = vector.broadcast %227 : vector<1x32xf32> to vector<16x32xf32>
    %381 = arith.addf %379, %380 : vector<16x32xf32>
    %382 = arith.addf %221, %381 : vector<16x32xf32>
    %cst_113 = arith.constant dense<0.000000e+00> : vector<16xf32>
    %383 = vector.multi_reduction <add>, %382, %cst_113 [1] : vector<16x32xf32> to vector<16xf32>
    %384 = vector.shape_cast %383 : vector<16xf32> to vector<16x1xf32>
    %cst_114 = arith.constant 3.200000e+01 : f32
    %385 = vector.broadcast %cst_114 : f32 to vector<16x1xf32>
    %386 = arith.divf %384, %385 : vector<16x1xf32>
    %387 = vector.broadcast %386 : vector<16x1xf32> to vector<16x32xf32>
    %388 = arith.subf %382, %387 : vector<16x32xf32>
    %389 = arith.mulf %388, %388 : vector<16x32xf32>
    %cst_115 = arith.constant dense<0.000000e+00> : vector<16xf32>
    %390 = vector.multi_reduction <add>, %389, %cst_115 [1] : vector<16x32xf32> to vector<16xf32>
    %391 = vector.shape_cast %390 : vector<16xf32> to vector<16x1xf32>
    %cst_116 = arith.constant 3.200000e+01 : f32
    %392 = vector.broadcast %cst_116 : f32 to vector<16x1xf32>
    %393 = arith.divf %391, %392 : vector<16x1xf32>
    %394 = vector.broadcast %386 : vector<16x1xf32> to vector<16x32xf32>
    %395 = arith.subf %382, %394 : vector<16x32xf32>
    %cst_117 = arith.constant 9.99999974E-6 : f32
    %396 = vector.broadcast %cst_117 : f32 to vector<16x1xf32>
    %397 = arith.addf %393, %396 : vector<16x1xf32>
    %398 = math.rsqrt %397 : vector<16x1xf32>
    %399 = vector.broadcast %398 : vector<16x1xf32> to vector<16x32xf32>
    %400 = arith.mulf %395, %399 : vector<16x32xf32>
    %401 = vector.broadcast %228 : vector<1x32xf32> to vector<16x32xf32>
    %402 = arith.mulf %400, %401 : vector<16x32xf32>
    %403 = vector.broadcast %229 : vector<1x32xf32> to vector<16x32xf32>
    %404 = arith.addf %402, %403 : vector<16x32xf32>
    %cst_118 = arith.constant dense<0.000000e+00> : vector<16x64xf32>
    %405 = tpu.matmul %404, %224, %cst_118 {dimension_numbers = #tpu.dot_dimension_numbers<[1], [0], [0], [1], [0, 0, 1, 1], [], []>} : vector<16x32xf32>, vector<32x64xf32>, vector<16x64xf32> -> vector<16x64xf32>
    %406 = vector.broadcast %230 : vector<1x64xf32> to vector<16x64xf32>
    %407 = arith.addf %405, %406 : vector<16x64xf32>
    %cst_119 = arith.constant 0.000000e+00 : f32
    %408 = vector.broadcast %cst_119 : f32 to vector<16x64xf32>
    %409 = arith.maximumf %407, %408 : vector<16x64xf32>
    %cst_120 = arith.constant dense<0.000000e+00> : vector<16x32xf32>
    %410 = tpu.matmul %409, %225, %cst_120 {dimension_numbers = #tpu.dot_dimension_numbers<[1], [0], [0], [1], [0, 0, 1, 1], [], []>} : vector<16x64xf32>, vector<64x32xf32>, vector<16x32xf32> -> vector<16x32xf32>
    %411 = vector.broadcast %231 : vector<1x32xf32> to vector<16x32xf32>
    %412 = arith.addf %410, %411 : vector<16x32xf32>
    %413 = arith.addf %404, %412 : vector<16x32xf32>
    %cst_121 = arith.constant dense<0.000000e+00> : vector<16xf32>
    %414 = vector.multi_reduction <add>, %413, %cst_121 [1] : vector<16x32xf32> to vector<16xf32>
    %415 = vector.shape_cast %414 : vector<16xf32> to vector<16x1xf32>
    %cst_122 = arith.constant 3.200000e+01 : f32
    %416 = vector.broadcast %cst_122 : f32 to vector<16x1xf32>
    %417 = arith.divf %415, %416 : vector<16x1xf32>
    %418 = vector.broadcast %417 : vector<16x1xf32> to vector<16x32xf32>
    %419 = arith.subf %413, %418 : vector<16x32xf32>
    %420 = arith.mulf %419, %419 : vector<16x32xf32>
    %cst_123 = arith.constant dense<0.000000e+00> : vector<16xf32>
    %421 = vector.multi_reduction <add>, %420, %cst_123 [1] : vector<16x32xf32> to vector<16xf32>
    %422 = vector.shape_cast %421 : vector<16xf32> to vector<16x1xf32>
    %cst_124 = arith.constant 3.200000e+01 : f32
    %423 = vector.broadcast %cst_124 : f32 to vector<16x1xf32>
    %424 = arith.divf %422, %423 : vector<16x1xf32>
    %425 = vector.broadcast %417 : vector<16x1xf32> to vector<16x32xf32>
    %426 = arith.subf %413, %425 : vector<16x32xf32>
    %cst_125 = arith.constant 9.99999974E-6 : f32
    %427 = vector.broadcast %cst_125 : f32 to vector<16x1xf32>
    %428 = arith.addf %424, %427 : vector<16x1xf32>
    %429 = math.rsqrt %428 : vector<16x1xf32>
    %430 = vector.broadcast %429 : vector<16x1xf32> to vector<16x32xf32>
    %431 = arith.mulf %426, %430 : vector<16x32xf32>
    %432 = vector.broadcast %232 : vector<1x32xf32> to vector<16x32xf32>
    %433 = arith.mulf %431, %432 : vector<16x32xf32>
    %434 = vector.broadcast %233 : vector<1x32xf32> to vector<16x32xf32>
    %435 = arith.addf %433, %434 : vector<16x32xf32>
    %436 = vector.extract_strided_slice %435 {offsets = [0, 0], sizes = [7, 32], strides = [1, 1]} : vector<16x32xf32> to vector<7x32xf32>
    %437 = vector.extract_strided_slice %435 {offsets = [1, 0], sizes = [7, 32], strides = [1, 1]} : vector<16x32xf32> to vector<7x32xf32>
    %c16_i32 = arith.constant 16 : i32
    %438 = vector.broadcast %c16_i32 : i32 to vector<7x32xi32>
    %439 = arith.cmpi slt, %7, %438 : vector<7x32xi32>
    %440 = arith.select %439, %436, %437 : vector<7x32xi1>, vector<7x32xf32>
    %c0_126 = arith.constant 0 : index
    %c0_127 = arith.constant 0 : index
    %c0_128 = arith.constant 0 : index
    %441 = vector.load %arg5[%c0_126, %c0_127, %c0_128] : memref<2x7x32xf32, #tpu.memory_space<vmem>>, vector<1x7x32xf32>
    %442 = vector.shape_cast %441 : vector<1x7x32xf32> to vector<7x32xf32>
    %443 = vector.shape_cast %440 : vector<7x32xf32> to vector<1x7x32xf32>
    tpu.vector_store %arg5[%c0_126, %c0_127, %c0_128], %443 {strides = array<i32>} : memref<2x7x32xf32, #tpu.memory_space<vmem>>, vector<1x7x32xf32>,
    %444 = vector.extract_strided_slice %435 {offsets = [8, 0], sizes = [7, 32], strides = [1, 1]} : vector<16x32xf32> to vector<7x32xf32>
    %445 = vector.extract_strided_slice %435 {offsets = [9, 0], sizes = [7, 32], strides = [1, 1]} : vector<16x32xf32> to vector<7x32xf32>
    %c16_i32_129 = arith.constant 16 : i32
    %446 = vector.broadcast %c16_i32_129 : i32 to vector<7x32xi32>
    %447 = arith.cmpi slt, %7, %446 : vector<7x32xi32>
    %448 = arith.select %447, %444, %445 : vector<7x32xi1>, vector<7x32xf32>
    %c1_130 = arith.constant 1 : index
    %c0_131 = arith.constant 0 : index
    %c0_132 = arith.constant 0 : index
    %449 = vector.load %arg5[%c1_130, %c0_131, %c0_132] : memref<2x7x32xf32, #tpu.memory_space<vmem>>, vector<1x7x32xf32>
    %450 = vector.shape_cast %449 : vector<1x7x32xf32> to vector<7x32xf32>
    %451 = vector.shape_cast %448 : vector<7x32xf32> to vector<1x7x32xf32>
    tpu.vector_store %arg5[%c1_130, %c0_131, %c0_132], %451 {strides = array<i32>} : memref<2x7x32xf32, #tpu.memory_space<vmem>>, vector<1x7x32xf32>,
    return
  }
  func.func @transform_0(%arg0: i32) -> (i32, i32) {
    %c0_i32 = arith.constant 0 : i32
    %c0_i32_0 = arith.constant 0 : i32
    %c0_i32_1 = arith.constant 0 : i32
    return %c0_i32, %c0_i32_0 : i32, i32
  }
  func.func @transform_1(%arg0: i32) -> (i32, i32) {
    %c0_i32 = arith.constant 0 : i32
    %c0_i32_0 = arith.constant 0 : i32
    %c0_i32_1 = arith.constant 0 : i32
    return %c0_i32, %c0_i32_0 : i32, i32
  }
  func.func @transform_2(%arg0: i32) -> (i32, i32) {
    %c0_i32 = arith.constant 0 : i32
    %c0_i32_0 = arith.constant 0 : i32
    %c0_i32_1 = arith.constant 0 : i32
    return %c0_i32, %c0_i32_0 : i32, i32
  }
  func.func @transform_3(%arg0: i32) -> (i32, i32) {
    %c0_i32 = arith.constant 0 : i32
    %c0_i32_0 = arith.constant 0 : i32
    %c0_i32_1 = arith.constant 0 : i32
    return %c0_i32, %c0_i32_0 : i32, i32
  }
  func.func @transform_4(%arg0: i32) -> (i32, i32, i32) {
    %c0_i32 = arith.constant 0 : i32
    %c0_i32_0 = arith.constant 0 : i32
    %c0_i32_1 = arith.constant 0 : i32
    %c0_i32_2 = arith.constant 0 : i32
    return %c0_i32, %c0_i32_0, %c0_i32_1 : i32, i32, i32
  }
}

</mosaic_0001>

<llo_original>
// kernel: tpu_custom_call.1
$region0: #{tpu_custom_call.1}
  #allocation0 [shape = 'u32[]', space=smem, size = 0x4, offset = 0x4, fixed_abs, tag = 'smem constant byte address 0x4 - core index']
  #allocation1 [shape = 'u32[144,128]{1,0:T(1,128)}', space=vmem, size = 0x12000, scoped, tag = 'internal scratch']
  %s0 = inlined_call_operand.hbm [shape: f32[16,32], index: 0, kind: input, shape index: {}]
  %s1 = inlined_call_operand.vmem [shape: f32[2,8], index: 1, kind: input, shape index: {}]
  %s2 = inlined_call_operand.hbm [shape: f32[320,128], index: 2, kind: input, shape index: {}]
  %s3 = inlined_call_operand.hbm [shape: f32[16,128], index: 3, kind: input, shape index: {}]
  %s4 = inlined_call_operand.vmem [shape: f32[2,7,32], index: 4, kind: output, shape index: {}]
  %s5 = sld [smem:[#allocation0]]
  $region38: #{tpu_custom_call.1} parent=0
    _
  %s7 = ssub.s32 1, %s5
  %s8 = scalar_select 0, %s7, %s5
  $region1: #{tpu_custom_call.1} parent=0
    #allocation2 [shape = 'u8[8192]{0}', space=vmem, size = 0x2000, scoped, tag = 'input window, operand 0, single buffered']
    #allocation3 [shape = 's32[1]{0}', space=sflag, size = 0x4, scoped, tag = 'scoped memory for tpu_custom_call.1']
    #allocation4 [shape = 'u8[163840]{0}', space=vmem, size = 0x28000, scoped, tag = 'input window, operand 2, single buffered']
    #allocation5 [shape = 's32[1]{0}', space=sflag, size = 0x4, scoped, tag = 'scoped memory for tpu_custom_call.1']
    #allocation6 [shape = 'u8[8192]{0}', space=vmem, size = 0x2000, scoped, tag = 'input window, operand 3, single buffered']
    %9 = vsyncpa [#allocation3], 0
    %10 = vsyncpa [#allocation5], 0
    // Predicated region
    $region2: #{tpu_custom_call.1} parent=1 // pred_check
      _
    $region3: #{tpu_custom_call.1} parent=1 // pred_check_branch
      %12 = sbr.rel (0) target = $region5
    $region4: #{tpu_custom_call.1} parent=1 // pred_region
      %s14 = ssub.s32 256, 256
      %15 = vsyncadd [#allocation3], %s14
      %s16 = sshll.u32 [#allocation2], 4
      %s17 = int_to_ptr.vmem [resolvable:$true] %s16
      %22 = dma.hbm_to_vmem [thread:$0]  %s0, 256, %s17, [#allocation3], 128, 128, 8
    $region5: #{tpu_custom_call.1} parent=1 // pred_fallthru
      _
    // Predicated region
    $region6: #{tpu_custom_call.1} parent=1 // pred_check
      _
    $region7: #{tpu_custom_call.1} parent=1 // pred_check_branch
      %24 = sbr.rel (0) target = $region9
    $region8: #{tpu_custom_call.1} parent=1 // pred_region
      _
    $region9: #{tpu_custom_call.1} parent=1 // pred_fallthru
      _
    // Predicated region
    $region10: #{tpu_custom_call.1} parent=1 // pred_check
      _
    $region11: #{tpu_custom_call.1} parent=1 // pred_check_branch
      %26 = sbr.rel (0) target = $region13
    $region12: #{tpu_custom_call.1} parent=1 // pred_region
      %s28 = ssub.s32 5120, 5120
      %29 = vsyncadd [#allocation5], %s28
      %s30 = sshll.u32 [#allocation4], 4
      %s31 = int_to_ptr.vmem [resolvable:$true] %s30
      %36 = dma.hbm_to_vmem [thread:$0]  %s2, 5120, %s31, [#allocation5], 128, 128, 8
    $region13: #{tpu_custom_call.1} parent=1 // pred_fallthru
      _
    // Predicated region
    $region14: #{tpu_custom_call.1} parent=1 // pred_check
      _
    $region15: #{tpu_custom_call.1} parent=1 // pred_check_branch
      %38 = sbr.rel (0) target = $region17
    $region16: #{tpu_custom_call.1} parent=1 // pred_region
      %s40 = ssub.s32 256, 256
      %41 = vsyncadd [#allocation5], %s40
      %s42 = sshll.u32 [#allocation6], 4
      %s43 = int_to_ptr.vmem [resolvable:$true] %s42
      %48 = dma.hbm_to_vmem [thread:$0]  %s3, 256, %s43, [#allocation5], 128, 128, 8
    $region17: #{tpu_custom_call.1} parent=1 // pred_fallthru
      _
    // Predicated region
    $region18: #{tpu_custom_call.1} parent=1 // pred_check
      _
    $region19: #{tpu_custom_call.1} parent=1 // pred_check_branch
      %50 = sbr.rel (0) target = $region21
    $region20: #{tpu_custom_call.1} parent=1 // pred_region
      %51 = dma.done [#allocation3], 256
    $region21: #{tpu_custom_call.1} parent=1 // pred_fallthru
      _
    // Predicated region
    $region22: #{tpu_custom_call.1} parent=1 // pred_check
      _
    $region23: #{tpu_custom_call.1} parent=1 // pred_check_branch
      %53 = sbr.rel (0) target = $region25
    $region24: #{tpu_custom_call.1} parent=1 // pred_region
      %54 = dma.done [#allocation5], 5120
    $region25: #{tpu_custom_call.1} parent=1 // pred_fallthru
      _
    // Predicated region
    $region26: #{tpu_custom_call.1} parent=1 // pred_check
      _
    $region27: #{tpu_custom_call.1} parent=1 // pred_check_branch
      %56 = sbr.rel (0) target = $region29
    $region28: #{tpu_custom_call.1} parent=1 // pred_region
      %57 = dma.done [#allocation5], 256
    $region29: #{tpu_custom_call.1} parent=1 // pred_fallthru
      _
    %v58 = vld [vmem:[#allocation2] sm:$0xff]
    %v59 = vld [vmem:[#allocation2 + $0x8] sm:$0xff]
    %v60 = vld [vmem:[%s1] sm:$0x1]
    %v61 = vlaneseq
    %v62 = vshrl.u32 %v61, 7
    %v63 = vsub.s32 0, %v62
    %v64 = vrot.slane %v60, %v63
    %v65 = vld [vmem:[%s1 + $0x1] sm:$0x1]
    %v66 = vlaneseq
    %v67 = vshrl.u32 %v66, 7
    %v68 = vsub.s32 0, %v67
    %v69 = vrot.slane %v65, %v68
    %v70 = vlaneseq
    %v71 = vand.u32 %v70, 127
    %v72 = vld [vmem:[#allocation4] sm:$0xff]
    %v73 = vld [vmem:[#allocation4 + $0x8] sm:$0xff]
    %v74 = vld [vmem:[#allocation4 + $0x10] sm:$0xff]
    %v75 = vld [vmem:[#allocation4 + $0x18] sm:$0xff]
    %v76 = vld [vmem:[#allocation4 + $0x20] sm:$0xff]
    %v77 = vld [vmem:[#allocation4 + $0x28] sm:$0xff]
    %v78 = vld [vmem:[#allocation4 + $0x30] sm:$0xff]
    %v79 = vld [vmem:[#allocation4 + $0x38] sm:$0xff]
    %v80 = vld [vmem:[#allocation4 + $0x40] sm:$0xff]
    %v81 = vld [vmem:[#allocation4 + $0x48] sm:$0xff]
    %v82 = vld [vmem:[#allocation4 + $0x50] sm:$0xff]
    %v83 = vld [vmem:[#allocation4 + $0x58] sm:$0xff]
    %v84 = vld [vmem:[#allocation4 + $0x60] sm:$0xff]
    %v85 = vld [vmem:[#allocation4 + $0x68] sm:$0xff]
    %v86 = vld [vmem:[#allocation4 + $0x70] sm:$0xff]
    %v87 = vld [vmem:[#allocation4 + $0x78] sm:$0xff]
    %v88 = vld [vmem:[#allocation4 + $0x80] sm:$0xff]
    %v89 = vld [vmem:[#allocation4 + $0x88] sm:$0xff]
    %v90 = vld [vmem:[#allocation4 + $0x90] sm:$0xff]
    %v91 = vld [vmem:[#allocation4 + $0x98] sm:$0xff]
    %v92 = vld [vmem:[#allocation6] sm:$0x1]
    %v93 = vld [vmem:[#allocation6 + $0x1] sm:$0x1]
    %v94 = vld [vmem:[#allocation6 + $0x2] sm:$0x1]
    %v95 = vld [vmem:[#allocation6 + $0x3] sm:$0x1]
    %v96 = vld [vmem:[#allocation6 + $0x4] sm:$0x1]
    %v97 = vld [vmem:[#allocation6 + $0x5] sm:$0x1]
    %v98 = vld [vmem:[#allocation6 + $0x6] sm:$0x1]
    %v99 = vld [vmem:[#allocation6 + $0x7] sm:$0x1]
    %v100 = vlaneseq
    %v101 = vshrl.u32 %v100, 7
    %v102 = vsub.s32 0, %v101
    %v103 = vrot.slane %v92, %v102
    %vm104 = vcmask 261120
    %v106 = vsel %vm104, %v58, 0
    %v109 = vsel %vm104, %v59, 0
    %111 = vmatprep.subr.mxu0 0.0
    %112 = vmatpush1.msra.mxu0 %v72
    %113 = vmatprep.subr.mxu0 0.0
    %114 = vmatpush1.msra.mxu0 %v73
    %115 = vmatprep.subr.mxu0 0.0
    %116 = vmatpush1.msra.mxu0 %v74
    %117 = vmatprep.subr.mxu0 0.0
    %118 = vmatpush1.msra.mxu0 %v75
    %119 = vmatprep.subr.mxu0 0.0
    %120 = vmatpush1.msra.mxu0 0.0
    %121 = vmatprep.subr.mxu0 0.0
    %122 = vmatpush1.msra.mxu0 0.0
    %123 = vmatprep.subr.mxu0 0.0
    %124 = vmatpush1.msra.mxu0 0.0
    %125 = vmatprep.subr.mxu0 0.0
    %126 = vmatpush1.msra.mxu0 0.0
    %127 = vmatprep.subr.mxu0 0.0
    %128 = vmatpush1.msra.mxu0 0.0
    %129 = vmatprep.subr.mxu0 0.0
    %130 = vmatpush1.msra.mxu0 0.0
    %131 = vmatprep.subr.mxu0 0.0
    %132 = vmatpush1.msra.mxu0 0.0
    %133 = vmatprep.subr.mxu0 0.0
    %134 = vmatpush1.msra.mxu0 0.0
    %135 = vmatprep.subr.mxu0 0.0
    %136 = vmatpush1.msra.mxu0 0.0
    %137 = vmatprep.subr.mxu0 0.0
    %138 = vmatpush1.msra.mxu0 0.0
    %139 = vmatprep.subr.mxu0 0.0
    %140 = vmatpush1.msra.mxu0 0.0
    %141 = vmatprep.subr.mxu0 0.0
    %142 = vmatpush1.msra.mxu0 0.0
    %143 = vmatprep.subr.mxu0 0.0
    %144 = vmatpush1.msra.mxu0 0.0
    %145 = vmatprep.subr.mxu0 0.0
    %146 = vmatpush1.msra.mxu0 0.0
    %147 = vmatprep.subr.mxu0 0.0
    %148 = vmatpush1.msra.mxu0 0.0
    %149 = vmatprep.subr.mxu0 0.0
    %150 = vmatpush1.msra.mxu0 0.0
    %151 = vmatprep.subr.mxu0 0.0
    %152 = vmatpush1.msra.mxu0 0.0
    %153 = vmatprep.subr.mxu0 0.0
    %154 = vmatpush1.msra.mxu0 0.0
    %155 = vmatprep.subr.mxu0 0.0
    %156 = vmatpush1.msra.mxu0 0.0
    %157 = vmatprep.subr.mxu0 0.0
    %158 = vmatpush1.msra.mxu0 0.0
    %159 = vmatprep.subr.mxu0 0.0
    %160 = vmatpush1.msra.mxu0 0.0
    %161 = vmatprep.subr.mxu0 0.0
    %162 = vmatpush1.msra.mxu0 0.0
    %163 = vmatprep.subr.mxu0 0.0
    %164 = vmatpush1.msra.mxu0 0.0
    %165 = vmatprep.subr.mxu0 0.0
    %166 = vmatpush1.msra.mxu0 0.0
    %167 = vmatprep.subr.mxu0 0.0
    %168 = vmatpush1.msra.mxu0 0.0
    %169 = vmatprep.subr.mxu0 0.0
    %170 = vmatpush1.msra.mxu0 0.0
    %171 = vmatprep.subr.mxu0 0.0
    %172 = vmatpush1.msra.mxu0 0.0
    %173 = vmatprep.subr.mxu0 0.0
    %174 = vmatpush1.msra.mxu0 0.0
    %175 = vmatprep.mubr.f32.mxu0 0.0
    %176 = vmatmul.mubr.f32.gmra.mrb[0].mxu0 %v106
    %v177 = vpop.f32.mrb[0].mxu0
    %v178 = vadd.f32 %v103, %v177
    %v179 = vpop.f32.mrb[0].mxu0
    %180 = vmatprep.mubr.f32.mxu0 0.0
    %181 = vmatmul.mubr.f32.gmra.mrb[0].mxu0 %v109
    %v182 = vpop.f32.mrb[0].mxu0
    %v183 = vadd.f32 %v103, %v182
    %v184 = vpop.f32.mrb[0].mxu0
    %185 = vdwg.mxu0
    %v186 = vmul.f32 %v178, 0.35355338
    %v187 = vmul.f32 %v183, 0.35355338
    %189 = vrot.lane.b32.xlu0 %v178, 96
    %v190 = vpop.permute.xlu0 %189
    %vm191 = vcmask 64512
    %v193 = vsel %vm191, %v186, 0
    %v195 = vsel %vm191, %v190, 0
    %197 = vmatprep.subr.mxu0 0.0
    %198 = vmatpush1.xpose.msra.mxu0 %v195
    %199 = vmatprep.subr.mxu0 0.0
    %200 = vmatpush1.xpose.msra.mxu0 0.0
    %201 = vmatprep.subr.mxu0 0.0
    %202 = vmatpush1.xpose.msra.mxu0 0.0
    %203 = vmatprep.subr.mxu0 0.0
    %204 = vmatpush1.xpose.msra.mxu0 0.0
    %205 = vmatprep.subr.mxu0 0.0
    %206 = vmatpush1.xpose.msra.mxu0 0.0
    %207 = vmatprep.subr.mxu0 0.0
    %208 = vmatpush1.xpose.msra.mxu0 0.0
    %209 = vmatprep.subr.mxu0 0.0
    %210 = vmatpush1.xpose.msra.mxu0 0.0
    %211 = vmatprep.subr.mxu0 0.0
    %212 = vmatpush1.xpose.msra.mxu0 0.0
    %213 = vmatprep.subr.mxu0 0.0
    %214 = vmatpush1.xpose.msra.mxu0 0.0
    %215 = vmatprep.subr.mxu0 0.0
    %216 = vmatpush1.xpose.msra.mxu0 0.0
    %217 = vmatprep.subr.mxu0 0.0
    %218 = vmatpush1.xpose.msra.mxu0 0.0
    %219 = vmatprep.subr.mxu0 0.0
    %220 = vmatpush1.xpose.msra.mxu0 0.0
    %221 = vmatprep.subr.mxu0 0.0
    %222 = vmatpush1.xpose.msra.mxu0 0.0
    %223 = vmatprep.subr.mxu0 0.0
    %224 = vmatpush1.xpose.msra.mxu0 0.0
    %225 = vmatprep.subr.mxu0 0.0
    %226 = vmatpush1.xpose.msra.mxu0 0.0
    %227 = vmatprep.subr.mxu0 0.0
    %228 = vmatpush1.xpose.msra.mxu0 0.0
    %229 = vmatprep.subr.mxu0 0.0
    %230 = vmatpush1.xpose.msra.mxu0 0.0
    %231 = vmatprep.subr.mxu0 0.0
    %232 = vmatpush1.xpose.msra.mxu0 0.0
    %233 = vmatprep.subr.mxu0 0.0
    %234 = vmatpush1.xpose.msra.mxu0 0.0
    %235 = vmatprep.subr.mxu0 0.0
    %236 = vmatpush1.xpose.msra.mxu0 0.0
    %237 = vmatprep.subr.mxu0 0.0
    %238 = vmatpush1.xpose.msra.mxu0 0.0
    %239 = vmatprep.subr.mxu0 0.0
    %240 = vmatpush1.xpose.msra.mxu0 0.0
    %241 = vmatprep.subr.mxu0 0.0
    %242 = vmatpush1.xpose.msra.mxu0 0.0
    %243 = vmatprep.subr.mxu0 0.0
    %244 = vmatpush1.xpose.msra.mxu0 0.0
    %245 = vmatprep.subr.mxu0 0.0
    %246 = vmatpush1.xpose.msra.mxu0 0.0
    %247 = vmatprep.subr.mxu0 0.0
    %248 = vmatpush1.xpose.msra.mxu0 0.0
    %249 = vmatprep.subr.mxu0 0.0
    %250 = vmatpush1.xpose.msra.mxu0 0.0
    %251 = vmatprep.subr.mxu0 0.0
    %252 = vmatpush1.xpose.msra.mxu0 0.0
    %253 = vmatprep.subr.mxu0 0.0
    %254 = vmatpush1.xpose.msra.mxu0 0.0
    %255 = vmatprep.subr.mxu0 0.0
    %256 = vmatpush1.xpose.msra.mxu0 0.0
    %257 = vmatprep.subr.mxu0 0.0
    %258 = vmatpush1.xpose.msra.mxu0 0.0
    %259 = vmatprep.subr.mxu0 0.0
    %260 = vmatpush1.xpose.msra.mxu0 0.0
    %261 = vmatprep.mubr.f32.mxu0 0.0
    %262 = vmatmul.mubr.f32.gmra.mrb[0].mxu0 %v193
    %v263 = vpop.f32.mrb[0].mxu0
    %v264 = vadd.f32 %v64, %v263
    %v265 = vpop.f32.mrb[0].mxu0
    %266 = vdwg.mxu0
    %v267 = vsel %vm191, %v264, -inf
    %268 = vmax.xlane.f32.xlu0 %v267
    %v269 = vpop.xlane.xlu0 %268
    %v270 = vsub.f32 %v264, %v269
    %v271 = vmul.f32 %v270, 1.442695
    %v272 = vpow.pop %v271
    %v273 = vsel %vm191, %v272, 0.0
    %274 = vadd.xlane.f32.xlu0 %v273
    %v275 = vpop.xlane.xlu0 %274
    %v276 = vrcp.pop %v275
    %v277 = vmul.f32 %v272, %v276
    %278 = vrot.lane.b32.xlu0 %v178, 64
    %v279 = vpop.permute.xlu0 %278
    %v282 = vsel %vm191, %v277, 0
    %284 = vmatprep.subr.mxu0 0.0
    %285 = vmatpush1.msra.mxu0 %v279
    %286 = vmatprep.subr.mxu0 0.0
    %287 = vmatpush1.msra.mxu0 0.0
    %288 = vmatprep.subr.mxu0 0.0
    %289 = vmatpush1.msra.mxu0 0.0
    %290 = vmatprep.subr.mxu0 0.0
    %291 = vmatpush1.msra.mxu0 0.0
    %292 = vmatprep.subr.mxu0 0.0
    %293 = vmatpush1.msra.mxu0 0.0
    %294 = vmatprep.subr.mxu0 0.0
    %295 = vmatpush1.msra.mxu0 0.0
    %296 = vmatprep.subr.mxu0 0.0
    %297 = vmatpush1.msra.mxu0 0.0
    %298 = vmatprep.subr.mxu0 0.0
    %299 = vmatpush1.msra.mxu0 0.0
    %300 = vmatprep.subr.mxu0 0.0
    %301 = vmatpush1.msra.mxu0 0.0
    %302 = vmatprep.subr.mxu0 0.0
    %303 = vmatpush1.msra.mxu0 0.0
    %304 = vmatprep.subr.mxu0 0.0
    %305 = vmatpush1.msra.mxu0 0.0
    %306 = vmatprep.subr.mxu0 0.0
    %307 = vmatpush1.msra.mxu0 0.0
    %308 = vmatprep.subr.mxu0 0.0
    %309 = vmatpush1.msra.mxu0 0.0
    %310 = vmatprep.subr.mxu0 0.0
    %311 = vmatpush1.msra.mxu0 0.0
    %312 = vmatprep.subr.mxu0 0.0
    %313 = vmatpush1.msra.mxu0 0.0
    %314 = vmatprep.subr.mxu0 0.0
    %315 = vmatpush1.msra.mxu0 0.0
    %316 = vmatprep.subr.mxu0 0.0
    %317 = vmatpush1.msra.mxu0 0.0
    %318 = vmatprep.subr.mxu0 0.0
    %319 = vmatpush1.msra.mxu0 0.0
    %320 = vmatprep.subr.mxu0 0.0
    %321 = vmatpush1.msra.mxu0 0.0
    %322 = vmatprep.subr.mxu0 0.0
    %323 = vmatpush1.msra.mxu0 0.0
    %324 = vmatprep.subr.mxu0 0.0
    %325 = vmatpush1.msra.mxu0 0.0
    %326 = vmatprep.subr.mxu0 0.0
    %327 = vmatpush1.msra.mxu0 0.0
    %328 = vmatprep.subr.mxu0 0.0
    %329 = vmatpush1.msra.mxu0 0.0
    %330 = vmatprep.subr.mxu0 0.0
    %331 = vmatpush1.msra.mxu0 0.0
    %332 = vmatprep.subr.mxu0 0.0
    %333 = vmatpush1.msra.mxu0 0.0
    %334 = vmatprep.subr.mxu0 0.0
    %335 = vmatpush1.msra.mxu0 0.0
    %336 = vmatprep.subr.mxu0 0.0
    %337 = vmatpush1.msra.mxu0 0.0
    %338 = vmatprep.subr.mxu0 0.0
    %339 = vmatpush1.msra.mxu0 0.0
    %340 = vmatprep.subr.mxu0 0.0
    %341 = vmatpush1.msra.mxu0 0.0
    %342 = vmatprep.subr.mxu0 0.0
    %343 = vmatpush1.msra.mxu0 0.0
    %344 = vmatprep.subr.mxu0 0.0
    %345 = vmatpush1.msra.mxu0 0.0
    %346 = vmatprep.subr.mxu0 0.0
    %347 = vmatpush1.msra.mxu0 0.0
    %348 = vmatprep.mubr.f32.mxu0 0.0
    %349 = vmatmul.mubr.f32.gmra.mrb[0].mxu0 %v282
    %v350 = vpop.f32.mrb[0].mxu0
    %v351 = vadd.f32 0.0, %v350
    %v352 = vpop.f32.mrb[0].mxu0
    %353 = vdwg.mxu0
    %354 = vrot.lane.b32.xlu0 %v186, 120
    %v355 = vpop.permute.xlu0 %354
    %356 = vrot.lane.b32.xlu0 %v178, 88
    %v357 = vpop.permute.xlu0 %356
    %v358 = vsel %vm191, %v355, 0
    %v360 = vsel %vm191, %v357, 0
    %362 = vmatprep.subr.mxu0 0.0
    %363 = vmatpush1.xpose.msra.mxu0 %v360
    %364 = vmatprep.subr.mxu0 0.0
    %365 = vmatpush1.xpose.msra.mxu0 0.0
    %366 = vmatprep.subr.mxu0 0.0
    %367 = vmatpush1.xpose.msra.mxu0 0.0
    %368 = vmatprep.subr.mxu0 0.0
    %369 = vmatpush1.xpose.msra.mxu0 0.0
    %370 = vmatprep.subr.mxu0 0.0
    %371 = vmatpush1.xpose.msra.mxu0 0.0
    %372 = vmatprep.subr.mxu0 0.0
    %373 = vmatpush1.xpose.msra.mxu0 0.0
    %374 = vmatprep.subr.mxu0 0.0
    %375 = vmatpush1.xpose.msra.mxu0 0.0
    %376 = vmatprep.subr.mxu0 0.0
    %377 = vmatpush1.xpose.msra.mxu0 0.0
    %378 = vmatprep.subr.mxu0 0.0
    %379 = vmatpush1.xpose.msra.mxu0 0.0
    %380 = vmatprep.subr.mxu0 0.0
    %381 = vmatpush1.xpose.msra.mxu0 0.0
    %382 = vmatprep.subr.mxu0 0.0
    %383 = vmatpush1.xpose.msra.mxu0 0.0
    %384 = vmatprep.subr.mxu0 0.0
    %385 = vmatpush1.xpose.msra.mxu0 0.0
    %386 = vmatprep.subr.mxu0 0.0
    %387 = vmatpush1.xpose.msra.mxu0 0.0
    %388 = vmatprep.subr.mxu0 0.0
    %389 = vmatpush1.xpose.msra.mxu0 0.0
    %390 = vmatprep.subr.mxu0 0.0
    %391 = vmatpush1.xpose.msra.mxu0 0.0
    %392 = vmatprep.subr.mxu0 0.0
    %393 = vmatpush1.xpose.msra.mxu0 0.0
    %394 = vmatprep.subr.mxu0 0.0
    %395 = vmatpush1.xpose.msra.mxu0 0.0
    %396 = vmatprep.subr.mxu0 0.0
    %397 = vmatpush1.xpose.msra.mxu0 0.0
    %398 = vmatprep.subr.mxu0 0.0
    %399 = vmatpush1.xpose.msra.mxu0 0.0
    %400 = vmatprep.subr.mxu0 0.0
    %401 = vmatpush1.xpose.msra.mxu0 0.0
    %402 = vmatprep.subr.mxu0 0.0
    %403 = vmatpush1.xpose.msra.mxu0 0.0
    %404 = vmatprep.subr.mxu0 0.0
    %405 = vmatpush1.xpose.msra.mxu0 0.0
    %406 = vmatprep.subr.mxu0 0.0
    %407 = vmatpush1.xpose.msra.mxu0 0.0
    %408 = vmatprep.subr.mxu0 0.0
    %409 = vmatpush1.xpose.msra.mxu0 0.0
    %410 = vmatprep.subr.mxu0 0.0
    %411 = vmatpush1.xpose.msra.mxu0 0.0
    %412 = vmatprep.subr.mxu0 0.0
    %413 = vmatpush1.xpose.msra.mxu0 0.0
    %414 = vmatprep.subr.mxu0 0.0
    %415 = vmatpush1.xpose.msra.mxu0 0.0
    %416 = vmatprep.subr.mxu0 0.0
    %417 = vmatpush1.xpose.msra.mxu0 0.0
    %418 = vmatprep.subr.mxu0 0.0
    %419 = vmatpush1.xpose.msra.mxu0 0.0
    %420 = vmatprep.subr.mxu0 0.0
    %421 = vmatpush1.xpose.msra.mxu0 0.0
    %422 = vmatprep.subr.mxu0 0.0
    %423 = vmatpush1.xpose.msra.mxu0 0.0
    %424 = vmatprep.subr.mxu0 0.0
    %425 = vmatpush1.xpose.msra.mxu0 0.0
    %426 = vmatprep.mubr.f32.mxu0 0.0
    %427 = vmatmul.mubr.f32.gmra.mrb[0].mxu0 %v358
    %v428 = vpop.f32.mrb[0].mxu0
    %v429 = vadd.f32 %v64, %v428
    %v430 = vpop.f32.mrb[0].mxu0
    %431 = vdwg.mxu0
    %v432 = vsel %vm191, %v429, -inf
    %433 = vmax.xlane.f32.xlu0 %v432
    %v434 = vpop.xlane.xlu0 %433
    %v435 = vsub.f32 %v429, %v434
    %v436 = vmul.f32 %v435, 1.442695
    %v437 = vpow.pop %v436
    %v438 = vsel %vm191, %v437, 0.0
    %439 = vadd.xlane.f32.xlu0 %v438
    %v440 = vpop.xlane.xlu0 %439
    %v441 = vrcp.pop %v440
    %v442 = vmul.f32 %v437, %v441
    %443 = vrot.lane.b32.xlu0 %v178, 56
    %v444 = vpop.permute.xlu0 %443
    %v447 = vsel %vm191, %v442, 0
    %449 = vmatprep.subr.mxu0 0.0
    %450 = vmatpush1.msra.mxu0 %v444
    %451 = vmatprep.subr.mxu0 0.0
    %452 = vmatpush1.msra.mxu0 0.0
    %453 = vmatprep.subr.mxu0 0.0
    %454 = vmatpush1.msra.mxu0 0.0
    %455 = vmatprep.subr.mxu0 0.0
    %456 = vmatpush1.msra.mxu0 0.0
    %457 = vmatprep.subr.mxu0 0.0
    %458 = vmatpush1.msra.mxu0 0.0
    %459 = vmatprep.subr.mxu0 0.0
    %460 = vmatpush1.msra.mxu0 0.0
    %461 = vmatprep.subr.mxu0 0.0
    %462 = vmatpush1.msra.mxu0 0.0
    %463 = vmatprep.subr.mxu0 0.0
    %464 = vmatpush1.msra.mxu0 0.0
    %465 = vmatprep.subr.mxu0 0.0
    %466 = vmatpush1.msra.mxu0 0.0
    %467 = vmatprep.subr.mxu0 0.0
    %468 = vmatpush1.msra.mxu0 0.0
    %469 = vmatprep.subr.mxu0 0.0
    %470 = vmatpush1.msra.mxu0 0.0
    %471 = vmatprep.subr.mxu0 0.0
    %472 = vmatpush1.msra.mxu0 0.0
    %473 = vmatprep.subr.mxu0 0.0
    %474 = vmatpush1.msra.mxu0 0.0
    %475 = vmatprep.subr.mxu0 0.0
    %476 = vmatpush1.msra.mxu0 0.0
    %477 = vmatprep.subr.mxu0 0.0
    %478 = vmatpush1.msra.mxu0 0.0
    %479 = vmatprep.subr.mxu0 0.0
    %480 = vmatpush1.msra.mxu0 0.0
    %481 = vmatprep.subr.mxu0 0.0
    %482 = vmatpush1.msra.mxu0 0.0
    %483 = vmatprep.subr.mxu0 0.0
    %484 = vmatpush1.msra.mxu0 0.0
    %485 = vmatprep.subr.mxu0 0.0
    %486 = vmatpush1.msra.mxu0 0.0
    %487 = vmatprep.subr.mxu0 0.0
    %488 = vmatpush1.msra.mxu0 0.0
    %489 = vmatprep.subr.mxu0 0.0
    %490 = vmatpush1.msra.mxu0 0.0
    %491 = vmatprep.subr.mxu0 0.0
    %492 = vmatpush1.msra.mxu0 0.0
    %493 = vmatprep.subr.mxu0 0.0
    %494 = vmatpush1.msra.mxu0 0.0
    %495 = vmatprep.subr.mxu0 0.0
    %496 = vmatpush1.msra.mxu0 0.0
    %497 = vmatprep.subr.mxu0 0.0
    %498 = vmatpush1.msra.mxu0 0.0
    %499 = vmatprep.subr.mxu0 0.0
    %500 = vmatpush1.msra.mxu0 0.0
    %501 = vmatprep.subr.mxu0 0.0
    %502 = vmatpush1.msra.mxu0 0.0
    %503 = vmatprep.subr.mxu0 0.0
    %504 = vmatpush1.msra.mxu0 0.0
    %505 = vmatprep.subr.mxu0 0.0
    %506 = vmatpush1.msra.mxu0 0.0
    %507 = vmatprep.subr.mxu0 0.0
    %508 = vmatpush1.msra.mxu0 0.0
    %509 = vmatprep.subr.mxu0 0.0
    %510 = vmatpush1.msra.mxu0 0.0
    %511 = vmatprep.subr.mxu0 0.0
    %512 = vmatpush1.msra.mxu0 0.0
    %513 = vmatprep.mubr.f32.mxu0 0.0
    %514 = vmatmul.mubr.f32.gmra.mrb[0].mxu0 %v447
    %v515 = vpop.f32.mrb[0].mxu0
    %v516 = vadd.f32 0.0, %v515
    %v517 = vpop.f32.mrb[0].mxu0
    %518 = vdwg.mxu0
    %519 = vrot.lane.b32.xlu0 %v186, 112
    %v520 = vpop.permute.xlu0 %519
    %521 = vrot.lane.b32.xlu0 %v178, 80
    %v522 = vpop.permute.xlu0 %521
    %v523 = vsel %vm191, %v520, 0
    %v525 = vsel %vm191, %v522, 0
    %527 = vmatprep.subr.mxu0 0.0
    %528 = vmatpush1.xpose.msra.mxu0 %v525
    %529 = vmatprep.subr.mxu0 0.0
    %530 = vmatpush1.xpose.msra.mxu0 0.0
    %531 = vmatprep.subr.mxu0 0.0
    %532 = vmatpush1.xpose.msra.mxu0 0.0
    %533 = vmatprep.subr.mxu0 0.0
    %534 = vmatpush1.xpose.msra.mxu0 0.0
    %535 = vmatprep.subr.mxu0 0.0
    %536 = vmatpush1.xpose.msra.mxu0 0.0
    %537 = vmatprep.subr.mxu0 0.0
    %538 = vmatpush1.xpose.msra.mxu0 0.0
    %539 = vmatprep.subr.mxu0 0.0
    %540 = vmatpush1.xpose.msra.mxu0 0.0
    %541 = vmatprep.subr.mxu0 0.0
    %542 = vmatpush1.xpose.msra.mxu0 0.0
    %543 = vmatprep.subr.mxu0 0.0
    %544 = vmatpush1.xpose.msra.mxu0 0.0
    %545 = vmatprep.subr.mxu0 0.0
    %546 = vmatpush1.xpose.msra.mxu0 0.0
    %547 = vmatprep.subr.mxu0 0.0
    %548 = vmatpush1.xpose.msra.mxu0 0.0
    %549 = vmatprep.subr.mxu0 0.0
    %550 = vmatpush1.xpose.msra.mxu0 0.0
    %551 = vmatprep.subr.mxu0 0.0
    %552 = vmatpush1.xpose.msra.mxu0 0.0
    %553 = vmatprep.subr.mxu0 0.0
    %554 = vmatpush1.xpose.msra.mxu0 0.0
    %555 = vmatprep.subr.mxu0 0.0
    %556 = vmatpush1.xpose.msra.mxu0 0.0
    %557 = vmatprep.subr.mxu0 0.0
    %558 = vmatpush1.xpose.msra.mxu0 0.0
    %559 = vmatprep.subr.mxu0 0.0
    %560 = vmatpush1.xpose.msra.mxu0 0.0
    %561 = vmatprep.subr.mxu0 0.0
    %562 = vmatpush1.xpose.msra.mxu0 0.0
    %563 = vmatprep.subr.mxu0 0.0
    %564 = vmatpush1.xpose.msra.mxu0 0.0
    %565 = vmatprep.subr.mxu0 0.0
    %566 = vmatpush1.xpose.msra.mxu0 0.0
    %567 = vmatprep.subr.mxu0 0.0
    %568 = vmatpush1.xpose.msra.mxu0 0.0
    %569 = vmatprep.subr.mxu0 0.0
    %570 = vmatpush1.xpose.msra.mxu0 0.0
    %571 = vmatprep.subr.mxu0 0.0
    %572 = vmatpush1.xpose.msra.mxu0 0.0
    %573 = vmatprep.subr.mxu0 0.0
    %574 = vmatpush1.xpose.msra.mxu0 0.0
    %575 = vmatprep.subr.mxu0 0.0
    %576 = vmatpush1.xpose.msra.mxu0 0.0
    %577 = vmatprep.subr.mxu0 0.0
    %578 = vmatpush1.xpose.msra.mxu0 0.0
    %579 = vmatprep.subr.mxu0 0.0
    %580 = vmatpush1.xpose.msra.mxu0 0.0
    %581 = vmatprep.subr.mxu0 0.0
    %582 = vmatpush1.xpose.msra.mxu0 0.0
    %583 = vmatprep.subr.mxu0 0.0
    %584 = vmatpush1.xpose.msra.mxu0 0.0
    %585 = vmatprep.subr.mxu0 0.0
    %586 = vmatpush1.xpose.msra.mxu0 0.0
    %587 = vmatprep.subr.mxu0 0.0
    %588 = vmatpush1.xpose.msra.mxu0 0.0
    %589 = vmatprep.subr.mxu0 0.0
    %590 = vmatpush1.xpose.msra.mxu0 0.0
    %591 = vmatprep.mubr.f32.mxu0 0.0
    %592 = vmatmul.mubr.f32.gmra.mrb[0].mxu0 %v523
    %v593 = vpop.f32.mrb[0].mxu0
    %v594 = vadd.f32 %v64, %v593
    %v595 = vpop.f32.mrb[0].mxu0
    %596 = vdwg.mxu0
    %v597 = vsel %vm191, %v594, -inf
    %598 = vmax.xlane.f32.xlu0 %v597
    %v599 = vpop.xlane.xlu0 %598
    %v600 = vsub.f32 %v594, %v599
    %v601 = vmul.f32 %v600, 1.442695
    %v602 = vpow.pop %v601
    %v603 = vsel %vm191, %v602, 0.0
    %604 = vadd.xlane.f32.xlu0 %v603
    %v605 = vpop.xlane.xlu0 %604
    %v606 = vrcp.pop %v605
    %v607 = vmul.f32 %v602, %v606
    %608 = vrot.lane.b32.xlu0 %v178, 48
    %v609 = vpop.permute.xlu0 %608
    %v612 = vsel %vm191, %v607, 0
    %614 = vmatprep.subr.mxu0 0.0
    %615 = vmatpush1.msra.mxu0 %v609
    %616 = vmatprep.subr.mxu0 0.0
    %617 = vmatpush1.msra.mxu0 0.0
    %618 = vmatprep.subr.mxu0 0.0
    %619 = vmatpush1.msra.mxu0 0.0
    %620 = vmatprep.subr.mxu0 0.0
    %621 = vmatpush1.msra.mxu0 0.0
    %622 = vmatprep.subr.mxu0 0.0
    %623 = vmatpush1.msra.mxu0 0.0
    %624 = vmatprep.subr.mxu0 0.0
    %625 = vmatpush1.msra.mxu0 0.0
    %626 = vmatprep.subr.mxu0 0.0
    %627 = vmatpush1.msra.mxu0 0.0
    %628 = vmatprep.subr.mxu0 0.0
    %629 = vmatpush1.msra.mxu0 0.0
    %630 = vmatprep.subr.mxu0 0.0
    %631 = vmatpush1.msra.mxu0 0.0
    %632 = vmatprep.subr.mxu0 0.0
    %633 = vmatpush1.msra.mxu0 0.0
    %634 = vmatprep.subr.mxu0 0.0
    %635 = vmatpush1.msra.mxu0 0.0
    %636 = vmatprep.subr.mxu0 0.0
    %637 = vmatpush1.msra.mxu0 0.0
    %638 = vmatprep.subr.mxu0 0.0
    %639 = vmatpush1.msra.mxu0 0.0
    %640 = vmatprep.subr.mxu0 0.0
    %641 = vmatpush1.msra.mxu0 0.0
    %642 = vmatprep.subr.mxu0 0.0
    %643 = vmatpush1.msra.mxu0 0.0
    %644 = vmatprep.subr.mxu0 0.0
    %645 = vmatpush1.msra.mxu0 0.0
    %646 = vmatprep.subr.mxu0 0.0
    %647 = vmatpush1.msra.mxu0 0.0
    %648 = vmatprep.subr.mxu0 0.0
    %649 = vmatpush1.msra.mxu0 0.0
    %650 = vmatprep.subr.mxu0 0.0
    %651 = vmatpush1.msra.mxu0 0.0
    %652 = vmatprep.subr.mxu0 0.0
    %653 = vmatpush1.msra.mxu0 0.0
    %654 = vmatprep.subr.mxu0 0.0
    %655 = vmatpush1.msra.mxu0 0.0
    %656 = vmatprep.subr.mxu0 0.0
    %657 = vmatpush1.msra.mxu0 0.0
    %658 = vmatprep.subr.mxu0 0.0
    %659 = vmatpush1.msra.mxu0 0.0
    %660 = vmatprep.subr.mxu0 0.0
    %661 = vmatpush1.msra.mxu0 0.0
    %662 = vmatprep.subr.mxu0 0.0
    %663 = vmatpush1.msra.mxu0 0.0
    %664 = vmatprep.subr.mxu0 0.0
    %665 = vmatpush1.msra.mxu0 0.0
    %666 = vmatprep.subr.mxu0 0.0
    %667 = vmatpush1.msra.mxu0 0.0
    %668 = vmatprep.subr.mxu0 0.0
    %669 = vmatpush1.msra.mxu0 0.0
    %670 = vmatprep.subr.mxu0 0.0
    %671 = vmatpush1.msra.mxu0 0.0
    %672 = vmatprep.subr.mxu0 0.0
    %673 = vmatpush1.msra.mxu0 0.0
    %674 = vmatprep.subr.mxu0 0.0
    %675 = vmatpush1.msra.mxu0 0.0
    %676 = vmatprep.subr.mxu0 0.0
    %677 = vmatpush1.msra.mxu0 0.0
    %678 = vmatprep.mubr.f32.mxu0 0.0
    %679 = vmatmul.mubr.f32.gmra.mrb[0].mxu0 %v612
    %v680 = vpop.f32.mrb[0].mxu0
    %v681 = vadd.f32 0.0, %v680
    %v682 = vpop.f32.mrb[0].mxu0
    %683 = vdwg.mxu0
    %684 = vrot.lane.b32.xlu0 %v186, 104
    %v685 = vpop.permute.xlu0 %684
    %686 = vrot.lane.b32.xlu0 %v178, 72
    %v687 = vpop.permute.xlu0 %686
    %v688 = vsel %vm191, %v685, 0
    %v690 = vsel %vm191, %v687, 0
    %692 = vmatprep.subr.mxu0 0.0
    %693 = vmatpush1.xpose.msra.mxu0 %v690
    %694 = vmatprep.subr.mxu0 0.0
    %695 = vmatpush1.xpose.msra.mxu0 0.0
    %696 = vmatprep.subr.mxu0 0.0
    %697 = vmatpush1.xpose.msra.mxu0 0.0
    %698 = vmatprep.subr.mxu0 0.0
    %699 = vmatpush1.xpose.msra.mxu0 0.0
    %700 = vmatprep.subr.mxu0 0.0
    %701 = vmatpush1.xpose.msra.mxu0 0.0
    %702 = vmatprep.subr.mxu0 0.0
    %703 = vmatpush1.xpose.msra.mxu0 0.0
    %704 = vmatprep.subr.mxu0 0.0
    %705 = vmatpush1.xpose.msra.mxu0 0.0
    %706 = vmatprep.subr.mxu0 0.0
    %707 = vmatpush1.xpose.msra.mxu0 0.0
    %708 = vmatprep.subr.mxu0 0.0
    %709 = vmatpush1.xpose.msra.mxu0 0.0
    %710 = vmatprep.subr.mxu0 0.0
    %711 = vmatpush1.xpose.msra.mxu0 0.0
    %712 = vmatprep.subr.mxu0 0.0
    %713 = vmatpush1.xpose.msra.mxu0 0.0
    %714 = vmatprep.subr.mxu0 0.0
    %715 = vmatpush1.xpose.msra.mxu0 0.0
    %716 = vmatprep.subr.mxu0 0.0
    %717 = vmatpush1.xpose.msra.mxu0 0.0
    %718 = vmatprep.subr.mxu0 0.0
    %719 = vmatpush1.xpose.msra.mxu0 0.0
    %720 = vmatprep.subr.mxu0 0.0
    %721 = vmatpush1.xpose.msra.mxu0 0.0
    %722 = vmatprep.subr.mxu0 0.0
    %723 = vmatpush1.xpose.msra.mxu0 0.0
    %724 = vmatprep.subr.mxu0 0.0
    %725 = vmatpush1.xpose.msra.mxu0 0.0
    %726 = vmatprep.subr.mxu0 0.0
    %727 = vmatpush1.xpose.msra.mxu0 0.0
    %728 = vmatprep.subr.mxu0 0.0
    %729 = vmatpush1.xpose.msra.mxu0 0.0
    %730 = vmatprep.subr.mxu0 0.0
    %731 = vmatpush1.xpose.msra.mxu0 0.0
    %732 = vmatprep.subr.mxu0 0.0
    %733 = vmatpush1.xpose.msra.mxu0 0.0
    %734 = vmatprep.subr.mxu0 0.0
    %735 = vmatpush1.xpose.msra.mxu0 0.0
    %736 = vmatprep.subr.mxu0 0.0
    %737 = vmatpush1.xpose.msra.mxu0 0.0
    %738 = vmatprep.subr.mxu0 0.0
    %739 = vmatpush1.xpose.msra.mxu0 0.0
    %740 = vmatprep.subr.mxu0 0.0
    %741 = vmatpush1.xpose.msra.mxu0 0.0
    %742 = vmatprep.subr.mxu0 0.0
    %743 = vmatpush1.xpose.msra.mxu0 0.0
    %744 = vmatprep.subr.mxu0 0.0
    %745 = vmatpush1.xpose.msra.mxu0 0.0
    %746 = vmatprep.subr.mxu0 0.0
    %747 = vmatpush1.xpose.msra.mxu0 0.0
    %748 = vmatprep.subr.mxu0 0.0
    %749 = vmatpush1.xpose.msra.mxu0 0.0
    %750 = vmatprep.subr.mxu0 0.0
    %751 = vmatpush1.xpose.msra.mxu0 0.0
    %752 = vmatprep.subr.mxu0 0.0
    %753 = vmatpush1.xpose.msra.mxu0 0.0
    %754 = vmatprep.subr.mxu0 0.0
    %755 = vmatpush1.xpose.msra.mxu0 0.0
    %756 = vmatprep.mubr.f32.mxu0 0.0
    %757 = vmatmul.mubr.f32.gmra.mrb[0].mxu0 %v688
    %v758 = vpop.f32.mrb[0].mxu0
    %v759 = vadd.f32 %v64, %v758
    %v760 = vpop.f32.mrb[0].mxu0
    %761 = vdwg.mxu0
    %v762 = vsel %vm191, %v759, -inf
    %763 = vmax.xlane.f32.xlu0 %v762
    %v764 = vpop.xlane.xlu0 %763
    %v765 = vsub.f32 %v759, %v764
    %v766 = vmul.f32 %v765, 1.442695
    %v767 = vpow.pop %v766
    %v768 = vsel %vm191, %v767, 0.0
    %769 = vadd.xlane.f32.xlu0 %v768
    %v770 = vpop.xlane.xlu0 %769
    %v771 = vrcp.pop %v770
    %v772 = vmul.f32 %v767, %v771
    %773 = vrot.lane.b32.xlu0 %v178, 40
    %v774 = vpop.permute.xlu0 %773
    %v777 = vsel %vm191, %v772, 0
    %779 = vmatprep.subr.mxu0 0.0
    %780 = vmatpush1.msra.mxu0 %v774
    %781 = vmatprep.subr.mxu0 0.0
    %782 = vmatpush1.msra.mxu0 0.0
    %783 = vmatprep.subr.mxu0 0.0
    %784 = vmatpush1.msra.mxu0 0.0
    %785 = vmatprep.subr.mxu0 0.0
    %786 = vmatpush1.msra.mxu0 0.0
    %787 = vmatprep.subr.mxu0 0.0
    %788 = vmatpush1.msra.mxu0 0.0
    %789 = vmatprep.subr.mxu0 0.0
    %790 = vmatpush1.msra.mxu0 0.0
    %791 = vmatprep.subr.mxu0 0.0
    %792 = vmatpush1.msra.mxu0 0.0
    %793 = vmatprep.subr.mxu0 0.0
    %794 = vmatpush1.msra.mxu0 0.0
    %795 = vmatprep.subr.mxu0 0.0
    %796 = vmatpush1.msra.mxu0 0.0
    %797 = vmatprep.subr.mxu0 0.0
    %798 = vmatpush1.msra.mxu0 0.0
    %799 = vmatprep.subr.mxu0 0.0
    %800 = vmatpush1.msra.mxu0 0.0
    %801 = vmatprep.subr.mxu0 0.0
    %802 = vmatpush1.msra.mxu0 0.0
    %803 = vmatprep.subr.mxu0 0.0
    %804 = vmatpush1.msra.mxu0 0.0
    %805 = vmatprep.subr.mxu0 0.0
    %806 = vmatpush1.msra.mxu0 0.0
    %807 = vmatprep.subr.mxu0 0.0
    %808 = vmatpush1.msra.mxu0 0.0
    %809 = vmatprep.subr.mxu0 0.0
    %810 = vmatpush1.msra.mxu0 0.0
    %811 = vmatprep.subr.mxu0 0.0
    %812 = vmatpush1.msra.mxu0 0.0
    %813 = vmatprep.subr.mxu0 0.0
    %814 = vmatpush1.msra.mxu0 0.0
    %815 = vmatprep.subr.mxu0 0.0
    %816 = vmatpush1.msra.mxu0 0.0
    %817 = vmatprep.subr.mxu0 0.0
    %818 = vmatpush1.msra.mxu0 0.0
    %819 = vmatprep.subr.mxu0 0.0
    %820 = vmatpush1.msra.mxu0 0.0
    %821 = vmatprep.subr.mxu0 0.0
    %822 = vmatpush1.msra.mxu0 0.0
    %823 = vmatprep.subr.mxu0 0.0
    %824 = vmatpush1.msra.mxu0 0.0
    %825 = vmatprep.subr.mxu0 0.0
    %826 = vmatpush1.msra.mxu0 0.0
    %827 = vmatprep.subr.mxu0 0.0
    %828 = vmatpush1.msra.mxu0 0.0
    %829 = vmatprep.subr.mxu0 0.0
    %830 = vmatpush1.msra.mxu0 0.0
    %831 = vmatprep.subr.mxu0 0.0
    %832 = vmatpush1.msra.mxu0 0.0
    %833 = vmatprep.subr.mxu0 0.0
    %834 = vmatpush1.msra.mxu0 0.0
    %835 = vmatprep.subr.mxu0 0.0
    %836 = vmatpush1.msra.mxu0 0.0
    %837 = vmatprep.subr.mxu0 0.0
    %838 = vmatpush1.msra.mxu0 0.0
    %839 = vmatprep.subr.mxu0 0.0
    %840 = vmatpush1.msra.mxu0 0.0
    %841 = vmatprep.subr.mxu0 0.0
    %842 = vmatpush1.msra.mxu0 0.0
    %843 = vmatprep.mubr.f32.mxu0 0.0
    %844 = vmatmul.mubr.f32.gmra.mrb[0].mxu0 %v777
    %v845 = vpop.f32.mrb[0].mxu0
    %v846 = vadd.f32 0.0, %v845
    %v847 = vpop.f32.mrb[0].mxu0
    %848 = vdwg.mxu0
    %850 = vrot.lane.b32.xlu0 %v516, 8
    %v851 = vpop.permute.xlu0 %850
    %854 = vrot.lane.b32.xlu0 %v681, 16
    %v855 = vpop.permute.xlu0 %854
    %858 = vrot.lane.b32.xlu0 %v846, 24
    %v859 = vpop.permute.xlu0 %858
    %v861 = vsel %vm191, %v351, %v851
    %vm862 = vcmask 130048
    %v863 = vsel %vm862, %v861, %v855
    %vm864 = vcmask 195584
    %v865 = vsel %vm864, %v863, %v859
    %867 = vrot.lane.b32.xlu0 %v183, 96
    %v868 = vpop.permute.xlu0 %867
    %v870 = vsel %vm191, %v187, 0
    %v872 = vsel %vm191, %v868, 0
    %874 = vmatprep.subr.mxu0 0.0
    %875 = vmatpush1.xpose.msra.mxu0 %v872
    %876 = vmatprep.subr.mxu0 0.0
    %877 = vmatpush1.xpose.msra.mxu0 0.0
    %878 = vmatprep.subr.mxu0 0.0
    %879 = vmatpush1.xpose.msra.mxu0 0.0
    %880 = vmatprep.subr.mxu0 0.0
    %881 = vmatpush1.xpose.msra.mxu0 0.0
    %882 = vmatprep.subr.mxu0 0.0
    %883 = vmatpush1.xpose.msra.mxu0 0.0
    %884 = vmatprep.subr.mxu0 0.0
    %885 = vmatpush1.xpose.msra.mxu0 0.0
    %886 = vmatprep.subr.mxu0 0.0
    %887 = vmatpush1.xpose.msra.mxu0 0.0
    %888 = vmatprep.subr.mxu0 0.0
    %889 = vmatpush1.xpose.msra.mxu0 0.0
    %890 = vmatprep.subr.mxu0 0.0
    %891 = vmatpush1.xpose.msra.mxu0 0.0
    %892 = vmatprep.subr.mxu0 0.0
    %893 = vmatpush1.xpose.msra.mxu0 0.0
    %894 = vmatprep.subr.mxu0 0.0
    %895 = vmatpush1.xpose.msra.mxu0 0.0
    %896 = vmatprep.subr.mxu0 0.0
    %897 = vmatpush1.xpose.msra.mxu0 0.0
    %898 = vmatprep.subr.mxu0 0.0
    %899 = vmatpush1.xpose.msra.mxu0 0.0
    %900 = vmatprep.subr.mxu0 0.0
    %901 = vmatpush1.xpose.msra.mxu0 0.0
    %902 = vmatprep.subr.mxu0 0.0
    %903 = vmatpush1.xpose.msra.mxu0 0.0
    %904 = vmatprep.subr.mxu0 0.0
    %905 = vmatpush1.xpose.msra.mxu0 0.0
    %906 = vmatprep.subr.mxu0 0.0
    %907 = vmatpush1.xpose.msra.mxu0 0.0
    %908 = vmatprep.subr.mxu0 0.0
    %909 = vmatpush1.xpose.msra.mxu0 0.0
    %910 = vmatprep.subr.mxu0 0.0
    %911 = vmatpush1.xpose.msra.mxu0 0.0
    %912 = vmatprep.subr.mxu0 0.0
    %913 = vmatpush1.xpose.msra.mxu0 0.0
    %914 = vmatprep.subr.mxu0 0.0
    %915 = vmatpush1.xpose.msra.mxu0 0.0
    %916 = vmatprep.subr.mxu0 0.0
    %917 = vmatpush1.xpose.msra.mxu0 0.0
    %918 = vmatprep.subr.mxu0 0.0
    %919 = vmatpush1.xpose.msra.mxu0 0.0
    %920 = vmatprep.subr.mxu0 0.0
    %921 = vmatpush1.xpose.msra.mxu0 0.0
    %922 = vmatprep.subr.mxu0 0.0
    %923 = vmatpush1.xpose.msra.mxu0 0.0
    %924 = vmatprep.subr.mxu0 0.0
    %925 = vmatpush1.xpose.msra.mxu0 0.0
    %926 = vmatprep.subr.mxu0 0.0
    %927 = vmatpush1.xpose.msra.mxu0 0.0
    %928 = vmatprep.subr.mxu0 0.0
    %929 = vmatpush1.xpose.msra.mxu0 0.0
    %930 = vmatprep.subr.mxu0 0.0
    %931 = vmatpush1.xpose.msra.mxu0 0.0
    %932 = vmatprep.subr.mxu0 0.0
    %933 = vmatpush1.xpose.msra.mxu0 0.0
    %934 = vmatprep.subr.mxu0 0.0
    %935 = vmatpush1.xpose.msra.mxu0 0.0
    %936 = vmatprep.subr.mxu0 0.0
    %937 = vmatpush1.xpose.msra.mxu0 0.0
    %938 = vmatprep.mubr.f32.mxu0 0.0
    %939 = vmatmul.mubr.f32.gmra.mrb[0].mxu0 %v870
    %v940 = vpop.f32.mrb[0].mxu0
    %v941 = vadd.f32 %v69, %v940
    %v942 = vpop.f32.mrb[0].mxu0
    %943 = vdwg.mxu0
    %v944 = vsel %vm191, %v941, -inf
    %945 = vmax.xlane.f32.xlu0 %v944
    %v946 = vpop.xlane.xlu0 %945
    %v947 = vsub.f32 %v941, %v946
    %v948 = vmul.f32 %v947, 1.442695
    %v949 = vpow.pop %v948
    %v950 = vsel %vm191, %v949, 0.0
    %951 = vadd.xlane.f32.xlu0 %v950
    %v952 = vpop.xlane.xlu0 %951
    %v953 = vrcp.pop %v952
    %v954 = vmul.f32 %v949, %v953
    %955 = vrot.lane.b32.xlu0 %v183, 64
    %v956 = vpop.permute.xlu0 %955
    %v959 = vsel %vm191, %v954, 0
    %961 = vmatprep.subr.mxu0 0.0
    %962 = vmatpush1.msra.mxu0 %v956
    %963 = vmatprep.subr.mxu0 0.0
    %964 = vmatpush1.msra.mxu0 0.0
    %965 = vmatprep.subr.mxu0 0.0
    %966 = vmatpush1.msra.mxu0 0.0
    %967 = vmatprep.subr.mxu0 0.0
    %968 = vmatpush1.msra.mxu0 0.0
    %969 = vmatprep.subr.mxu0 0.0
    %970 = vmatpush1.msra.mxu0 0.0
    %971 = vmatprep.subr.mxu0 0.0
    %972 = vmatpush1.msra.mxu0 0.0
    %973 = vmatprep.subr.mxu0 0.0
    %974 = vmatpush1.msra.mxu0 0.0
    %975 = vmatprep.subr.mxu0 0.0
    %976 = vmatpush1.msra.mxu0 0.0
    %977 = vmatprep.subr.mxu0 0.0
    %978 = vmatpush1.msra.mxu0 0.0
    %979 = vmatprep.subr.mxu0 0.0
    %980 = vmatpush1.msra.mxu0 0.0
    %981 = vmatprep.subr.mxu0 0.0
    %982 = vmatpush1.msra.mxu0 0.0
    %983 = vmatprep.subr.mxu0 0.0
    %984 = vmatpush1.msra.mxu0 0.0
    %985 = vmatprep.subr.mxu0 0.0
    %986 = vmatpush1.msra.mxu0 0.0
    %987 = vmatprep.subr.mxu0 0.0
    %988 = vmatpush1.msra.mxu0 0.0
    %989 = vmatprep.subr.mxu0 0.0
    %990 = vmatpush1.msra.mxu0 0.0
    %991 = vmatprep.subr.mxu0 0.0
    %992 = vmatpush1.msra.mxu0 0.0
    %993 = vmatprep.subr.mxu0 0.0
    %994 = vmatpush1.msra.mxu0 0.0
    %995 = vmatprep.subr.mxu0 0.0
    %996 = vmatpush1.msra.mxu0 0.0
    %997 = vmatprep.subr.mxu0 0.0
    %998 = vmatpush1.msra.mxu0 0.0
    %999 = vmatprep.subr.mxu0 0.0
    %1000 = vmatpush1.msra.mxu0 0.0
    %1001 = vmatprep.subr.mxu0 0.0
    %1002 = vmatpush1.msra.mxu0 0.0
    %1003 = vmatprep.subr.mxu0 0.0
    %1004 = vmatpush1.msra.mxu0 0.0
    %1005 = vmatprep.subr.mxu0 0.0
    %1006 = vmatpush1.msra.mxu0 0.0
    %1007 = vmatprep.subr.mxu0 0.0
    %1008 = vmatpush1.msra.mxu0 0.0
    %1009 = vmatprep.subr.mxu0 0.0
    %1010 = vmatpush1.msra.mxu0 0.0
    %1011 = vmatprep.subr.mxu0 0.0
    %1012 = vmatpush1.msra.mxu0 0.0
    %1013 = vmatprep.subr.mxu0 0.0
    %1014 = vmatpush1.msra.mxu0 0.0
    %1015 = vmatprep.subr.mxu0 0.0
    %1016 = vmatpush1.msra.mxu0 0.0
    %1017 = vmatprep.subr.mxu0 0.0
    %1018 = vmatpush1.msra.mxu0 0.0
    %1019 = vmatprep.subr.mxu0 0.0
    %1020 = vmatpush1.msra.mxu0 0.0
    %1021 = vmatprep.subr.mxu0 0.0
    %1022 = vmatpush1.msra.mxu0 0.0
    %1023 = vmatprep.subr.mxu0 0.0
    %1024 = vmatpush1.msra.mxu0 0.0
    %1025 = vmatprep.mubr.f32.mxu0 0.0
    %1026 = vmatmul.mubr.f32.gmra.mrb[0].mxu0 %v959
    %v1027 = vpop.f32.mrb[0].mxu0
    %v1028 = vadd.f32 0.0, %v1027
    %v1029 = vpop.f32.mrb[0].mxu0
    %1030 = vdwg.mxu0
    %1031 = vrot.lane.b32.xlu0 %v187, 120
    %v1032 = vpop.permute.xlu0 %1031
    %1033 = vrot.lane.b32.xlu0 %v183, 88
    %v1034 = vpop.permute.xlu0 %1033
    %v1035 = vsel %vm191, %v1032, 0
    %v1037 = vsel %vm191, %v1034, 0
    %1039 = vmatprep.subr.mxu0 0.0
    %1040 = vmatpush1.xpose.msra.mxu0 %v1037
    %1041 = vmatprep.subr.mxu0 0.0
    %1042 = vmatpush1.xpose.msra.mxu0 0.0
    %1043 = vmatprep.subr.mxu0 0.0
    %1044 = vmatpush1.xpose.msra.mxu0 0.0
    %1045 = vmatprep.subr.mxu0 0.0
    %1046 = vmatpush1.xpose.msra.mxu0 0.0
    %1047 = vmatprep.subr.mxu0 0.0
    %1048 = vmatpush1.xpose.msra.mxu0 0.0
    %1049 = vmatprep.subr.mxu0 0.0
    %1050 = vmatpush1.xpose.msra.mxu0 0.0
    %1051 = vmatprep.subr.mxu0 0.0
    %1052 = vmatpush1.xpose.msra.mxu0 0.0
    %1053 = vmatprep.subr.mxu0 0.0
    %1054 = vmatpush1.xpose.msra.mxu0 0.0
    %1055 = vmatprep.subr.mxu0 0.0
    %1056 = vmatpush1.xpose.msra.mxu0 0.0
    %1057 = vmatprep.subr.mxu0 0.0
    %1058 = vmatpush1.xpose.msra.mxu0 0.0
    %1059 = vmatprep.subr.mxu0 0.0
    %1060 = vmatpush1.xpose.msra.mxu0 0.0
    %1061 = vmatprep.subr.mxu0 0.0
    %1062 = vmatpush1.xpose.msra.mxu0 0.0
    %1063 = vmatprep.subr.mxu0 0.0
    %1064 = vmatpush1.xpose.msra.mxu0 0.0
    %1065 = vmatprep.subr.mxu0 0.0
    %1066 = vmatpush1.xpose.msra.mxu0 0.0
    %1067 = vmatprep.subr.mxu0 0.0
    %1068 = vmatpush1.xpose.msra.mxu0 0.0
    %1069 = vmatprep.subr.mxu0 0.0
    %1070 = vmatpush1.xpose.msra.mxu0 0.0
    %1071 = vmatprep.subr.mxu0 0.0
    %1072 = vmatpush1.xpose.msra.mxu0 0.0
    %1073 = vmatprep.subr.mxu0 0.0
    %1074 = vmatpush1.xpose.msra.mxu0 0.0
    %1075 = vmatprep.subr.mxu0 0.0
    %1076 = vmatpush1.xpose.msra.mxu0 0.0
    %1077 = vmatprep.subr.mxu0 0.0
    %1078 = vmatpush1.xpose.msra.mxu0 0.0
    %1079 = vmatprep.subr.mxu0 0.0
    %1080 = vmatpush1.xpose.msra.mxu0 0.0
    %1081 = vmatprep.subr.mxu0 0.0
    %1082 = vmatpush1.xpose.msra.mxu0 0.0
    %1083 = vmatprep.subr.mxu0 0.0
    %1084 = vmatpush1.xpose.msra.mxu0 0.0
    %1085 = vmatprep.subr.mxu0 0.0
    %1086 = vmatpush1.xpose.msra.mxu0 0.0
    %1087 = vmatprep.subr.mxu0 0.0
    %1088 = vmatpush1.xpose.msra.mxu0 0.0
    %1089 = vmatprep.subr.mxu0 0.0
    %1090 = vmatpush1.xpose.msra.mxu0 0.0
    %1091 = vmatprep.subr.mxu0 0.0
    %1092 = vmatpush1.xpose.msra.mxu0 0.0
    %1093 = vmatprep.subr.mxu0 0.0
    %1094 = vmatpush1.xpose.msra.mxu0 0.0
    %1095 = vmatprep.subr.mxu0 0.0
    %1096 = vmatpush1.xpose.msra.mxu0 0.0
    %1097 = vmatprep.subr.mxu0 0.0
    %1098 = vmatpush1.xpose.msra.mxu0 0.0
    %1099 = vmatprep.subr.mxu0 0.0
    %1100 = vmatpush1.xpose.msra.mxu0 0.0
    %1101 = vmatprep.subr.mxu0 0.0
    %1102 = vmatpush1.xpose.msra.mxu0 0.0
    %1103 = vmatprep.mubr.f32.mxu0 0.0
    %1104 = vmatmul.mubr.f32.gmra.mrb[0].mxu0 %v1035
    %v1105 = vpop.f32.mrb[0].mxu0
    %v1106 = vadd.f32 %v69, %v1105
    %v1107 = vpop.f32.mrb[0].mxu0
    %1108 = vdwg.mxu0
    %v1109 = vsel %vm191, %v1106, -inf
    %1110 = vmax.xlane.f32.xlu0 %v1109
    %v1111 = vpop.xlane.xlu0 %1110
    %v1112 = vsub.f32 %v1106, %v1111
    %v1113 = vmul.f32 %v1112, 1.442695
    %v1114 = vpow.pop %v1113
    %v1115 = vsel %vm191, %v1114, 0.0
    %1116 = vadd.xlane.f32.xlu0 %v1115
    %v1117 = vpop.xlane.xlu0 %1116
    %v1118 = vrcp.pop %v1117
    %v1119 = vmul.f32 %v1114, %v1118
    %1120 = vrot.lane.b32.xlu0 %v183, 56
    %v1121 = vpop.permute.xlu0 %1120
    %v1124 = vsel %vm191, %v1119, 0
    %1126 = vmatprep.subr.mxu0 0.0
    %1127 = vmatpush1.msra.mxu0 %v1121
    %1128 = vmatprep.subr.mxu0 0.0
    %1129 = vmatpush1.msra.mxu0 0.0
    %1130 = vmatprep.subr.mxu0 0.0
    %1131 = vmatpush1.msra.mxu0 0.0
    %1132 = vmatprep.subr.mxu0 0.0
    %1133 = vmatpush1.msra.mxu0 0.0
    %1134 = vmatprep.subr.mxu0 0.0
    %1135 = vmatpush1.msra.mxu0 0.0
    %1136 = vmatprep.subr.mxu0 0.0
    %1137 = vmatpush1.msra.mxu0 0.0
    %1138 = vmatprep.subr.mxu0 0.0
    %1139 = vmatpush1.msra.mxu0 0.0
    %1140 = vmatprep.subr.mxu0 0.0
    %1141 = vmatpush1.msra.mxu0 0.0
    %1142 = vmatprep.subr.mxu0 0.0
    %1143 = vmatpush1.msra.mxu0 0.0
    %1144 = vmatprep.subr.mxu0 0.0
    %1145 = vmatpush1.msra.mxu0 0.0
    %1146 = vmatprep.subr.mxu0 0.0
    %1147 = vmatpush1.msra.mxu0 0.0
    %1148 = vmatprep.subr.mxu0 0.0
    %1149 = vmatpush1.msra.mxu0 0.0
    %1150 = vmatprep.subr.mxu0 0.0
    %1151 = vmatpush1.msra.mxu0 0.0
    %1152 = vmatprep.subr.mxu0 0.0
    %1153 = vmatpush1.msra.mxu0 0.0
    %1154 = vmatprep.subr.mxu0 0.0
    %1155 = vmatpush1.msra.mxu0 0.0
    %1156 = vmatprep.subr.mxu0 0.0
    %1157 = vmatpush1.msra.mxu0 0.0
    %1158 = vmatprep.subr.mxu0 0.0
    %1159 = vmatpush1.msra.mxu0 0.0
    %1160 = vmatprep.subr.mxu0 0.0
    %1161 = vmatpush1.msra.mxu0 0.0
    %1162 = vmatprep.subr.mxu0 0.0
    %1163 = vmatpush1.msra.mxu0 0.0
    %1164 = vmatprep.subr.mxu0 0.0
    %1165 = vmatpush1.msra.mxu0 0.0
    %1166 = vmatprep.subr.mxu0 0.0
    %1167 = vmatpush1.msra.mxu0 0.0
    %1168 = vmatprep.subr.mxu0 0.0
    %1169 = vmatpush1.msra.mxu0 0.0
    %1170 = vmatprep.subr.mxu0 0.0
    %1171 = vmatpush1.msra.mxu0 0.0
    %1172 = vmatprep.subr.mxu0 0.0
    %1173 = vmatpush1.msra.mxu0 0.0
    %1174 = vmatprep.subr.mxu0 0.0
    %1175 = vmatpush1.msra.mxu0 0.0
    %1176 = vmatprep.subr.mxu0 0.0
    %1177 = vmatpush1.msra.mxu0 0.0
    %1178 = vmatprep.subr.mxu0 0.0
    %1179 = vmatpush1.msra.mxu0 0.0
    %1180 = vmatprep.subr.mxu0 0.0
    %1181 = vmatpush1.msra.mxu0 0.0
    %1182 = vmatprep.subr.mxu0 0.0
    %1183 = vmatpush1.msra.mxu0 0.0
    %1184 = vmatprep.subr.mxu0 0.0
    %1185 = vmatpush1.msra.mxu0 0.0
    %1186 = vmatprep.subr.mxu0 0.0
    %1187 = vmatpush1.msra.mxu0 0.0
    %1188 = vmatprep.subr.mxu0 0.0
    %1189 = vmatpush1.msra.mxu0 0.0
    %1190 = vmatprep.mubr.f32.mxu0 0.0
    %1191 = vmatmul.mubr.f32.gmra.mrb[0].mxu0 %v1124
    %v1192 = vpop.f32.mrb[0].mxu0
    %v1193 = vadd.f32 0.0, %v1192
    %v1194 = vpop.f32.mrb[0].mxu0
    %1195 = vdwg.mxu0
    %1196 = vrot.lane.b32.xlu0 %v187, 112
    %v1197 = vpop.permute.xlu0 %1196
    %1198 = vrot.lane.b32.xlu0 %v183, 80
    %v1199 = vpop.permute.xlu0 %1198
    %v1200 = vsel %vm191, %v1197, 0
    %v1202 = vsel %vm191, %v1199, 0
    %1204 = vmatprep.subr.mxu0 0.0
    %1205 = vmatpush1.xpose.msra.mxu0 %v1202
    %1206 = vmatprep.subr.mxu0 0.0
    %1207 = vmatpush1.xpose.msra.mxu0 0.0
    %1208 = vmatprep.subr.mxu0 0.0
    %1209 = vmatpush1.xpose.msra.mxu0 0.0
    %1210 = vmatprep.subr.mxu0 0.0
    %1211 = vmatpush1.xpose.msra.mxu0 0.0
    %1212 = vmatprep.subr.mxu0 0.0
    %1213 = vmatpush1.xpose.msra.mxu0 0.0
    %1214 = vmatprep.subr.mxu0 0.0
    %1215 = vmatpush1.xpose.msra.mxu0 0.0
    %1216 = vmatprep.subr.mxu0 0.0
    %1217 = vmatpush1.xpose.msra.mxu0 0.0
    %1218 = vmatprep.subr.mxu0 0.0
    %1219 = vmatpush1.xpose.msra.mxu0 0.0
    %1220 = vmatprep.subr.mxu0 0.0
    %1221 = vmatpush1.xpose.msra.mxu0 0.0
    %1222 = vmatprep.subr.mxu0 0.0
    %1223 = vmatpush1.xpose.msra.mxu0 0.0
    %1224 = vmatprep.subr.mxu0 0.0
    %1225 = vmatpush1.xpose.msra.mxu0 0.0
    %1226 = vmatprep.subr.mxu0 0.0
    %1227 = vmatpush1.xpose.msra.mxu0 0.0
    %1228 = vmatprep.subr.mxu0 0.0
    %1229 = vmatpush1.xpose.msra.mxu0 0.0
    %1230 = vmatprep.subr.mxu0 0.0
    %1231 = vmatpush1.xpose.msra.mxu0 0.0
    %1232 = vmatprep.subr.mxu0 0.0
    %1233 = vmatpush1.xpose.msra.mxu0 0.0
    %1234 = vmatprep.subr.mxu0 0.0
    %1235 = vmatpush1.xpose.msra.mxu0 0.0
    %1236 = vmatprep.subr.mxu0 0.0
    %1237 = vmatpush1.xpose.msra.mxu0 0.0
    %1238 = vmatprep.subr.mxu0 0.0
    %1239 = vmatpush1.xpose.msra.mxu0 0.0
    %1240 = vmatprep.subr.mxu0 0.0
    %1241 = vmatpush1.xpose.msra.mxu0 0.0
    %1242 = vmatprep.subr.mxu0 0.0
    %1243 = vmatpush1.xpose.msra.mxu0 0.0
    %1244 = vmatprep.subr.mxu0 0.0
    %1245 = vmatpush1.xpose.msra.mxu0 0.0
    %1246 = vmatprep.subr.mxu0 0.0
    %1247 = vmatpush1.xpose.msra.mxu0 0.0
    %1248 = vmatprep.subr.mxu0 0.0
    %1249 = vmatpush1.xpose.msra.mxu0 0.0
    %1250 = vmatprep.subr.mxu0 0.0
    %1251 = vmatpush1.xpose.msra.mxu0 0.0
    %1252 = vmatprep.subr.mxu0 0.0
    %1253 = vmatpush1.xpose.msra.mxu0 0.0
    %1254 = vmatprep.subr.mxu0 0.0
    %1255 = vmatpush1.xpose.msra.mxu0 0.0
    %1256 = vmatprep.subr.mxu0 0.0
    %1257 = vmatpush1.xpose.msra.mxu0 0.0
    %1258 = vmatprep.subr.mxu0 0.0
    %1259 = vmatpush1.xpose.msra.mxu0 0.0
    %1260 = vmatprep.subr.mxu0 0.0
    %1261 = vmatpush1.xpose.msra.mxu0 0.0
    %1262 = vmatprep.subr.mxu0 0.0
    %1263 = vmatpush1.xpose.msra.mxu0 0.0
    %1264 = vmatprep.subr.mxu0 0.0
    %1265 = vmatpush1.xpose.msra.mxu0 0.0
    %1266 = vmatprep.subr.mxu0 0.0
    %1267 = vmatpush1.xpose.msra.mxu0 0.0
    %1268 = vmatprep.mubr.f32.mxu0 0.0
    %1269 = vmatmul.mubr.f32.gmra.mrb[0].mxu0 %v1200
    %v1270 = vpop.f32.mrb[0].mxu0
    %v1271 = vadd.f32 %v69, %v1270
    %v1272 = vpop.f32.mrb[0].mxu0
    %1273 = vdwg.mxu0
    %v1274 = vsel %vm191, %v1271, -inf
    %1275 = vmax.xlane.f32.xlu0 %v1274
    %v1276 = vpop.xlane.xlu0 %1275
    %v1277 = vsub.f32 %v1271, %v1276
    %v1278 = vmul.f32 %v1277, 1.442695
    %v1279 = vpow.pop %v1278
    %v1280 = vsel %vm191, %v1279, 0.0
    %1281 = vadd.xlane.f32.xlu0 %v1280
    %v1282 = vpop.xlane.xlu0 %1281
    %v1283 = vrcp.pop %v1282
    %v1284 = vmul.f32 %v1279, %v1283
    %1285 = vrot.lane.b32.xlu0 %v183, 48
    %v1286 = vpop.permute.xlu0 %1285
    %v1289 = vsel %vm191, %v1284, 0
    %1291 = vmatprep.subr.mxu0 0.0
    %1292 = vmatpush1.msra.mxu0 %v1286
    %1293 = vmatprep.subr.mxu0 0.0
    %1294 = vmatpush1.msra.mxu0 0.0
    %1295 = vmatprep.subr.mxu0 0.0
    %1296 = vmatpush1.msra.mxu0 0.0
    %1297 = vmatprep.subr.mxu0 0.0
    %1298 = vmatpush1.msra.mxu0 0.0
    %1299 = vmatprep.subr.mxu0 0.0
    %1300 = vmatpush1.msra.mxu0 0.0
    %1301 = vmatprep.subr.mxu0 0.0
    %1302 = vmatpush1.msra.mxu0 0.0
    %1303 = vmatprep.subr.mxu0 0.0
    %1304 = vmatpush1.msra.mxu0 0.0
    %1305 = vmatprep.subr.mxu0 0.0
    %1306 = vmatpush1.msra.mxu0 0.0
    %1307 = vmatprep.subr.mxu0 0.0
    %1308 = vmatpush1.msra.mxu0 0.0
    %1309 = vmatprep.subr.mxu0 0.0
    %1310 = vmatpush1.msra.mxu0 0.0
    %1311 = vmatprep.subr.mxu0 0.0
    %1312 = vmatpush1.msra.mxu0 0.0
    %1313 = vmatprep.subr.mxu0 0.0
    %1314 = vmatpush1.msra.mxu0 0.0
    %1315 = vmatprep.subr.mxu0 0.0
    %1316 = vmatpush1.msra.mxu0 0.0
    %1317 = vmatprep.subr.mxu0 0.0
    %1318 = vmatpush1.msra.mxu0 0.0
    %1319 = vmatprep.subr.mxu0 0.0
    %1320 = vmatpush1.msra.mxu0 0.0
    %1321 = vmatprep.subr.mxu0 0.0
    %1322 = vmatpush1.msra.mxu0 0.0
    %1323 = vmatprep.subr.mxu0 0.0
    %1324 = vmatpush1.msra.mxu0 0.0
    %1325 = vmatprep.subr.mxu0 0.0
    %1326 = vmatpush1.msra.mxu0 0.0
    %1327 = vmatprep.subr.mxu0 0.0
    %1328 = vmatpush1.msra.mxu0 0.0
    %1329 = vmatprep.subr.mxu0 0.0
    %1330 = vmatpush1.msra.mxu0 0.0
    %1331 = vmatprep.subr.mxu0 0.0
    %1332 = vmatpush1.msra.mxu0 0.0
    %1333 = vmatprep.subr.mxu0 0.0
    %1334 = vmatpush1.msra.mxu0 0.0
    %1335 = vmatprep.subr.mxu0 0.0
    %1336 = vmatpush1.msra.mxu0 0.0
    %1337 = vmatprep.subr.mxu0 0.0
    %1338 = vmatpush1.msra.mxu0 0.0
    %1339 = vmatprep.subr.mxu0 0.0
    %1340 = vmatpush1.msra.mxu0 0.0
    %1341 = vmatprep.subr.mxu0 0.0
    %1342 = vmatpush1.msra.mxu0 0.0
    %1343 = vmatprep.subr.mxu0 0.0
    %1344 = vmatpush1.msra.mxu0 0.0
    %1345 = vmatprep.subr.mxu0 0.0
    %1346 = vmatpush1.msra.mxu0 0.0
    %1347 = vmatprep.subr.mxu0 0.0
    %1348 = vmatpush1.msra.mxu0 0.0
    %1349 = vmatprep.subr.mxu0 0.0
    %1350 = vmatpush1.msra.mxu0 0.0
    %1351 = vmatprep.subr.mxu0 0.0
    %1352 = vmatpush1.msra.mxu0 0.0
    %1353 = vmatprep.subr.mxu0 0.0
    %1354 = vmatpush1.msra.mxu0 0.0
    %1355 = vmatprep.mubr.f32.mxu0 0.0
    %1356 = vmatmul.mubr.f32.gmra.mrb[0].mxu0 %v1289
    %v1357 = vpop.f32.mrb[0].mxu0
    %v1358 = vadd.f32 0.0, %v1357
    %v1359 = vpop.f32.mrb[0].mxu0
    %1360 = vdwg.mxu0
    %1361 = vrot.lane.b32.xlu0 %v187, 104
    %v1362 = vpop.permute.xlu0 %1361
    %1363 = vrot.lane.b32.xlu0 %v183, 72
    %v1364 = vpop.permute.xlu0 %1363
    %v1365 = vsel %vm191, %v1362, 0
    %v1367 = vsel %vm191, %v1364, 0
    %1369 = vmatprep.subr.mxu0 0.0
    %1370 = vmatpush1.xpose.msra.mxu0 %v1367
    %1371 = vmatprep.subr.mxu0 0.0
    %1372 = vmatpush1.xpose.msra.mxu0 0.0
    %1373 = vmatprep.subr.mxu0 0.0
    %1374 = vmatpush1.xpose.msra.mxu0 0.0
    %1375 = vmatprep.subr.mxu0 0.0
    %1376 = vmatpush1.xpose.msra.mxu0 0.0
    %1377 = vmatprep.subr.mxu0 0.0
    %1378 = vmatpush1.xpose.msra.mxu0 0.0
    %1379 = vmatprep.subr.mxu0 0.0
    %1380 = vmatpush1.xpose.msra.mxu0 0.0
    %1381 = vmatprep.subr.mxu0 0.0
    %1382 = vmatpush1.xpose.msra.mxu0 0.0
    %1383 = vmatprep.subr.mxu0 0.0
    %1384 = vmatpush1.xpose.msra.mxu0 0.0
    %1385 = vmatprep.subr.mxu0 0.0
    %1386 = vmatpush1.xpose.msra.mxu0 0.0
    %1387 = vmatprep.subr.mxu0 0.0
    %1388 = vmatpush1.xpose.msra.mxu0 0.0
    %1389 = vmatprep.subr.mxu0 0.0
    %1390 = vmatpush1.xpose.msra.mxu0 0.0
    %1391 = vmatprep.subr.mxu0 0.0
    %1392 = vmatpush1.xpose.msra.mxu0 0.0
    %1393 = vmatprep.subr.mxu0 0.0
    %1394 = vmatpush1.xpose.msra.mxu0 0.0
    %1395 = vmatprep.subr.mxu0 0.0
    %1396 = vmatpush1.xpose.msra.mxu0 0.0
    %1397 = vmatprep.subr.mxu0 0.0
    %1398 = vmatpush1.xpose.msra.mxu0 0.0
    %1399 = vmatprep.subr.mxu0 0.0
    %1400 = vmatpush1.xpose.msra.mxu0 0.0
    %1401 = vmatprep.subr.mxu0 0.0
    %1402 = vmatpush1.xpose.msra.mxu0 0.0
    %1403 = vmatprep.subr.mxu0 0.0
    %1404 = vmatpush1.xpose.msra.mxu0 0.0
    %1405 = vmatprep.subr.mxu0 0.0
    %1406 = vmatpush1.xpose.msra.mxu0 0.0
    %1407 = vmatprep.subr.mxu0 0.0
    %1408 = vmatpush1.xpose.msra.mxu0 0.0
    %1409 = vmatprep.subr.mxu0 0.0
    %1410 = vmatpush1.xpose.msra.mxu0 0.0
    %1411 = vmatprep.subr.mxu0 0.0
    %1412 = vmatpush1.xpose.msra.mxu0 0.0
    %1413 = vmatprep.subr.mxu0 0.0
    %1414 = vmatpush1.xpose.msra.mxu0 0.0
    %1415 = vmatprep.subr.mxu0 0.0
    %1416 = vmatpush1.xpose.msra.mxu0 0.0
    %1417 = vmatprep.subr.mxu0 0.0
    %1418 = vmatpush1.xpose.msra.mxu0 0.0
    %1419 = vmatprep.subr.mxu0 0.0
    %1420 = vmatpush1.xpose.msra.mxu0 0.0
    %1421 = vmatprep.subr.mxu0 0.0
    %1422 = vmatpush1.xpose.msra.mxu0 0.0
    %1423 = vmatprep.subr.mxu0 0.0
    %1424 = vmatpush1.xpose.msra.mxu0 0.0
    %1425 = vmatprep.subr.mxu0 0.0
    %1426 = vmatpush1.xpose.msra.mxu0 0.0
    %1427 = vmatprep.subr.mxu0 0.0
    %1428 = vmatpush1.xpose.msra.mxu0 0.0
    %1429 = vmatprep.subr.mxu0 0.0
    %1430 = vmatpush1.xpose.msra.mxu0 0.0
    %1431 = vmatprep.subr.mxu0 0.0
    %1432 = vmatpush1.xpose.msra.mxu0 0.0
    %1433 = vmatprep.mubr.f32.mxu0 0.0
    %1434 = vmatmul.mubr.f32.gmra.mrb[0].mxu0 %v1365
    %v1435 = vpop.f32.mrb[0].mxu0
    %v1436 = vadd.f32 %v69, %v1435
    %v1437 = vpop.f32.mrb[0].mxu0
    %1438 = vdwg.mxu0
    %v1439 = vsel %vm191, %v1436, -inf
    %1440 = vmax.xlane.f32.xlu0 %v1439
    %v1441 = vpop.xlane.xlu0 %1440
    %v1442 = vsub.f32 %v1436, %v1441
    %v1443 = vmul.f32 %v1442, 1.442695
    %v1444 = vpow.pop %v1443
    %v1445 = vsel %vm191, %v1444, 0.0
    %1446 = vadd.xlane.f32.xlu0 %v1445
    %v1447 = vpop.xlane.xlu0 %1446
    %v1448 = vrcp.pop %v1447
    %v1449 = vmul.f32 %v1444, %v1448
    %1450 = vrot.lane.b32.xlu0 %v183, 40
    %v1451 = vpop.permute.xlu0 %1450
    %v1454 = vsel %vm191, %v1449, 0
    %1456 = vmatprep.subr.mxu0 0.0
    %1457 = vmatpush1.msra.mxu0 %v1451
    %1458 = vmatprep.subr.mxu0 0.0
    %1459 = vmatpush1.msra.mxu0 0.0
    %1460 = vmatprep.subr.mxu0 0.0
    %1461 = vmatpush1.msra.mxu0 0.0
    %1462 = vmatprep.subr.mxu0 0.0
    %1463 = vmatpush1.msra.mxu0 0.0
    %1464 = vmatprep.subr.mxu0 0.0
    %1465 = vmatpush1.msra.mxu0 0.0
    %1466 = vmatprep.subr.mxu0 0.0
    %1467 = vmatpush1.msra.mxu0 0.0
    %1468 = vmatprep.subr.mxu0 0.0
    %1469 = vmatpush1.msra.mxu0 0.0
    %1470 = vmatprep.subr.mxu0 0.0
    %1471 = vmatpush1.msra.mxu0 0.0
    %1472 = vmatprep.subr.mxu0 0.0
    %1473 = vmatpush1.msra.mxu0 0.0
    %1474 = vmatprep.subr.mxu0 0.0
    %1475 = vmatpush1.msra.mxu0 0.0
    %1476 = vmatprep.subr.mxu0 0.0
    %1477 = vmatpush1.msra.mxu0 0.0
    %1478 = vmatprep.subr.mxu0 0.0
    %1479 = vmatpush1.msra.mxu0 0.0
    %1480 = vmatprep.subr.mxu0 0.0
    %1481 = vmatpush1.msra.mxu0 0.0
    %1482 = vmatprep.subr.mxu0 0.0
    %1483 = vmatpush1.msra.mxu0 0.0
    %1484 = vmatprep.subr.mxu0 0.0
    %1485 = vmatpush1.msra.mxu0 0.0
    %1486 = vmatprep.subr.mxu0 0.0
    %1487 = vmatpush1.msra.mxu0 0.0
    %1488 = vmatprep.subr.mxu0 0.0
    %1489 = vmatpush1.msra.mxu0 0.0
    %1490 = vmatprep.subr.mxu0 0.0
    %1491 = vmatpush1.msra.mxu0 0.0
    %1492 = vmatprep.subr.mxu0 0.0
    %1493 = vmatpush1.msra.mxu0 0.0
    %1494 = vmatprep.subr.mxu0 0.0
    %1495 = vmatpush1.msra.mxu0 0.0
    %1496 = vmatprep.subr.mxu0 0.0
    %1497 = vmatpush1.msra.mxu0 0.0
    %1498 = vmatprep.subr.mxu0 0.0
    %1499 = vmatpush1.msra.mxu0 0.0
    %1500 = vmatprep.subr.mxu0 0.0
    %1501 = vmatpush1.msra.mxu0 0.0
    %1502 = vmatprep.subr.mxu0 0.0
    %1503 = vmatpush1.msra.mxu0 0.0
    %1504 = vmatprep.subr.mxu0 0.0
    %1505 = vmatpush1.msra.mxu0 0.0
    %1506 = vmatprep.subr.mxu0 0.0
    %1507 = vmatpush1.msra.mxu0 0.0
    %1508 = vmatprep.subr.mxu0 0.0
    %1509 = vmatpush1.msra.mxu0 0.0
    %1510 = vmatprep.subr.mxu0 0.0
    %1511 = vmatpush1.msra.mxu0 0.0
    %1512 = vmatprep.subr.mxu0 0.0
    %1513 = vmatpush1.msra.mxu0 0.0
    %1514 = vmatprep.subr.mxu0 0.0
    %1515 = vmatpush1.msra.mxu0 0.0
    %1516 = vmatprep.subr.mxu0 0.0
    %1517 = vmatpush1.msra.mxu0 0.0
    %1518 = vmatprep.subr.mxu0 0.0
    %1519 = vmatpush1.msra.mxu0 0.0
    %1520 = vmatprep.mubr.f32.mxu0 0.0
    %1521 = vmatmul.mubr.f32.gmra.mrb[0].mxu0 %v1454
    %v1522 = vpop.f32.mrb[0].mxu0
    %v1523 = vadd.f32 0.0, %v1522
    %v1524 = vpop.f32.mrb[0].mxu0
    %1525 = vdwg.mxu0
    %1527 = vrot.lane.b32.xlu0 %v1193, 8
    %v1528 = vpop.permute.xlu0 %1527
    %1531 = vrot.lane.b32.xlu0 %v1358, 16
    %v1532 = vpop.permute.xlu0 %1531
    %1535 = vrot.lane.b32.xlu0 %v1523, 24
    %v1536 = vpop.permute.xlu0 %1535
    %v1538 = vsel %vm191, %v1028, %v1528
    %v1539 = vsel %vm862, %v1538, %v1532
    %v1540 = vsel %vm864, %v1539, %v1536
    %v1541 = vlaneseq
    %v1542 = vshrl.u32 %v1541, 7
    %v1543 = vsub.s32 0, %v1542
    %v1544 = vrot.slane %v93, %v1543
    %v1546 = vsel %vm104, %v865, 0
    %v1549 = vsel %vm104, %v1540, 0
    %1551 = vmatprep.subr.mxu0 0.0
    %1552 = vmatpush1.msra.mxu0 %v76
    %1553 = vmatprep.subr.mxu0 0.0
    %1554 = vmatpush1.msra.mxu0 %v77
    %1555 = vmatprep.subr.mxu0 0.0
    %1556 = vmatpush1.msra.mxu0 %v78
    %1557 = vmatprep.subr.mxu0 0.0
    %1558 = vmatpush1.msra.mxu0 %v79
    %1559 = vmatprep.subr.mxu0 0.0
    %1560 = vmatpush1.msra.mxu0 0.0
    %1561 = vmatprep.subr.mxu0 0.0
    %1562 = vmatpush1.msra.mxu0 0.0
    %1563 = vmatprep.subr.mxu0 0.0
    %1564 = vmatpush1.msra.mxu0 0.0
    %1565 = vmatprep.subr.mxu0 0.0
    %1566 = vmatpush1.msra.mxu0 0.0
    %1567 = vmatprep.subr.mxu0 0.0
    %1568 = vmatpush1.msra.mxu0 0.0
    %1569 = vmatprep.subr.mxu0 0.0
    %1570 = vmatpush1.msra.mxu0 0.0
    %1571 = vmatprep.subr.mxu0 0.0
    %1572 = vmatpush1.msra.mxu0 0.0
    %1573 = vmatprep.subr.mxu0 0.0
    %1574 = vmatpush1.msra.mxu0 0.0
    %1575 = vmatprep.subr.mxu0 0.0
    %1576 = vmatpush1.msra.mxu0 0.0
    %1577 = vmatprep.subr.mxu0 0.0
    %1578 = vmatpush1.msra.mxu0 0.0
    %1579 = vmatprep.subr.mxu0 0.0
    %1580 = vmatpush1.msra.mxu0 0.0
    %1581 = vmatprep.subr.mxu0 0.0
    %1582 = vmatpush1.msra.mxu0 0.0
    %1583 = vmatprep.subr.mxu0 0.0
    %1584 = vmatpush1.msra.mxu0 0.0
    %1585 = vmatprep.subr.mxu0 0.0
    %1586 = vmatpush1.msra.mxu0 0.0
    %1587 = vmatprep.subr.mxu0 0.0
    %1588 = vmatpush1.msra.mxu0 0.0
    %1589 = vmatprep.subr.mxu0 0.0
    %1590 = vmatpush1.msra.mxu0 0.0
    %1591 = vmatprep.subr.mxu0 0.0
    %1592 = vmatpush1.msra.mxu0 0.0
    %1593 = vmatprep.subr.mxu0 0.0
    %1594 = vmatpush1.msra.mxu0 0.0
    %1595 = vmatprep.subr.mxu0 0.0
    %1596 = vmatpush1.msra.mxu0 0.0
    %1597 = vmatprep.subr.mxu0 0.0
    %1598 = vmatpush1.msra.mxu0 0.0
    %1599 = vmatprep.subr.mxu0 0.0
    %1600 = vmatpush1.msra.mxu0 0.0
    %1601 = vmatprep.subr.mxu0 0.0
    %1602 = vmatpush1.msra.mxu0 0.0
    %1603 = vmatprep.subr.mxu0 0.0
    %1604 = vmatpush1.msra.mxu0 0.0
    %1605 = vmatprep.subr.mxu0 0.0
    %1606 = vmatpush1.msra.mxu0 0.0
    %1607 = vmatprep.subr.mxu0 0.0
    %1608 = vmatpush1.msra.mxu0 0.0
    %1609 = vmatprep.subr.mxu0 0.0
    %1610 = vmatpush1.msra.mxu0 0.0
    %1611 = vmatprep.subr.mxu0 0.0
    %1612 = vmatpush1.msra.mxu0 0.0
    %1613 = vmatprep.subr.mxu0 0.0
    %1614 = vmatpush1.msra.mxu0 0.0
    %1615 = vmatprep.mubr.f32.mxu0 0.0
    %1616 = vmatmul.mubr.f32.gmra.mrb[0].mxu0 %v1546
    %v1617 = vpop.f32.mrb[0].mxu0
    %v1618 = vadd.f32 %v1544, %v1617
    %v1619 = vpop.f32.mrb[0].mxu0
    %1620 = vmatprep.mubr.f32.mxu0 0.0
    %1621 = vmatmul.mubr.f32.gmra.mrb[0].mxu0 %v1549
    %v1622 = vpop.f32.mrb[0].mxu0
    %v1623 = vadd.f32 %v1544, %v1622
    %v1624 = vpop.f32.mrb[0].mxu0
    %1625 = vdwg.mxu0
    %v1626 = vadd.f32 %v58, %v1618
    %v1627 = vadd.f32 %v59, %v1623
    %v1628 = vsel %vm104, %v1626, 0.0
    %1629 = vadd.xlane.f32.xlu0 %v1628
    %v1630 = vpop.xlane.xlu0 %1629
    %v1631 = vsel %vm104, %v1627, 0.0
    %1632 = vadd.xlane.f32.xlu0 %v1631
    %v1633 = vpop.xlane.xlu0 %1632
    %v1634 = vrcp.pop 32.0
    %v1635 = vmul.f32 %v1630, %v1634
    %v1636 = vmul.f32 %v1633, %v1634
    %v1637 = vsub.f32 %v1626, %v1635
    %v1638 = vsub.f32 %v1627, %v1636
    %v1639 = vmul.f32 %v1637, %v1637
    %v1640 = vmul.f32 %v1638, %v1638
    %v1641 = vsel %vm104, %v1639, 0.0
    %1642 = vadd.xlane.f32.xlu0 %v1641
    %v1643 = vpop.xlane.xlu0 %1642
    %v1644 = vsel %vm104, %v1640, 0.0
    %1645 = vadd.xlane.f32.xlu0 %v1644
    %v1646 = vpop.xlane.xlu0 %1645
    %v1647 = vmul.f32 %v1643, %v1634
    %v1648 = vmul.f32 %v1646, %v1634
    %v1649 = vadd.f32 %v1647, 1e-05
    %v1650 = vadd.f32 %v1648, 1e-05
    %v1651 = vrsqrt.pop %v1649
    %v1652 = vrsqrt.pop %v1650
    %v1653 = vmul.f32 %v1637, %v1651
    %v1654 = vmul.f32 %v1638, %v1652
    %v1655 = vlaneseq
    %v1656 = vshrl.u32 %v1655, 7
    %v1657 = vsub.s32 0, %v1656
    %v1658 = vrot.slane %v94, %v1657
    %v1659 = vmul.f32 %v1653, %v1658
    %v1660 = vmul.f32 %v1654, %v1658
    %v1661 = vlaneseq
    %v1662 = vshrl.u32 %v1661, 7
    %v1663 = vsub.s32 0, %v1662
    %v1664 = vrot.slane %v95, %v1663
    %v1665 = vadd.f32 %v1659, %v1664
    %v1666 = vadd.f32 %v1660, %v1664
    %v1667 = vlaneseq
    %v1668 = vshrl.u32 %v1667, 7
    %v1669 = vsub.s32 0, %v1668
    %v1670 = vrot.slane %v96, %v1669
    %v1672 = vsel %vm104, %v1665, 0
    %v1675 = vsel %vm104, %v1666, 0
    %1677 = vmatprep.subr.mxu0 0.0
    %1678 = vmatpush1.msra.mxu0 %v80
    %1679 = vmatprep.subr.mxu0 0.0
    %1680 = vmatpush1.msra.mxu0 %v81
    %1681 = vmatprep.subr.mxu0 0.0
    %1682 = vmatpush1.msra.mxu0 %v82
    %1683 = vmatprep.subr.mxu0 0.0
    %1684 = vmatpush1.msra.mxu0 %v83
    %1685 = vmatprep.subr.mxu0 0.0
    %1686 = vmatpush1.msra.mxu0 0.0
    %1687 = vmatprep.subr.mxu0 0.0
    %1688 = vmatpush1.msra.mxu0 0.0
    %1689 = vmatprep.subr.mxu0 0.0
    %1690 = vmatpush1.msra.mxu0 0.0
    %1691 = vmatprep.subr.mxu0 0.0
    %1692 = vmatpush1.msra.mxu0 0.0
    %1693 = vmatprep.subr.mxu0 0.0
    %1694 = vmatpush1.msra.mxu0 0.0
    %1695 = vmatprep.subr.mxu0 0.0
    %1696 = vmatpush1.msra.mxu0 0.0
    %1697 = vmatprep.subr.mxu0 0.0
    %1698 = vmatpush1.msra.mxu0 0.0
    %1699 = vmatprep.subr.mxu0 0.0
    %1700 = vmatpush1.msra.mxu0 0.0
    %1701 = vmatprep.subr.mxu0 0.0
    %1702 = vmatpush1.msra.mxu0 0.0
    %1703 = vmatprep.subr.mxu0 0.0
    %1704 = vmatpush1.msra.mxu0 0.0
    %1705 = vmatprep.subr.mxu0 0.0
    %1706 = vmatpush1.msra.mxu0 0.0
    %1707 = vmatprep.subr.mxu0 0.0
    %1708 = vmatpush1.msra.mxu0 0.0
    %1709 = vmatprep.subr.mxu0 0.0
    %1710 = vmatpush1.msra.mxu0 0.0
    %1711 = vmatprep.subr.mxu0 0.0
    %1712 = vmatpush1.msra.mxu0 0.0
    %1713 = vmatprep.subr.mxu0 0.0
    %1714 = vmatpush1.msra.mxu0 0.0
    %1715 = vmatprep.subr.mxu0 0.0
    %1716 = vmatpush1.msra.mxu0 0.0
    %1717 = vmatprep.subr.mxu0 0.0
    %1718 = vmatpush1.msra.mxu0 0.0
    %1719 = vmatprep.subr.mxu0 0.0
    %1720 = vmatpush1.msra.mxu0 0.0
    %1721 = vmatprep.subr.mxu0 0.0
    %1722 = vmatpush1.msra.mxu0 0.0
    %1723 = vmatprep.subr.mxu0 0.0
    %1724 = vmatpush1.msra.mxu0 0.0
    %1725 = vmatprep.subr.mxu0 0.0
    %1726 = vmatpush1.msra.mxu0 0.0
    %1727 = vmatprep.subr.mxu0 0.0
    %1728 = vmatpush1.msra.mxu0 0.0
    %1729 = vmatprep.subr.mxu0 0.0
    %1730 = vmatpush1.msra.mxu0 0.0
    %1731 = vmatprep.subr.mxu0 0.0
    %1732 = vmatpush1.msra.mxu0 0.0
    %1733 = vmatprep.subr.mxu0 0.0
    %1734 = vmatpush1.msra.mxu0 0.0
    %1735 = vmatprep.subr.mxu0 0.0
    %1736 = vmatpush1.msra.mxu0 0.0
    %1737 = vmatprep.subr.mxu0 0.0
    %1738 = vmatpush1.msra.mxu0 0.0
    %1739 = vmatprep.subr.mxu0 0.0
    %1740 = vmatpush1.msra.mxu0 0.0
    %1741 = vmatprep.mubr.f32.mxu0 0.0
    %1742 = vmatmul.mubr.f32.gmra.mrb[0].mxu0 %v1672
    %v1743 = vpop.f32.mrb[0].mxu0
    %v1744 = vadd.f32 %v1670, %v1743
    %v1745 = vpop.f32.mrb[0].mxu0
    %1746 = vmatprep.mubr.f32.mxu0 0.0
    %1747 = vmatmul.mubr.f32.gmra.mrb[0].mxu0 %v1675
    %v1748 = vpop.f32.mrb[0].mxu0
    %v1749 = vadd.f32 %v1670, %v1748
    %v1750 = vpop.f32.mrb[0].mxu0
    %1751 = vdwg.mxu0
    %v1752 = vmax.f32 %v1744, 0.0
    %v1753 = vmax.f32 %v1749, 0.0
    %v1754 = vlaneseq
    %v1755 = vshrl.u32 %v1754, 7
    %v1756 = vsub.s32 0, %v1755
    %v1757 = vrot.slane %v97, %v1756
    %vm1758 = vcmask 523264
    %v1760 = vsel %vm1758, %v1752, 0
    %v1763 = vsel %vm1758, %v1753, 0
    %1765 = vmatprep.subr.mxu0 0.0
    %1766 = vmatpush1.msra.mxu0 %v84
    %1767 = vmatprep.subr.mxu0 0.0
    %1768 = vmatpush1.msra.mxu0 %v85
    %1769 = vmatprep.subr.mxu0 0.0
    %1770 = vmatpush1.msra.mxu0 %v86
    %1771 = vmatprep.subr.mxu0 0.0
    %1772 = vmatpush1.msra.mxu0 %v87
    %1773 = vmatprep.subr.mxu0 0.0
    %1774 = vmatpush1.msra.mxu0 %v88
    %1775 = vmatprep.subr.mxu0 0.0
    %1776 = vmatpush1.msra.mxu0 %v89
    %1777 = vmatprep.subr.mxu0 0.0
    %1778 = vmatpush1.msra.mxu0 %v90
    %1779 = vmatprep.subr.mxu0 0.0
    %1780 = vmatpush1.msra.mxu0 %v91
    %1781 = vmatprep.subr.mxu0 0.0
    %1782 = vmatpush1.msra.mxu0 0.0
    %1783 = vmatprep.subr.mxu0 0.0
    %1784 = vmatpush1.msra.mxu0 0.0
    %1785 = vmatprep.subr.mxu0 0.0
    %1786 = vmatpush1.msra.mxu0 0.0
    %1787 = vmatprep.subr.mxu0 0.0
    %1788 = vmatpush1.msra.mxu0 0.0
    %1789 = vmatprep.subr.mxu0 0.0
    %1790 = vmatpush1.msra.mxu0 0.0
    %1791 = vmatprep.subr.mxu0 0.0
    %1792 = vmatpush1.msra.mxu0 0.0
    %1793 = vmatprep.subr.mxu0 0.0
    %1794 = vmatpush1.msra.mxu0 0.0
    %1795 = vmatprep.subr.mxu0 0.0
    %1796 = vmatpush1.msra.mxu0 0.0
    %1797 = vmatprep.subr.mxu0 0.0
    %1798 = vmatpush1.msra.mxu0 0.0
    %1799 = vmatprep.subr.mxu0 0.0
    %1800 = vmatpush1.msra.mxu0 0.0
    %1801 = vmatprep.subr.mxu0 0.0
    %1802 = vmatpush1.msra.mxu0 0.0
    %1803 = vmatprep.subr.mxu0 0.0
    %1804 = vmatpush1.msra.mxu0 0.0
    %1805 = vmatprep.subr.mxu0 0.0
    %1806 = vmatpush1.msra.mxu0 0.0
    %1807 = vmatprep.subr.mxu0 0.0
    %1808 = vmatpush1.msra.mxu0 0.0
    %1809 = vmatprep.subr.mxu0 0.0
    %1810 = vmatpush1.msra.mxu0 0.0
    %1811 = vmatprep.subr.mxu0 0.0
    %1812 = vmatpush1.msra.mxu0 0.0
    %1813 = vmatprep.subr.mxu0 0.0
    %1814 = vmatpush1.msra.mxu0 0.0
    %1815 = vmatprep.subr.mxu0 0.0
    %1816 = vmatpush1.msra.mxu0 0.0
    %1817 = vmatprep.subr.mxu0 0.0
    %1818 = vmatpush1.msra.mxu0 0.0
    %1819 = vmatprep.subr.mxu0 0.0
    %1820 = vmatpush1.msra.mxu0 0.0
    %1821 = vmatprep.subr.mxu0 0.0
    %1822 = vmatpush1.msra.mxu0 0.0
    %1823 = vmatprep.subr.mxu0 0.0
    %1824 = vmatpush1.msra.mxu0 0.0
    %1825 = vmatprep.subr.mxu0 0.0
    %1826 = vmatpush1.msra.mxu0 0.0
    %1827 = vmatprep.subr.mxu0 0.0
    %1828 = vmatpush1.msra.mxu0 0.0
    %1829 = vmatprep.mubr.f32.mxu0 0.0
    %1830 = vmatmul.mubr.f32.gmra.mrb[0].mxu0 %v1760
    %v1831 = vpop.f32.mrb[0].mxu0
    %v1832 = vadd.f32 %v1757, %v1831
    %v1833 = vpop.f32.mrb[0].mxu0
    %1834 = vmatprep.mubr.f32.mxu0 0.0
    %1835 = vmatmul.mubr.f32.gmra.mrb[0].mxu0 %v1763
    %v1836 = vpop.f32.mrb[0].mxu0
    %v1837 = vadd.f32 %v1757, %v1836
    %v1838 = vpop.f32.mrb[0].mxu0
    %1839 = vdwg.mxu0
    %v1840 = vadd.f32 %v1665, %v1832
    %v1841 = vadd.f32 %v1666, %v1837
    %v1842 = vsel %vm104, %v1840, 0.0
    %1843 = vadd.xlane.f32.xlu0 %v1842
    %v1844 = vpop.xlane.xlu0 %1843
    %v1845 = vsel %vm104, %v1841, 0.0
    %1846 = vadd.xlane.f32.xlu0 %v1845
    %v1847 = vpop.xlane.xlu0 %1846
    %v1848 = vmul.f32 %v1844, %v1634
    %v1849 = vmul.f32 %v1847, %v1634
    %v1850 = vsub.f32 %v1840, %v1848
    %v1851 = vsub.f32 %v1841, %v1849
    %v1852 = vmul.f32 %v1850, %v1850
    %v1853 = vmul.f32 %v1851, %v1851
    %v1854 = vsel %vm104, %v1852, 0.0
    %1855 = vadd.xlane.f32.xlu0 %v1854
    %v1856 = vpop.xlane.xlu0 %1855
    %v1857 = vsel %vm104, %v1853, 0.0
    %1858 = vadd.xlane.f32.xlu0 %v1857
    %v1859 = vpop.xlane.xlu0 %1858
    %v1860 = vmul.f32 %v1856, %v1634
    %v1861 = vmul.f32 %v1859, %v1634
    %v1862 = vadd.f32 %v1860, 1e-05
    %v1863 = vadd.f32 %v1861, 1e-05
    %v1864 = vrsqrt.pop %v1862
    %v1865 = vrsqrt.pop %v1863
    %v1866 = vmul.f32 %v1850, %v1864
    %v1867 = vmul.f32 %v1851, %v1865
    %v1868 = vlaneseq
    %v1869 = vshrl.u32 %v1868, 7
    %v1870 = vsub.s32 0, %v1869
    %v1871 = vrot.slane %v98, %v1870
    %v1872 = vmul.f32 %v1866, %v1871
    %v1873 = vmul.f32 %v1867, %v1871
    %v1874 = vlaneseq
    %v1875 = vshrl.u32 %v1874, 7
    %v1876 = vsub.s32 0, %v1875
    %v1877 = vrot.slane %v99, %v1876
    %v1878 = vadd.f32 %v1872, %v1877
    %v1879 = vadd.f32 %v1873, %v1877
    %v1880 = vld [vmem:[#allocation4 + $0xa0] sm:$0xff]
    %v1881 = vld [vmem:[#allocation4 + $0xa8] sm:$0xff]
    %v1882 = vld [vmem:[#allocation4 + $0xb0] sm:$0xff]
    %v1883 = vld [vmem:[#allocation4 + $0xb8] sm:$0xff]
    %v1884 = vld [vmem:[#allocation4 + $0xc0] sm:$0xff]
    %v1885 = vld [vmem:[#allocation4 + $0xc8] sm:$0xff]
    %v1886 = vld [vmem:[#allocation4 + $0xd0] sm:$0xff]
    %v1887 = vld [vmem:[#allocation4 + $0xd8] sm:$0xff]
    %v1888 = vld [vmem:[#allocation4 + $0xe0] sm:$0xff]
    %v1889 = vld [vmem:[#allocation4 + $0xe8] sm:$0xff]
    %v1890 = vld [vmem:[#allocation4 + $0xf0] sm:$0xff]
    %v1891 = vld [vmem:[#allocation4 + $0xf8] sm:$0xff]
    %v1892 = vld [vmem:[#allocation4 + $0x100] sm:$0xff]
    %v1893 = vld [vmem:[#allocation4 + $0x108] sm:$0xff]
    %v1894 = vld [vmem:[#allocation4 + $0x110] sm:$0xff]
    %v1895 = vld [vmem:[#allocation4 + $0x118] sm:$0xff]
    %v1896 = vld [vmem:[#allocation4 + $0x120] sm:$0xff]
    %v1897 = vld [vmem:[#allocation4 + $0x128] sm:$0xff]
    %v1898 = vld [vmem:[#allocation4 + $0x130] sm:$0xff]
    %v1899 = vld [vmem:[#allocation4 + $0x138] sm:$0xff]
    %v1900 = vld [vmem:[#allocation6 + $0x8] sm:$0x1]
    %v1901 = vld [vmem:[#allocation6 + $0x9] sm:$0x1]
    %v1902 = vld [vmem:[#allocation6 + $0xa] sm:$0x1]
    %v1903 = vld [vmem:[#allocation6 + $0xb] sm:$0x1]
    %v1904 = vld [vmem:[#allocation6 + $0xc] sm:$0x1]
    %v1905 = vld [vmem:[#allocation6 + $0xd] sm:$0x1]
    %v1906 = vld [vmem:[#allocation6 + $0xe] sm:$0x1]
    %v1907 = vld [vmem:[#allocation6 + $0xf] sm:$0x1]
    %v1908 = vlaneseq
    %v1909 = vshrl.u32 %v1908, 7
    %v1910 = vsub.s32 0, %v1909
    %v1911 = vrot.slane %v1900, %v1910
    %v1913 = vsel %vm104, %v1878, 0
    %v1916 = vsel %vm104, %v1879, 0
    %1918 = vmatprep.subr.mxu0 0.0
    %1919 = vmatpush1.msra.mxu0 %v1880
    %1920 = vmatprep.subr.mxu0 0.0
    %1921 = vmatpush1.msra.mxu0 %v1881
    %1922 = vmatprep.subr.mxu0 0.0
    %1923 = vmatpush1.msra.mxu0 %v1882
    %1924 = vmatprep.subr.mxu0 0.0
    %1925 = vmatpush1.msra.mxu0 %v1883
    %1926 = vmatprep.subr.mxu0 0.0
    %1927 = vmatpush1.msra.mxu0 0.0
    %1928 = vmatprep.subr.mxu0 0.0
    %1929 = vmatpush1.msra.mxu0 0.0
    %1930 = vmatprep.subr.mxu0 0.0
    %1931 = vmatpush1.msra.mxu0 0.0
    %1932 = vmatprep.subr.mxu0 0.0
    %1933 = vmatpush1.msra.mxu0 0.0
    %1934 = vmatprep.subr.mxu0 0.0
    %1935 = vmatpush1.msra.mxu0 0.0
    %1936 = vmatprep.subr.mxu0 0.0
    %1937 = vmatpush1.msra.mxu0 0.0
    %1938 = vmatprep.subr.mxu0 0.0
    %1939 = vmatpush1.msra.mxu0 0.0
    %1940 = vmatprep.subr.mxu0 0.0
    %1941 = vmatpush1.msra.mxu0 0.0
    %1942 = vmatprep.subr.mxu0 0.0
    %1943 = vmatpush1.msra.mxu0 0.0
    %1944 = vmatprep.subr.mxu0 0.0
    %1945 = vmatpush1.msra.mxu0 0.0
    %1946 = vmatprep.subr.mxu0 0.0
    %1947 = vmatpush1.msra.mxu0 0.0
    %1948 = vmatprep.subr.mxu0 0.0
    %1949 = vmatpush1.msra.mxu0 0.0
    %1950 = vmatprep.subr.mxu0 0.0
    %1951 = vmatpush1.msra.mxu0 0.0
    %1952 = vmatprep.subr.mxu0 0.0
    %1953 = vmatpush1.msra.mxu0 0.0
    %1954 = vmatprep.subr.mxu0 0.0
    %1955 = vmatpush1.msra.mxu0 0.0
    %1956 = vmatprep.subr.mxu0 0.0
    %1957 = vmatpush1.msra.mxu0 0.0
    %1958 = vmatprep.subr.mxu0 0.0
    %1959 = vmatpush1.msra.mxu0 0.0
    %1960 = vmatprep.subr.mxu0 0.0
    %1961 = vmatpush1.msra.mxu0 0.0
    %1962 = vmatprep.subr.mxu0 0.0
    %1963 = vmatpush1.msra.mxu0 0.0
    %1964 = vmatprep.subr.mxu0 0.0
    %1965 = vmatpush1.msra.mxu0 0.0
    %1966 = vmatprep.subr.mxu0 0.0
    %1967 = vmatpush1.msra.mxu0 0.0
    %1968 = vmatprep.subr.mxu0 0.0
    %1969 = vmatpush1.msra.mxu0 0.0
    %1970 = vmatprep.subr.mxu0 0.0
    %1971 = vmatpush1.msra.mxu0 0.0
    %1972 = vmatprep.subr.mxu0 0.0
    %1973 = vmatpush1.msra.mxu0 0.0
    %1974 = vmatprep.subr.mxu0 0.0
    %1975 = vmatpush1.msra.mxu0 0.0
    %1976 = vmatprep.subr.mxu0 0.0
    %1977 = vmatpush1.msra.mxu0 0.0
    %1978 = vmatprep.subr.mxu0 0.0
    %1979 = vmatpush1.msra.mxu0 0.0
    %1980 = vmatprep.subr.mxu0 0.0
    %1981 = vmatpush1.msra.mxu0 0.0
    %1982 = vmatprep.mubr.f32.mxu0 0.0
    %1983 = vmatmul.mubr.f32.gmra.mrb[0].mxu0 %v1913
    %v1984 = vpop.f32.mrb[0].mxu0
    %v1985 = vadd.f32 %v1911, %v1984
    %v1986 = vpop.f32.mrb[0].mxu0
    %1987 = vmatprep.mubr.f32.mxu0 0.0
    %1988 = vmatmul.mubr.f32.gmra.mrb[0].mxu0 %v1916
    %v1989 = vpop.f32.mrb[0].mxu0
    %v1990 = vadd.f32 %v1911, %v1989
    %v1991 = vpop.f32.mrb[0].mxu0
    %1992 = vdwg.mxu0
    %v1993 = vmul.f32 %v1985, 0.35355338
    %v1994 = vmul.f32 %v1990, 0.35355338
    %1996 = vrot.lane.b32.xlu0 %v1985, 96
    %v1997 = vpop.permute.xlu0 %1996
    %v1999 = vsel %vm191, %v1993, 0
    %v2001 = vsel %vm191, %v1997, 0
    %2003 = vmatprep.subr.mxu0 0.0
    %2004 = vmatpush1.xpose.msra.mxu0 %v2001
    %2005 = vmatprep.subr.mxu0 0.0
    %2006 = vmatpush1.xpose.msra.mxu0 0.0
    %2007 = vmatprep.subr.mxu0 0.0
    %2008 = vmatpush1.xpose.msra.mxu0 0.0
    %2009 = vmatprep.subr.mxu0 0.0
    %2010 = vmatpush1.xpose.msra.mxu0 0.0
    %2011 = vmatprep.subr.mxu0 0.0
    %2012 = vmatpush1.xpose.msra.mxu0 0.0
    %2013 = vmatprep.subr.mxu0 0.0
    %2014 = vmatpush1.xpose.msra.mxu0 0.0
    %2015 = vmatprep.subr.mxu0 0.0
    %2016 = vmatpush1.xpose.msra.mxu0 0.0
    %2017 = vmatprep.subr.mxu0 0.0
    %2018 = vmatpush1.xpose.msra.mxu0 0.0
    %2019 = vmatprep.subr.mxu0 0.0
    %2020 = vmatpush1.xpose.msra.mxu0 0.0
    %2021 = vmatprep.subr.mxu0 0.0
    %2022 = vmatpush1.xpose.msra.mxu0 0.0
    %2023 = vmatprep.subr.mxu0 0.0
    %2024 = vmatpush1.xpose.msra.mxu0 0.0
    %2025 = vmatprep.subr.mxu0 0.0
    %2026 = vmatpush1.xpose.msra.mxu0 0.0
    %2027 = vmatprep.subr.mxu0 0.0
    %2028 = vmatpush1.xpose.msra.mxu0 0.0
    %2029 = vmatprep.subr.mxu0 0.0
    %2030 = vmatpush1.xpose.msra.mxu0 0.0
    %2031 = vmatprep.subr.mxu0 0.0
    %2032 = vmatpush1.xpose.msra.mxu0 0.0
    %2033 = vmatprep.subr.mxu0 0.0
    %2034 = vmatpush1.xpose.msra.mxu0 0.0
    %2035 = vmatprep.subr.mxu0 0.0
    %2036 = vmatpush1.xpose.msra.mxu0 0.0
    %2037 = vmatprep.subr.mxu0 0.0
    %2038 = vmatpush1.xpose.msra.mxu0 0.0
    %2039 = vmatprep.subr.mxu0 0.0
    %2040 = vmatpush1.xpose.msra.mxu0 0.0
    %2041 = vmatprep.subr.mxu0 0.0
    %2042 = vmatpush1.xpose.msra.mxu0 0.0
    %2043 = vmatprep.subr.mxu0 0.0
    %2044 = vmatpush1.xpose.msra.mxu0 0.0
    %2045 = vmatprep.subr.mxu0 0.0
    %2046 = vmatpush1.xpose.msra.mxu0 0.0
    %2047 = vmatprep.subr.mxu0 0.0
    %2048 = vmatpush1.xpose.msra.mxu0 0.0
    %2049 = vmatprep.subr.mxu0 0.0
    %2050 = vmatpush1.xpose.msra.mxu0 0.0
    %2051 = vmatprep.subr.mxu0 0.0
    %2052 = vmatpush1.xpose.msra.mxu0 0.0
    %2053 = vmatprep.subr.mxu0 0.0
    %2054 = vmatpush1.xpose.msra.mxu0 0.0
    %2055 = vmatprep.subr.mxu0 0.0
    %2056 = vmatpush1.xpose.msra.mxu0 0.0
    %2057 = vmatprep.subr.mxu0 0.0
    %2058 = vmatpush1.xpose.msra.mxu0 0.0
    %2059 = vmatprep.subr.mxu0 0.0
    %2060 = vmatpush1.xpose.msra.mxu0 0.0
    %2061 = vmatprep.subr.mxu0 0.0
    %2062 = vmatpush1.xpose.msra.mxu0 0.0
    %2063 = vmatprep.subr.mxu0 0.0
    %2064 = vmatpush1.xpose.msra.mxu0 0.0
    %2065 = vmatprep.subr.mxu0 0.0
    %2066 = vmatpush1.xpose.msra.mxu0 0.0
    %2067 = vmatprep.mubr.f32.mxu0 0.0
    %2068 = vmatmul.mubr.f32.gmra.mrb[0].mxu0 %v1999
    %v2069 = vpop.f32.mrb[0].mxu0
    %v2070 = vadd.f32 %v64, %v2069
    %v2071 = vpop.f32.mrb[0].mxu0
    %2072 = vdwg.mxu0
    %v2073 = vsel %vm191, %v2070, -inf
    %2074 = vmax.xlane.f32.xlu0 %v2073
    %v2075 = vpop.xlane.xlu0 %2074
    %v2076 = vsub.f32 %v2070, %v2075
    %v2077 = vmul.f32 %v2076, 1.442695
    %v2078 = vpow.pop %v2077
    %v2079 = vsel %vm191, %v2078, 0.0
    %2080 = vadd.xlane.f32.xlu0 %v2079
    %v2081 = vpop.xlane.xlu0 %2080
    %v2082 = vrcp.pop %v2081
    %v2083 = vmul.f32 %v2078, %v2082
    %2084 = vrot.lane.b32.xlu0 %v1985, 64
    %v2085 = vpop.permute.xlu0 %2084
    %v2088 = vsel %vm191, %v2083, 0
    %2090 = vmatprep.subr.mxu0 0.0
    %2091 = vmatpush1.msra.mxu0 %v2085
    %2092 = vmatprep.subr.mxu0 0.0
    %2093 = vmatpush1.msra.mxu0 0.0
    %2094 = vmatprep.subr.mxu0 0.0
    %2095 = vmatpush1.msra.mxu0 0.0
    %2096 = vmatprep.subr.mxu0 0.0
    %2097 = vmatpush1.msra.mxu0 0.0
    %2098 = vmatprep.subr.mxu0 0.0
    %2099 = vmatpush1.msra.mxu0 0.0
    %2100 = vmatprep.subr.mxu0 0.0
    %2101 = vmatpush1.msra.mxu0 0.0
    %2102 = vmatprep.subr.mxu0 0.0
    %2103 = vmatpush1.msra.mxu0 0.0
    %2104 = vmatprep.subr.mxu0 0.0
    %2105 = vmatpush1.msra.mxu0 0.0
    %2106 = vmatprep.subr.mxu0 0.0
    %2107 = vmatpush1.msra.mxu0 0.0
    %2108 = vmatprep.subr.mxu0 0.0
    %2109 = vmatpush1.msra.mxu0 0.0
    %2110 = vmatprep.subr.mxu0 0.0
    %2111 = vmatpush1.msra.mxu0 0.0
    %2112 = vmatprep.subr.mxu0 0.0
    %2113 = vmatpush1.msra.mxu0 0.0
    %2114 = vmatprep.subr.mxu0 0.0
    %2115 = vmatpush1.msra.mxu0 0.0
    %2116 = vmatprep.subr.mxu0 0.0
    %2117 = vmatpush1.msra.mxu0 0.0
    %2118 = vmatprep.subr.mxu0 0.0
    %2119 = vmatpush1.msra.mxu0 0.0
    %2120 = vmatprep.subr.mxu0 0.0
    %2121 = vmatpush1.msra.mxu0 0.0
    %2122 = vmatprep.subr.mxu0 0.0
    %2123 = vmatpush1.msra.mxu0 0.0
    %2124 = vmatprep.subr.mxu0 0.0
    %2125 = vmatpush1.msra.mxu0 0.0
    %2126 = vmatprep.subr.mxu0 0.0
    %2127 = vmatpush1.msra.mxu0 0.0
    %2128 = vmatprep.subr.mxu0 0.0
    %2129 = vmatpush1.msra.mxu0 0.0
    %2130 = vmatprep.subr.mxu0 0.0
    %2131 = vmatpush1.msra.mxu0 0.0
    %2132 = vmatprep.subr.mxu0 0.0
    %2133 = vmatpush1.msra.mxu0 0.0
    %2134 = vmatprep.subr.mxu0 0.0
    %2135 = vmatpush1.msra.mxu0 0.0
    %2136 = vmatprep.subr.mxu0 0.0
    %2137 = vmatpush1.msra.mxu0 0.0
    %2138 = vmatprep.subr.mxu0 0.0
    %2139 = vmatpush1.msra.mxu0 0.0
    %2140 = vmatprep.subr.mxu0 0.0
    %2141 = vmatpush1.msra.mxu0 0.0
    %2142 = vmatprep.subr.mxu0 0.0
    %2143 = vmatpush1.msra.mxu0 0.0
    %2144 = vmatprep.subr.mxu0 0.0
    %2145 = vmatpush1.msra.mxu0 0.0
    %2146 = vmatprep.subr.mxu0 0.0
    %2147 = vmatpush1.msra.mxu0 0.0
    %2148 = vmatprep.subr.mxu0 0.0
    %2149 = vmatpush1.msra.mxu0 0.0
    %2150 = vmatprep.subr.mxu0 0.0
    %2151 = vmatpush1.msra.mxu0 0.0
    %2152 = vmatprep.subr.mxu0 0.0
    %2153 = vmatpush1.msra.mxu0 0.0
    %2154 = vmatprep.mubr.f32.mxu0 0.0
    %2155 = vmatmul.mubr.f32.gmra.mrb[0].mxu0 %v2088
    %v2156 = vpop.f32.mrb[0].mxu0
    %v2157 = vadd.f32 0.0, %v2156
    %v2158 = vpop.f32.mrb[0].mxu0
    %2159 = vdwg.mxu0
    %2160 = vrot.lane.b32.xlu0 %v1993, 120
    %v2161 = vpop.permute.xlu0 %2160
    %2162 = vrot.lane.b32.xlu0 %v1985, 88
    %v2163 = vpop.permute.xlu0 %2162
    %v2164 = vsel %vm191, %v2161, 0
    %v2166 = vsel %vm191, %v2163, 0
    %2168 = vmatprep.subr.mxu0 0.0
    %2169 = vmatpush1.xpose.msra.mxu0 %v2166
    %2170 = vmatprep.subr.mxu0 0.0
    %2171 = vmatpush1.xpose.msra.mxu0 0.0
    %2172 = vmatprep.subr.mxu0 0.0
    %2173 = vmatpush1.xpose.msra.mxu0 0.0
    %2174 = vmatprep.subr.mxu0 0.0
    %2175 = vmatpush1.xpose.msra.mxu0 0.0
    %2176 = vmatprep.subr.mxu0 0.0
    %2177 = vmatpush1.xpose.msra.mxu0 0.0
    %2178 = vmatprep.subr.mxu0 0.0
    %2179 = vmatpush1.xpose.msra.mxu0 0.0
    %2180 = vmatprep.subr.mxu0 0.0
    %2181 = vmatpush1.xpose.msra.mxu0 0.0
    %2182 = vmatprep.subr.mxu0 0.0
    %2183 = vmatpush1.xpose.msra.mxu0 0.0
    %2184 = vmatprep.subr.mxu0 0.0
    %2185 = vmatpush1.xpose.msra.mxu0 0.0
    %2186 = vmatprep.subr.mxu0 0.0
    %2187 = vmatpush1.xpose.msra.mxu0 0.0
    %2188 = vmatprep.subr.mxu0 0.0
    %2189 = vmatpush1.xpose.msra.mxu0 0.0
    %2190 = vmatprep.subr.mxu0 0.0
    %2191 = vmatpush1.xpose.msra.mxu0 0.0
    %2192 = vmatprep.subr.mxu0 0.0
    %2193 = vmatpush1.xpose.msra.mxu0 0.0
    %2194 = vmatprep.subr.mxu0 0.0
    %2195 = vmatpush1.xpose.msra.mxu0 0.0
    %2196 = vmatprep.subr.mxu0 0.0
    %2197 = vmatpush1.xpose.msra.mxu0 0.0
    %2198 = vmatprep.subr.mxu0 0.0
    %2199 = vmatpush1.xpose.msra.mxu0 0.0
    %2200 = vmatprep.subr.mxu0 0.0
    %2201 = vmatpush1.xpose.msra.mxu0 0.0
    %2202 = vmatprep.subr.mxu0 0.0
    %2203 = vmatpush1.xpose.msra.mxu0 0.0
    %2204 = vmatprep.subr.mxu0 0.0
    %2205 = vmatpush1.xpose.msra.mxu0 0.0
    %2206 = vmatprep.subr.mxu0 0.0
    %2207 = vmatpush1.xpose.msra.mxu0 0.0
    %2208 = vmatprep.subr.mxu0 0.0
    %2209 = vmatpush1.xpose.msra.mxu0 0.0
    %2210 = vmatprep.subr.mxu0 0.0
    %2211 = vmatpush1.xpose.msra.mxu0 0.0
    %2212 = vmatprep.subr.mxu0 0.0
    %2213 = vmatpush1.xpose.msra.mxu0 0.0
    %2214 = vmatprep.subr.mxu0 0.0
    %2215 = vmatpush1.xpose.msra.mxu0 0.0
    %2216 = vmatprep.subr.mxu0 0.0
    %2217 = vmatpush1.xpose.msra.mxu0 0.0
    %2218 = vmatprep.subr.mxu0 0.0
    %2219 = vmatpush1.xpose.msra.mxu0 0.0
    %2220 = vmatprep.subr.mxu0 0.0
    %2221 = vmatpush1.xpose.msra.mxu0 0.0
    %2222 = vmatprep.subr.mxu0 0.0
    %2223 = vmatpush1.xpose.msra.mxu0 0.0
    %2224 = vmatprep.subr.mxu0 0.0
    %2225 = vmatpush1.xpose.msra.mxu0 0.0
    %2226 = vmatprep.subr.mxu0 0.0
    %2227 = vmatpush1.xpose.msra.mxu0 0.0
    %2228 = vmatprep.subr.mxu0 0.0
    %2229 = vmatpush1.xpose.msra.mxu0 0.0
    %2230 = vmatprep.subr.mxu0 0.0
    %2231 = vmatpush1.xpose.msra.mxu0 0.0
    %2232 = vmatprep.mubr.f32.mxu0 0.0
    %2233 = vmatmul.mubr.f32.gmra.mrb[0].mxu0 %v2164
    %v2234 = vpop.f32.mrb[0].mxu0
    %v2235 = vadd.f32 %v64, %v2234
    %v2236 = vpop.f32.mrb[0].mxu0
    %2237 = vdwg.mxu0
    %v2238 = vsel %vm191, %v2235, -inf
    %2239 = vmax.xlane.f32.xlu0 %v2238
    %v2240 = vpop.xlane.xlu0 %2239
    %v2241 = vsub.f32 %v2235, %v2240
    %v2242 = vmul.f32 %v2241, 1.442695
    %v2243 = vpow.pop %v2242
    %v2244 = vsel %vm191, %v2243, 0.0
    %2245 = vadd.xlane.f32.xlu0 %v2244
    %v2246 = vpop.xlane.xlu0 %2245
    %v2247 = vrcp.pop %v2246
    %v2248 = vmul.f32 %v2243, %v2247
    %2249 = vrot.lane.b32.xlu0 %v1985, 56
    %v2250 = vpop.permute.xlu0 %2249
    %v2253 = vsel %vm191, %v2248, 0
    %2255 = vmatprep.subr.mxu0 0.0
    %2256 = vmatpush1.msra.mxu0 %v2250
    %2257 = vmatprep.subr.mxu0 0.0
    %2258 = vmatpush1.msra.mxu0 0.0
    %2259 = vmatprep.subr.mxu0 0.0
    %2260 = vmatpush1.msra.mxu0 0.0
    %2261 = vmatprep.subr.mxu0 0.0
    %2262 = vmatpush1.msra.mxu0 0.0
    %2263 = vmatprep.subr.mxu0 0.0
    %2264 = vmatpush1.msra.mxu0 0.0
    %2265 = vmatprep.subr.mxu0 0.0
    %2266 = vmatpush1.msra.mxu0 0.0
    %2267 = vmatprep.subr.mxu0 0.0
    %2268 = vmatpush1.msra.mxu0 0.0
    %2269 = vmatprep.subr.mxu0 0.0
    %2270 = vmatpush1.msra.mxu0 0.0
    %2271 = vmatprep.subr.mxu0 0.0
    %2272 = vmatpush1.msra.mxu0 0.0
    %2273 = vmatprep.subr.mxu0 0.0
    %2274 = vmatpush1.msra.mxu0 0.0
    %2275 = vmatprep.subr.mxu0 0.0
    %2276 = vmatpush1.msra.mxu0 0.0
    %2277 = vmatprep.subr.mxu0 0.0
    %2278 = vmatpush1.msra.mxu0 0.0
    %2279 = vmatprep.subr.mxu0 0.0
    %2280 = vmatpush1.msra.mxu0 0.0
    %2281 = vmatprep.subr.mxu0 0.0
    %2282 = vmatpush1.msra.mxu0 0.0
    %2283 = vmatprep.subr.mxu0 0.0
    %2284 = vmatpush1.msra.mxu0 0.0
    %2285 = vmatprep.subr.mxu0 0.0
    %2286 = vmatpush1.msra.mxu0 0.0
    %2287 = vmatprep.subr.mxu0 0.0
    %2288 = vmatpush1.msra.mxu0 0.0
    %2289 = vmatprep.subr.mxu0 0.0
    %2290 = vmatpush1.msra.mxu0 0.0
    %2291 = vmatprep.subr.mxu0 0.0
    %2292 = vmatpush1.msra.mxu0 0.0
    %2293 = vmatprep.subr.mxu0 0.0
    %2294 = vmatpush1.msra.mxu0 0.0
    %2295 = vmatprep.subr.mxu0 0.0
    %2296 = vmatpush1.msra.mxu0 0.0
    %2297 = vmatprep.subr.mxu0 0.0
    %2298 = vmatpush1.msra.mxu0 0.0
    %2299 = vmatprep.subr.mxu0 0.0
    %2300 = vmatpush1.msra.mxu0 0.0
    %2301 = vmatprep.subr.mxu0 0.0
    %2302 = vmatpush1.msra.mxu0 0.0
    %2303 = vmatprep.subr.mxu0 0.0
    %2304 = vmatpush1.msra.mxu0 0.0
    %2305 = vmatprep.subr.mxu0 0.0
    %2306 = vmatpush1.msra.mxu0 0.0
    %2307 = vmatprep.subr.mxu0 0.0
    %2308 = vmatpush1.msra.mxu0 0.0
    %2309 = vmatprep.subr.mxu0 0.0
    %2310 = vmatpush1.msra.mxu0 0.0
    %2311 = vmatprep.subr.mxu0 0.0
    %2312 = vmatpush1.msra.mxu0 0.0
    %2313 = vmatprep.subr.mxu0 0.0
    %2314 = vmatpush1.msra.mxu0 0.0
    %2315 = vmatprep.subr.mxu0 0.0
    %2316 = vmatpush1.msra.mxu0 0.0
    %2317 = vmatprep.subr.mxu0 0.0
    %2318 = vmatpush1.msra.mxu0 0.0
    %2319 = vmatprep.mubr.f32.mxu0 0.0
    %2320 = vmatmul.mubr.f32.gmra.mrb[0].mxu0 %v2253
    %v2321 = vpop.f32.mrb[0].mxu0
    %v2322 = vadd.f32 0.0, %v2321
    %v2323 = vpop.f32.mrb[0].mxu0
    %2324 = vdwg.mxu0
    %2325 = vrot.lane.b32.xlu0 %v1993, 112
    %v2326 = vpop.permute.xlu0 %2325
    %2327 = vrot.lane.b32.xlu0 %v1985, 80
    %v2328 = vpop.permute.xlu0 %2327
    %v2329 = vsel %vm191, %v2326, 0
    %v2331 = vsel %vm191, %v2328, 0
    %2333 = vmatprep.subr.mxu0 0.0
    %2334 = vmatpush1.xpose.msra.mxu0 %v2331
    %2335 = vmatprep.subr.mxu0 0.0
    %2336 = vmatpush1.xpose.msra.mxu0 0.0
    %2337 = vmatprep.subr.mxu0 0.0
    %2338 = vmatpush1.xpose.msra.mxu0 0.0
    %2339 = vmatprep.subr.mxu0 0.0
    %2340 = vmatpush1.xpose.msra.mxu0 0.0
    %2341 = vmatprep.subr.mxu0 0.0
    %2342 = vmatpush1.xpose.msra.mxu0 0.0
    %2343 = vmatprep.subr.mxu0 0.0
    %2344 = vmatpush1.xpose.msra.mxu0 0.0
    %2345 = vmatprep.subr.mxu0 0.0
    %2346 = vmatpush1.xpose.msra.mxu0 0.0
    %2347 = vmatprep.subr.mxu0 0.0
    %2348 = vmatpush1.xpose.msra.mxu0 0.0
    %2349 = vmatprep.subr.mxu0 0.0
    %2350 = vmatpush1.xpose.msra.mxu0 0.0
    %2351 = vmatprep.subr.mxu0 0.0
    %2352 = vmatpush1.xpose.msra.mxu0 0.0
    %2353 = vmatprep.subr.mxu0 0.0
    %2354 = vmatpush1.xpose.msra.mxu0 0.0
    %2355 = vmatprep.subr.mxu0 0.0
    %2356 = vmatpush1.xpose.msra.mxu0 0.0
    %2357 = vmatprep.subr.mxu0 0.0
    %2358 = vmatpush1.xpose.msra.mxu0 0.0
    %2359 = vmatprep.subr.mxu0 0.0
    %2360 = vmatpush1.xpose.msra.mxu0 0.0
    %2361 = vmatprep.subr.mxu0 0.0
    %2362 = vmatpush1.xpose.msra.mxu0 0.0
    %2363 = vmatprep.subr.mxu0 0.0
    %2364 = vmatpush1.xpose.msra.mxu0 0.0
    %2365 = vmatprep.subr.mxu0 0.0
    %2366 = vmatpush1.xpose.msra.mxu0 0.0
    %2367 = vmatprep.subr.mxu0 0.0
    %2368 = vmatpush1.xpose.msra.mxu0 0.0
    %2369 = vmatprep.subr.mxu0 0.0
    %2370 = vmatpush1.xpose.msra.mxu0 0.0
    %2371 = vmatprep.subr.mxu0 0.0
    %2372 = vmatpush1.xpose.msra.mxu0 0.0
    %2373 = vmatprep.subr.mxu0 0.0
    %2374 = vmatpush1.xpose.msra.mxu0 0.0
    %2375 = vmatprep.subr.mxu0 0.0
    %2376 = vmatpush1.xpose.msra.mxu0 0.0
    %2377 = vmatprep.subr.mxu0 0.0
    %2378 = vmatpush1.xpose.msra.mxu0 0.0
    %2379 = vmatprep.subr.mxu0 0.0
    %2380 = vmatpush1.xpose.msra.mxu0 0.0
    %2381 = vmatprep.subr.mxu0 0.0
    %2382 = vmatpush1.xpose.msra.mxu0 0.0
    %2383 = vmatprep.subr.mxu0 0.0
    %2384 = vmatpush1.xpose.msra.mxu0 0.0
    %2385 = vmatprep.subr.mxu0 0.0
    %2386 = vmatpush1.xpose.msra.mxu0 0.0
    %2387 = vmatprep.subr.mxu0 0.0
    %2388 = vmatpush1.xpose.msra.mxu0 0.0
    %2389 = vmatprep.subr.mxu0 0.0
    %2390 = vmatpush1.xpose.msra.mxu0 0.0
    %2391 = vmatprep.subr.mxu0 0.0
    %2392 = vmatpush1.xpose.msra.mxu0 0.0
    %2393 = vmatprep.subr.mxu0 0.0
    %2394 = vmatpush1.xpose.msra.mxu0 0.0
    %2395 = vmatprep.subr.mxu0 0.0
    %2396 = vmatpush1.xpose.msra.mxu0 0.0
    %2397 = vmatprep.mubr.f32.mxu0 0.0
    %2398 = vmatmul.mubr.f32.gmra.mrb[0].mxu0 %v2329
    %v2399 = vpop.f32.mrb[0].mxu0
    %v2400 = vadd.f32 %v64, %v2399
    %v2401 = vpop.f32.mrb[0].mxu0
    %2402 = vdwg.mxu0
    %v2403 = vsel %vm191, %v2400, -inf
    %2404 = vmax.xlane.f32.xlu0 %v2403
    %v2405 = vpop.xlane.xlu0 %2404
    %v2406 = vsub.f32 %v2400, %v2405
    %v2407 = vmul.f32 %v2406, 1.442695
    %v2408 = vpow.pop %v2407
    %v2409 = vsel %vm191, %v2408, 0.0
    %2410 = vadd.xlane.f32.xlu0 %v2409
    %v2411 = vpop.xlane.xlu0 %2410
    %v2412 = vrcp.pop %v2411
    %v2413 = vmul.f32 %v2408, %v2412
    %2414 = vrot.lane.b32.xlu0 %v1985, 48
    %v2415 = vpop.permute.xlu0 %2414
    %v2418 = vsel %vm191, %v2413, 0
    %2420 = vmatprep.subr.mxu0 0.0
    %2421 = vmatpush1.msra.mxu0 %v2415
    %2422 = vmatprep.subr.mxu0 0.0
    %2423 = vmatpush1.msra.mxu0 0.0
    %2424 = vmatprep.subr.mxu0 0.0
    %2425 = vmatpush1.msra.mxu0 0.0
    %2426 = vmatprep.subr.mxu0 0.0
    %2427 = vmatpush1.msra.mxu0 0.0
    %2428 = vmatprep.subr.mxu0 0.0
    %2429 = vmatpush1.msra.mxu0 0.0
    %2430 = vmatprep.subr.mxu0 0.0
    %2431 = vmatpush1.msra.mxu0 0.0
    %2432 = vmatprep.subr.mxu0 0.0
    %2433 = vmatpush1.msra.mxu0 0.0
    %2434 = vmatprep.subr.mxu0 0.0
    %2435 = vmatpush1.msra.mxu0 0.0
    %2436 = vmatprep.subr.mxu0 0.0
    %2437 = vmatpush1.msra.mxu0 0.0
    %2438 = vmatprep.subr.mxu0 0.0
    %2439 = vmatpush1.msra.mxu0 0.0
    %2440 = vmatprep.subr.mxu0 0.0
    %2441 = vmatpush1.msra.mxu0 0.0
    %2442 = vmatprep.subr.mxu0 0.0
    %2443 = vmatpush1.msra.mxu0 0.0
    %2444 = vmatprep.subr.mxu0 0.0
    %2445 = vmatpush1.msra.mxu0 0.0
    %2446 = vmatprep.subr.mxu0 0.0
    %2447 = vmatpush1.msra.mxu0 0.0
    %2448 = vmatprep.subr.mxu0 0.0
    %2449 = vmatpush1.msra.mxu0 0.0
    %2450 = vmatprep.subr.mxu0 0.0
    %2451 = vmatpush1.msra.mxu0 0.0
    %2452 = vmatprep.subr.mxu0 0.0
    %2453 = vmatpush1.msra.mxu0 0.0
    %2454 = vmatprep.subr.mxu0 0.0
    %2455 = vmatpush1.msra.mxu0 0.0
    %2456 = vmatprep.subr.mxu0 0.0
    %2457 = vmatpush1.msra.mxu0 0.0
    %2458 = vmatprep.subr.mxu0 0.0
    %2459 = vmatpush1.msra.mxu0 0.0
    %2460 = vmatprep.subr.mxu0 0.0
    %2461 = vmatpush1.msra.mxu0 0.0
    %2462 = vmatprep.subr.mxu0 0.0
    %2463 = vmatpush1.msra.mxu0 0.0
    %2464 = vmatprep.subr.mxu0 0.0
    %2465 = vmatpush1.msra.mxu0 0.0
    %2466 = vmatprep.subr.mxu0 0.0
    %2467 = vmatpush1.msra.mxu0 0.0
    %2468 = vmatprep.subr.mxu0 0.0
    %2469 = vmatpush1.msra.mxu0 0.0
    %2470 = vmatprep.subr.mxu0 0.0
    %2471 = vmatpush1.msra.mxu0 0.0
    %2472 = vmatprep.subr.mxu0 0.0
    %2473 = vmatpush1.msra.mxu0 0.0
    %2474 = vmatprep.subr.mxu0 0.0
    %2475 = vmatpush1.msra.mxu0 0.0
    %2476 = vmatprep.subr.mxu0 0.0
    %2477 = vmatpush1.msra.mxu0 0.0
    %2478 = vmatprep.subr.mxu0 0.0
    %2479 = vmatpush1.msra.mxu0 0.0
    %2480 = vmatprep.subr.mxu0 0.0
    %2481 = vmatpush1.msra.mxu0 0.0
    %2482 = vmatprep.subr.mxu0 0.0
    %2483 = vmatpush1.msra.mxu0 0.0
    %2484 = vmatprep.mubr.f32.mxu0 0.0
    %2485 = vmatmul.mubr.f32.gmra.mrb[0].mxu0 %v2418
    %v2486 = vpop.f32.mrb[0].mxu0
    %v2487 = vadd.f32 0.0, %v2486
    %v2488 = vpop.f32.mrb[0].mxu0
    %2489 = vdwg.mxu0
    %2490 = vrot.lane.b32.xlu0 %v1993, 104
    %v2491 = vpop.permute.xlu0 %2490
    %2492 = vrot.lane.b32.xlu0 %v1985, 72
    %v2493 = vpop.permute.xlu0 %2492
    %v2494 = vsel %vm191, %v2491, 0
    %v2496 = vsel %vm191, %v2493, 0
    %2498 = vmatprep.subr.mxu0 0.0
    %2499 = vmatpush1.xpose.msra.mxu0 %v2496
    %2500 = vmatprep.subr.mxu0 0.0
    %2501 = vmatpush1.xpose.msra.mxu0 0.0
    %2502 = vmatprep.subr.mxu0 0.0
    %2503 = vmatpush1.xpose.msra.mxu0 0.0
    %2504 = vmatprep.subr.mxu0 0.0
    %2505 = vmatpush1.xpose.msra.mxu0 0.0
    %2506 = vmatprep.subr.mxu0 0.0
    %2507 = vmatpush1.xpose.msra.mxu0 0.0
    %2508 = vmatprep.subr.mxu0 0.0
    %2509 = vmatpush1.xpose.msra.mxu0 0.0
    %2510 = vmatprep.subr.mxu0 0.0
    %2511 = vmatpush1.xpose.msra.mxu0 0.0
    %2512 = vmatprep.subr.mxu0 0.0
    %2513 = vmatpush1.xpose.msra.mxu0 0.0
    %2514 = vmatprep.subr.mxu0 0.0
    %2515 = vmatpush1.xpose.msra.mxu0 0.0
    %2516 = vmatprep.subr.mxu0 0.0
    %2517 = vmatpush1.xpose.msra.mxu0 0.0
    %2518 = vmatprep.subr.mxu0 0.0
    %2519 = vmatpush1.xpose.msra.mxu0 0.0
    %2520 = vmatprep.subr.mxu0 0.0
    %2521 = vmatpush1.xpose.msra.mxu0 0.0
    %2522 = vmatprep.subr.mxu0 0.0
    %2523 = vmatpush1.xpose.msra.mxu0 0.0
    %2524 = vmatprep.subr.mxu0 0.0
    %2525 = vmatpush1.xpose.msra.mxu0 0.0
    %2526 = vmatprep.subr.mxu0 0.0
    %2527 = vmatpush1.xpose.msra.mxu0 0.0
    %2528 = vmatprep.subr.mxu0 0.0
    %2529 = vmatpush1.xpose.msra.mxu0 0.0
    %2530 = vmatprep.subr.mxu0 0.0
    %2531 = vmatpush1.xpose.msra.mxu0 0.0
    %2532 = vmatprep.subr.mxu0 0.0
    %2533 = vmatpush1.xpose.msra.mxu0 0.0
    %2534 = vmatprep.subr.mxu0 0.0
    %2535 = vmatpush1.xpose.msra.mxu0 0.0
    %2536 = vmatprep.subr.mxu0 0.0
    %2537 = vmatpush1.xpose.msra.mxu0 0.0
    %2538 = vmatprep.subr.mxu0 0.0
    %2539 = vmatpush1.xpose.msra.mxu0 0.0
    %2540 = vmatprep.subr.mxu0 0.0
    %2541 = vmatpush1.xpose.msra.mxu0 0.0
    %2542 = vmatprep.subr.mxu0 0.0
    %2543 = vmatpush1.xpose.msra.mxu0 0.0
    %2544 = vmatprep.subr.mxu0 0.0
    %2545 = vmatpush1.xpose.msra.mxu0 0.0
    %2546 = vmatprep.subr.mxu0 0.0
    %2547 = vmatpush1.xpose.msra.mxu0 0.0
    %2548 = vmatprep.subr.mxu0 0.0
    %2549 = vmatpush1.xpose.msra.mxu0 0.0
    %2550 = vmatprep.subr.mxu0 0.0
    %2551 = vmatpush1.xpose.msra.mxu0 0.0
    %2552 = vmatprep.subr.mxu0 0.0
    %2553 = vmatpush1.xpose.msra.mxu0 0.0
    %2554 = vmatprep.subr.mxu0 0.0
    %2555 = vmatpush1.xpose.msra.mxu0 0.0
    %2556 = vmatprep.subr.mxu0 0.0
    %2557 = vmatpush1.xpose.msra.mxu0 0.0
    %2558 = vmatprep.subr.mxu0 0.0
    %2559 = vmatpush1.xpose.msra.mxu0 0.0
    %2560 = vmatprep.subr.mxu0 0.0
    %2561 = vmatpush1.xpose.msra.mxu0 0.0
    %2562 = vmatprep.mubr.f32.mxu0 0.0
    %2563 = vmatmul.mubr.f32.gmra.mrb[0].mxu0 %v2494
    %v2564 = vpop.f32.mrb[0].mxu0
    %v2565 = vadd.f32 %v64, %v2564
    %v2566 = vpop.f32.mrb[0].mxu0
    %2567 = vdwg.mxu0
    %v2568 = vsel %vm191, %v2565, -inf
    %2569 = vmax.xlane.f32.xlu0 %v2568
    %v2570 = vpop.xlane.xlu0 %2569
    %v2571 = vsub.f32 %v2565, %v2570
    %v2572 = vmul.f32 %v2571, 1.442695
    %v2573 = vpow.pop %v2572
    %v2574 = vsel %vm191, %v2573, 0.0
    %2575 = vadd.xlane.f32.xlu0 %v2574
    %v2576 = vpop.xlane.xlu0 %2575
    %v2577 = vrcp.pop %v2576
    %v2578 = vmul.f32 %v2573, %v2577
    %2579 = vrot.lane.b32.xlu0 %v1985, 40
    %v2580 = vpop.permute.xlu0 %2579
    %v2583 = vsel %vm191, %v2578, 0
    %2585 = vmatprep.subr.mxu0 0.0
    %2586 = vmatpush1.msra.mxu0 %v2580
    %2587 = vmatprep.subr.mxu0 0.0
    %2588 = vmatpush1.msra.mxu0 0.0
    %2589 = vmatprep.subr.mxu0 0.0
    %2590 = vmatpush1.msra.mxu0 0.0
    %2591 = vmatprep.subr.mxu0 0.0
    %2592 = vmatpush1.msra.mxu0 0.0
    %2593 = vmatprep.subr.mxu0 0.0
    %2594 = vmatpush1.msra.mxu0 0.0
    %2595 = vmatprep.subr.mxu0 0.0
    %2596 = vmatpush1.msra.mxu0 0.0
    %2597 = vmatprep.subr.mxu0 0.0
    %2598 = vmatpush1.msra.mxu0 0.0
    %2599 = vmatprep.subr.mxu0 0.0
    %2600 = vmatpush1.msra.mxu0 0.0
    %2601 = vmatprep.subr.mxu0 0.0
    %2602 = vmatpush1.msra.mxu0 0.0
    %2603 = vmatprep.subr.mxu0 0.0
    %2604 = vmatpush1.msra.mxu0 0.0
    %2605 = vmatprep.subr.mxu0 0.0
    %2606 = vmatpush1.msra.mxu0 0.0
    %2607 = vmatprep.subr.mxu0 0.0
    %2608 = vmatpush1.msra.mxu0 0.0
    %2609 = vmatprep.subr.mxu0 0.0
    %2610 = vmatpush1.msra.mxu0 0.0
    %2611 = vmatprep.subr.mxu0 0.0
    %2612 = vmatpush1.msra.mxu0 0.0
    %2613 = vmatprep.subr.mxu0 0.0
    %2614 = vmatpush1.msra.mxu0 0.0
    %2615 = vmatprep.subr.mxu0 0.0
    %2616 = vmatpush1.msra.mxu0 0.0
    %2617 = vmatprep.subr.mxu0 0.0
    %2618 = vmatpush1.msra.mxu0 0.0
    %2619 = vmatprep.subr.mxu0 0.0
    %2620 = vmatpush1.msra.mxu0 0.0
    %2621 = vmatprep.subr.mxu0 0.0
    %2622 = vmatpush1.msra.mxu0 0.0
    %2623 = vmatprep.subr.mxu0 0.0
    %2624 = vmatpush1.msra.mxu0 0.0
    %2625 = vmatprep.subr.mxu0 0.0
    %2626 = vmatpush1.msra.mxu0 0.0
    %2627 = vmatprep.subr.mxu0 0.0
    %2628 = vmatpush1.msra.mxu0 0.0
    %2629 = vmatprep.subr.mxu0 0.0
    %2630 = vmatpush1.msra.mxu0 0.0
    %2631 = vmatprep.subr.mxu0 0.0
    %2632 = vmatpush1.msra.mxu0 0.0
    %2633 = vmatprep.subr.mxu0 0.0
    %2634 = vmatpush1.msra.mxu0 0.0
    %2635 = vmatprep.subr.mxu0 0.0
    %2636 = vmatpush1.msra.mxu0 0.0
    %2637 = vmatprep.subr.mxu0 0.0
    %2638 = vmatpush1.msra.mxu0 0.0
    %2639 = vmatprep.subr.mxu0 0.0
    %2640 = vmatpush1.msra.mxu0 0.0
    %2641 = vmatprep.subr.mxu0 0.0
    %2642 = vmatpush1.msra.mxu0 0.0
    %2643 = vmatprep.subr.mxu0 0.0
    %2644 = vmatpush1.msra.mxu0 0.0
    %2645 = vmatprep.subr.mxu0 0.0
    %2646 = vmatpush1.msra.mxu0 0.0
    %2647 = vmatprep.subr.mxu0 0.0
    %2648 = vmatpush1.msra.mxu0 0.0
    %2649 = vmatprep.mubr.f32.mxu0 0.0
    %2650 = vmatmul.mubr.f32.gmra.mrb[0].mxu0 %v2583
    %v2651 = vpop.f32.mrb[0].mxu0
    %v2652 = vadd.f32 0.0, %v2651
    %v2653 = vpop.f32.mrb[0].mxu0
    %2654 = vdwg.mxu0
    %2656 = vrot.lane.b32.xlu0 %v2322, 8
    %v2657 = vpop.permute.xlu0 %2656
    %2660 = vrot.lane.b32.xlu0 %v2487, 16
    %v2661 = vpop.permute.xlu0 %2660
    %2664 = vrot.lane.b32.xlu0 %v2652, 24
    %v2665 = vpop.permute.xlu0 %2664
    %v2667 = vsel %vm191, %v2157, %v2657
    %v2668 = vsel %vm862, %v2667, %v2661
    %v2669 = vsel %vm864, %v2668, %v2665
    %2671 = vrot.lane.b32.xlu0 %v1990, 96
    %v2672 = vpop.permute.xlu0 %2671
    %v2674 = vsel %vm191, %v1994, 0
    %v2676 = vsel %vm191, %v2672, 0
    %2678 = vmatprep.subr.mxu0 0.0
    %2679 = vmatpush1.xpose.msra.mxu0 %v2676
    %2680 = vmatprep.subr.mxu0 0.0
    %2681 = vmatpush1.xpose.msra.mxu0 0.0
    %2682 = vmatprep.subr.mxu0 0.0
    %2683 = vmatpush1.xpose.msra.mxu0 0.0
    %2684 = vmatprep.subr.mxu0 0.0
    %2685 = vmatpush1.xpose.msra.mxu0 0.0
    %2686 = vmatprep.subr.mxu0 0.0
    %2687 = vmatpush1.xpose.msra.mxu0 0.0
    %2688 = vmatprep.subr.mxu0 0.0
    %2689 = vmatpush1.xpose.msra.mxu0 0.0
    %2690 = vmatprep.subr.mxu0 0.0
    %2691 = vmatpush1.xpose.msra.mxu0 0.0
    %2692 = vmatprep.subr.mxu0 0.0
    %2693 = vmatpush1.xpose.msra.mxu0 0.0
    %2694 = vmatprep.subr.mxu0 0.0
    %2695 = vmatpush1.xpose.msra.mxu0 0.0
    %2696 = vmatprep.subr.mxu0 0.0
    %2697 = vmatpush1.xpose.msra.mxu0 0.0
    %2698 = vmatprep.subr.mxu0 0.0
    %2699 = vmatpush1.xpose.msra.mxu0 0.0
    %2700 = vmatprep.subr.mxu0 0.0
    %2701 = vmatpush1.xpose.msra.mxu0 0.0
    %2702 = vmatprep.subr.mxu0 0.0
    %2703 = vmatpush1.xpose.msra.mxu0 0.0
    %2704 = vmatprep.subr.mxu0 0.0
    %2705 = vmatpush1.xpose.msra.mxu0 0.0
    %2706 = vmatprep.subr.mxu0 0.0
    %2707 = vmatpush1.xpose.msra.mxu0 0.0
    %2708 = vmatprep.subr.mxu0 0.0
    %2709 = vmatpush1.xpose.msra.mxu0 0.0
    %2710 = vmatprep.subr.mxu0 0.0
    %2711 = vmatpush1.xpose.msra.mxu0 0.0
    %2712 = vmatprep.subr.mxu0 0.0
    %2713 = vmatpush1.xpose.msra.mxu0 0.0
    %2714 = vmatprep.subr.mxu0 0.0
    %2715 = vmatpush1.xpose.msra.mxu0 0.0
    %2716 = vmatprep.subr.mxu0 0.0
    %2717 = vmatpush1.xpose.msra.mxu0 0.0
    %2718 = vmatprep.subr.mxu0 0.0
    %2719 = vmatpush1.xpose.msra.mxu0 0.0
    %2720 = vmatprep.subr.mxu0 0.0
    %2721 = vmatpush1.xpose.msra.mxu0 0.0
    %2722 = vmatprep.subr.mxu0 0.0
    %2723 = vmatpush1.xpose.msra.mxu0 0.0
    %2724 = vmatprep.subr.mxu0 0.0
    %2725 = vmatpush1.xpose.msra.mxu0 0.0
    %2726 = vmatprep.subr.mxu0 0.0
    %2727 = vmatpush1.xpose.msra.mxu0 0.0
    %2728 = vmatprep.subr.mxu0 0.0
    %2729 = vmatpush1.xpose.msra.mxu0 0.0
    %2730 = vmatprep.subr.mxu0 0.0
    %2731 = vmatpush1.xpose.msra.mxu0 0.0
    %2732 = vmatprep.subr.mxu0 0.0
    %2733 = vmatpush1.xpose.msra.mxu0 0.0
    %2734 = vmatprep.subr.mxu0 0.0
    %2735 = vmatpush1.xpose.msra.mxu0 0.0
    %2736 = vmatprep.subr.mxu0 0.0
    %2737 = vmatpush1.xpose.msra.mxu0 0.0
    %2738 = vmatprep.subr.mxu0 0.0
    %2739 = vmatpush1.xpose.msra.mxu0 0.0
    %2740 = vmatprep.subr.mxu0 0.0
    %2741 = vmatpush1.xpose.msra.mxu0 0.0
    %2742 = vmatprep.mubr.f32.mxu0 0.0
    %2743 = vmatmul.mubr.f32.gmra.mrb[0].mxu0 %v2674
    %v2744 = vpop.f32.mrb[0].mxu0
    %v2745 = vadd.f32 %v69, %v2744
    %v2746 = vpop.f32.mrb[0].mxu0
    %2747 = vdwg.mxu0
    %v2748 = vsel %vm191, %v2745, -inf
    %2749 = vmax.xlane.f32.xlu0 %v2748
    %v2750 = vpop.xlane.xlu0 %2749
    %v2751 = vsub.f32 %v2745, %v2750
    %v2752 = vmul.f32 %v2751, 1.442695
    %v2753 = vpow.pop %v2752
    %v2754 = vsel %vm191, %v2753, 0.0
    %2755 = vadd.xlane.f32.xlu0 %v2754
    %v2756 = vpop.xlane.xlu0 %2755
    %v2757 = vrcp.pop %v2756
    %v2758 = vmul.f32 %v2753, %v2757
    %2759 = vrot.lane.b32.xlu0 %v1990, 64
    %v2760 = vpop.permute.xlu0 %2759
    %v2763 = vsel %vm191, %v2758, 0
    %2765 = vmatprep.subr.mxu0 0.0
    %2766 = vmatpush1.msra.mxu0 %v2760
    %2767 = vmatprep.subr.mxu0 0.0
    %2768 = vmatpush1.msra.mxu0 0.0
    %2769 = vmatprep.subr.mxu0 0.0
    %2770 = vmatpush1.msra.mxu0 0.0
    %2771 = vmatprep.subr.mxu0 0.0
    %2772 = vmatpush1.msra.mxu0 0.0
    %2773 = vmatprep.subr.mxu0 0.0
    %2774 = vmatpush1.msra.mxu0 0.0
    %2775 = vmatprep.subr.mxu0 0.0
    %2776 = vmatpush1.msra.mxu0 0.0
    %2777 = vmatprep.subr.mxu0 0.0
    %2778 = vmatpush1.msra.mxu0 0.0
    %2779 = vmatprep.subr.mxu0 0.0
    %2780 = vmatpush1.msra.mxu0 0.0
    %2781 = vmatprep.subr.mxu0 0.0
    %2782 = vmatpush1.msra.mxu0 0.0
    %2783 = vmatprep.subr.mxu0 0.0
    %2784 = vmatpush1.msra.mxu0 0.0
    %2785 = vmatprep.subr.mxu0 0.0
    %2786 = vmatpush1.msra.mxu0 0.0
    %2787 = vmatprep.subr.mxu0 0.0
    %2788 = vmatpush1.msra.mxu0 0.0
    %2789 = vmatprep.subr.mxu0 0.0
    %2790 = vmatpush1.msra.mxu0 0.0
    %2791 = vmatprep.subr.mxu0 0.0
    %2792 = vmatpush1.msra.mxu0 0.0
    %2793 = vmatprep.subr.mxu0 0.0
    %2794 = vmatpush1.msra.mxu0 0.0
    %2795 = vmatprep.subr.mxu0 0.0
    %2796 = vmatpush1.msra.mxu0 0.0
    %2797 = vmatprep.subr.mxu0 0.0
    %2798 = vmatpush1.msra.mxu0 0.0
    %2799 = vmatprep.subr.mxu0 0.0
    %2800 = vmatpush1.msra.mxu0 0.0
    %2801 = vmatprep.subr.mxu0 0.0
    %2802 = vmatpush1.msra.mxu0 0.0
    %2803 = vmatprep.subr.mxu0 0.0
    %2804 = vmatpush1.msra.mxu0 0.0
    %2805 = vmatprep.subr.mxu0 0.0
    %2806 = vmatpush1.msra.mxu0 0.0
    %2807 = vmatprep.subr.mxu0 0.0
    %2808 = vmatpush1.msra.mxu0 0.0
    %2809 = vmatprep.subr.mxu0 0.0
    %2810 = vmatpush1.msra.mxu0 0.0
    %2811 = vmatprep.subr.mxu0 0.0
    %2812 = vmatpush1.msra.mxu0 0.0
    %2813 = vmatprep.subr.mxu0 0.0
    %2814 = vmatpush1.msra.mxu0 0.0
    %2815 = vmatprep.subr.mxu0 0.0
    %2816 = vmatpush1.msra.mxu0 0.0
    %2817 = vmatprep.subr.mxu0 0.0
    %2818 = vmatpush1.msra.mxu0 0.0
    %2819 = vmatprep.subr.mxu0 0.0
    %2820 = vmatpush1.msra.mxu0 0.0
    %2821 = vmatprep.subr.mxu0 0.0
    %2822 = vmatpush1.msra.mxu0 0.0
    %2823 = vmatprep.subr.mxu0 0.0
    %2824 = vmatpush1.msra.mxu0 0.0
    %2825 = vmatprep.subr.mxu0 0.0
    %2826 = vmatpush1.msra.mxu0 0.0
    %2827 = vmatprep.subr.mxu0 0.0
    %2828 = vmatpush1.msra.mxu0 0.0
    %2829 = vmatprep.mubr.f32.mxu0 0.0
    %2830 = vmatmul.mubr.f32.gmra.mrb[0].mxu0 %v2763
    %v2831 = vpop.f32.mrb[0].mxu0
    %v2832 = vadd.f32 0.0, %v2831
    %v2833 = vpop.f32.mrb[0].mxu0
    %2834 = vdwg.mxu0
    %2835 = vrot.lane.b32.xlu0 %v1994, 120
    %v2836 = vpop.permute.xlu0 %2835
    %2837 = vrot.lane.b32.xlu0 %v1990, 88
    %v2838 = vpop.permute.xlu0 %2837
    %v2839 = vsel %vm191, %v2836, 0
    %v2841 = vsel %vm191, %v2838, 0
    %2843 = vmatprep.subr.mxu0 0.0
    %2844 = vmatpush1.xpose.msra.mxu0 %v2841
    %2845 = vmatprep.subr.mxu0 0.0
    %2846 = vmatpush1.xpose.msra.mxu0 0.0
    %2847 = vmatprep.subr.mxu0 0.0
    %2848 = vmatpush1.xpose.msra.mxu0 0.0
    %2849 = vmatprep.subr.mxu0 0.0
    %2850 = vmatpush1.xpose.msra.mxu0 0.0
    %2851 = vmatprep.subr.mxu0 0.0
    %2852 = vmatpush1.xpose.msra.mxu0 0.0
    %2853 = vmatprep.subr.mxu0 0.0
    %2854 = vmatpush1.xpose.msra.mxu0 0.0
    %2855 = vmatprep.subr.mxu0 0.0
    %2856 = vmatpush1.xpose.msra.mxu0 0.0
    %2857 = vmatprep.subr.mxu0 0.0
    %2858 = vmatpush1.xpose.msra.mxu0 0.0
    %2859 = vmatprep.subr.mxu0 0.0
    %2860 = vmatpush1.xpose.msra.mxu0 0.0
    %2861 = vmatprep.subr.mxu0 0.0
    %2862 = vmatpush1.xpose.msra.mxu0 0.0
    %2863 = vmatprep.subr.mxu0 0.0
    %2864 = vmatpush1.xpose.msra.mxu0 0.0
    %2865 = vmatprep.subr.mxu0 0.0
    %2866 = vmatpush1.xpose.msra.mxu0 0.0
    %2867 = vmatprep.subr.mxu0 0.0
    %2868 = vmatpush1.xpose.msra.mxu0 0.0
    %2869 = vmatprep.subr.mxu0 0.0
    %2870 = vmatpush1.xpose.msra.mxu0 0.0
    %2871 = vmatprep.subr.mxu0 0.0
    %2872 = vmatpush1.xpose.msra.mxu0 0.0
    %2873 = vmatprep.subr.mxu0 0.0
    %2874 = vmatpush1.xpose.msra.mxu0 0.0
    %2875 = vmatprep.subr.mxu0 0.0
    %2876 = vmatpush1.xpose.msra.mxu0 0.0
    %2877 = vmatprep.subr.mxu0 0.0
    %2878 = vmatpush1.xpose.msra.mxu0 0.0
    %2879 = vmatprep.subr.mxu0 0.0
    %2880 = vmatpush1.xpose.msra.mxu0 0.0
    %2881 = vmatprep.subr.mxu0 0.0
    %2882 = vmatpush1.xpose.msra.mxu0 0.0
    %2883 = vmatprep.subr.mxu0 0.0
    %2884 = vmatpush1.xpose.msra.mxu0 0.0
    %2885 = vmatprep.subr.mxu0 0.0
    %2886 = vmatpush1.xpose.msra.mxu0 0.0
    %2887 = vmatprep.subr.mxu0 0.0
    %2888 = vmatpush1.xpose.msra.mxu0 0.0
    %2889 = vmatprep.subr.mxu0 0.0
    %2890 = vmatpush1.xpose.msra.mxu0 0.0
    %2891 = vmatprep.subr.mxu0 0.0
    %2892 = vmatpush1.xpose.msra.mxu0 0.0
    %2893 = vmatprep.subr.mxu0 0.0
    %2894 = vmatpush1.xpose.msra.mxu0 0.0
    %2895 = vmatprep.subr.mxu0 0.0
    %2896 = vmatpush1.xpose.msra.mxu0 0.0
    %2897 = vmatprep.subr.mxu0 0.0
    %2898 = vmatpush1.xpose.msra.mxu0 0.0
    %2899 = vmatprep.subr.mxu0 0.0
    %2900 = vmatpush1.xpose.msra.mxu0 0.0
    %2901 = vmatprep.subr.mxu0 0.0
    %2902 = vmatpush1.xpose.msra.mxu0 0.0
    %2903 = vmatprep.subr.mxu0 0.0
    %2904 = vmatpush1.xpose.msra.mxu0 0.0
    %2905 = vmatprep.subr.mxu0 0.0
    %2906 = vmatpush1.xpose.msra.mxu0 0.0
    %2907 = vmatprep.mubr.f32.mxu0 0.0
    %2908 = vmatmul.mubr.f32.gmra.mrb[0].mxu0 %v2839
    %v2909 = vpop.f32.mrb[0].mxu0
    %v2910 = vadd.f32 %v69, %v2909
    %v2911 = vpop.f32.mrb[0].mxu0
    %2912 = vdwg.mxu0
    %v2913 = vsel %vm191, %v2910, -inf
    %2914 = vmax.xlane.f32.xlu0 %v2913
    %v2915 = vpop.xlane.xlu0 %2914
    %v2916 = vsub.f32 %v2910, %v2915
    %v2917 = vmul.f32 %v2916, 1.442695
    %v2918 = vpow.pop %v2917
    %v2919 = vsel %vm191, %v2918, 0.0
    %2920 = vadd.xlane.f32.xlu0 %v2919
    %v2921 = vpop.xlane.xlu0 %2920
    %v2922 = vrcp.pop %v2921
    %v2923 = vmul.f32 %v2918, %v2922
    %2924 = vrot.lane.b32.xlu0 %v1990, 56
    %v2925 = vpop.permute.xlu0 %2924
    %v2928 = vsel %vm191, %v2923, 0
    %2930 = vmatprep.subr.mxu0 0.0
    %2931 = vmatpush1.msra.mxu0 %v2925
    %2932 = vmatprep.subr.mxu0 0.0
    %2933 = vmatpush1.msra.mxu0 0.0
    %2934 = vmatprep.subr.mxu0 0.0
    %2935 = vmatpush1.msra.mxu0 0.0
    %2936 = vmatprep.subr.mxu0 0.0
    %2937 = vmatpush1.msra.mxu0 0.0
    %2938 = vmatprep.subr.mxu0 0.0
    %2939 = vmatpush1.msra.mxu0 0.0
    %2940 = vmatprep.subr.mxu0 0.0
    %2941 = vmatpush1.msra.mxu0 0.0
    %2942 = vmatprep.subr.mxu0 0.0
    %2943 = vmatpush1.msra.mxu0 0.0
    %2944 = vmatprep.subr.mxu0 0.0
    %2945 = vmatpush1.msra.mxu0 0.0
    %2946 = vmatprep.subr.mxu0 0.0
    %2947 = vmatpush1.msra.mxu0 0.0
    %2948 = vmatprep.subr.mxu0 0.0
    %2949 = vmatpush1.msra.mxu0 0.0
    %2950 = vmatprep.subr.mxu0 0.0
    %2951 = vmatpush1.msra.mxu0 0.0
    %2952 = vmatprep.subr.mxu0 0.0
    %2953 = vmatpush1.msra.mxu0 0.0
    %2954 = vmatprep.subr.mxu0 0.0
    %2955 = vmatpush1.msra.mxu0 0.0
    %2956 = vmatprep.subr.mxu0 0.0
    %2957 = vmatpush1.msra.mxu0 0.0
    %2958 = vmatprep.subr.mxu0 0.0
    %2959 = vmatpush1.msra.mxu0 0.0
    %2960 = vmatprep.subr.mxu0 0.0
    %2961 = vmatpush1.msra.mxu0 0.0
    %2962 = vmatprep.subr.mxu0 0.0
    %2963 = vmatpush1.msra.mxu0 0.0
    %2964 = vmatprep.subr.mxu0 0.0
    %2965 = vmatpush1.msra.mxu0 0.0
    %2966 = vmatprep.subr.mxu0 0.0
    %2967 = vmatpush1.msra.mxu0 0.0
    %2968 = vmatprep.subr.mxu0 0.0
    %2969 = vmatpush1.msra.mxu0 0.0
    %2970 = vmatprep.subr.mxu0 0.0
    %2971 = vmatpush1.msra.mxu0 0.0
    %2972 = vmatprep.subr.mxu0 0.0
    %2973 = vmatpush1.msra.mxu0 0.0
    %2974 = vmatprep.subr.mxu0 0.0
    %2975 = vmatpush1.msra.mxu0 0.0
    %2976 = vmatprep.subr.mxu0 0.0
    %2977 = vmatpush1.msra.mxu0 0.0
    %2978 = vmatprep.subr.mxu0 0.0
    %2979 = vmatpush1.msra.mxu0 0.0
    %2980 = vmatprep.subr.mxu0 0.0
    %2981 = vmatpush1.msra.mxu0 0.0
    %2982 = vmatprep.subr.mxu0 0.0
    %2983 = vmatpush1.msra.mxu0 0.0
    %2984 = vmatprep.subr.mxu0 0.0
    %2985 = vmatpush1.msra.mxu0 0.0
    %2986 = vmatprep.subr.mxu0 0.0
    %2987 = vmatpush1.msra.mxu0 0.0
    %2988 = vmatprep.subr.mxu0 0.0
    %2989 = vmatpush1.msra.mxu0 0.0
    %2990 = vmatprep.subr.mxu0 0.0
    %2991 = vmatpush1.msra.mxu0 0.0
    %2992 = vmatprep.subr.mxu0 0.0
    %2993 = vmatpush1.msra.mxu0 0.0
    %2994 = vmatprep.mubr.f32.mxu0 0.0
    %2995 = vmatmul.mubr.f32.gmra.mrb[0].mxu0 %v2928
    %v2996 = vpop.f32.mrb[0].mxu0
    %v2997 = vadd.f32 0.0, %v2996
    %v2998 = vpop.f32.mrb[0].mxu0
    %2999 = vdwg.mxu0
    %3000 = vrot.lane.b32.xlu0 %v1994, 112
    %v3001 = vpop.permute.xlu0 %3000
    %3002 = vrot.lane.b32.xlu0 %v1990, 80
    %v3003 = vpop.permute.xlu0 %3002
    %v3004 = vsel %vm191, %v3001, 0
    %v3006 = vsel %vm191, %v3003, 0
    %3008 = vmatprep.subr.mxu0 0.0
    %3009 = vmatpush1.xpose.msra.mxu0 %v3006
    %3010 = vmatprep.subr.mxu0 0.0
    %3011 = vmatpush1.xpose.msra.mxu0 0.0
    %3012 = vmatprep.subr.mxu0 0.0
    %3013 = vmatpush1.xpose.msra.mxu0 0.0
    %3014 = vmatprep.subr.mxu0 0.0
    %3015 = vmatpush1.xpose.msra.mxu0 0.0
    %3016 = vmatprep.subr.mxu0 0.0
    %3017 = vmatpush1.xpose.msra.mxu0 0.0
    %3018 = vmatprep.subr.mxu0 0.0
    %3019 = vmatpush1.xpose.msra.mxu0 0.0
    %3020 = vmatprep.subr.mxu0 0.0
    %3021 = vmatpush1.xpose.msra.mxu0 0.0
    %3022 = vmatprep.subr.mxu0 0.0
    %3023 = vmatpush1.xpose.msra.mxu0 0.0
    %3024 = vmatprep.subr.mxu0 0.0
    %3025 = vmatpush1.xpose.msra.mxu0 0.0
    %3026 = vmatprep.subr.mxu0 0.0
    %3027 = vmatpush1.xpose.msra.mxu0 0.0
    %3028 = vmatprep.subr.mxu0 0.0
    %3029 = vmatpush1.xpose.msra.mxu0 0.0
    %3030 = vmatprep.subr.mxu0 0.0
    %3031 = vmatpush1.xpose.msra.mxu0 0.0
    %3032 = vmatprep.subr.mxu0 0.0
    %3033 = vmatpush1.xpose.msra.mxu0 0.0
    %3034 = vmatprep.subr.mxu0 0.0
    %3035 = vmatpush1.xpose.msra.mxu0 0.0
    %3036 = vmatprep.subr.mxu0 0.0
    %3037 = vmatpush1.xpose.msra.mxu0 0.0
    %3038 = vmatprep.subr.mxu0 0.0
    %3039 = vmatpush1.xpose.msra.mxu0 0.0
    %3040 = vmatprep.subr.mxu0 0.0
    %3041 = vmatpush1.xpose.msra.mxu0 0.0
    %3042 = vmatprep.subr.mxu0 0.0
    %3043 = vmatpush1.xpose.msra.mxu0 0.0
    %3044 = vmatprep.subr.mxu0 0.0
    %3045 = vmatpush1.xpose.msra.mxu0 0.0
    %3046 = vmatprep.subr.mxu0 0.0
    %3047 = vmatpush1.xpose.msra.mxu0 0.0
    %3048 = vmatprep.subr.mxu0 0.0
    %3049 = vmatpush1.xpose.msra.mxu0 0.0
    %3050 = vmatprep.subr.mxu0 0.0
    %3051 = vmatpush1.xpose.msra.mxu0 0.0
    %3052 = vmatprep.subr.mxu0 0.0
    %3053 = vmatpush1.xpose.msra.mxu0 0.0
    %3054 = vmatprep.subr.mxu0 0.0
    %3055 = vmatpush1.xpose.msra.mxu0 0.0
    %3056 = vmatprep.subr.mxu0 0.0
    %3057 = vmatpush1.xpose.msra.mxu0 0.0
    %3058 = vmatprep.subr.mxu0 0.0
    %3059 = vmatpush1.xpose.msra.mxu0 0.0
    %3060 = vmatprep.subr.mxu0 0.0
    %3061 = vmatpush1.xpose.msra.mxu0 0.0
    %3062 = vmatprep.subr.mxu0 0.0
    %3063 = vmatpush1.xpose.msra.mxu0 0.0
    %3064 = vmatprep.subr.mxu0 0.0
    %3065 = vmatpush1.xpose.msra.mxu0 0.0
    %3066 = vmatprep.subr.mxu0 0.0
    %3067 = vmatpush1.xpose.msra.mxu0 0.0
    %3068 = vmatprep.subr.mxu0 0.0
    %3069 = vmatpush1.xpose.msra.mxu0 0.0
    %3070 = vmatprep.subr.mxu0 0.0
    %3071 = vmatpush1.xpose.msra.mxu0 0.0
    %3072 = vmatprep.mubr.f32.mxu0 0.0
    %3073 = vmatmul.mubr.f32.gmra.mrb[0].mxu0 %v3004
    %v3074 = vpop.f32.mrb[0].mxu0
    %v3075 = vadd.f32 %v69, %v3074
    %v3076 = vpop.f32.mrb[0].mxu0
    %3077 = vdwg.mxu0
    %v3078 = vsel %vm191, %v3075, -inf
    %3079 = vmax.xlane.f32.xlu0 %v3078
    %v3080 = vpop.xlane.xlu0 %3079
    %v3081 = vsub.f32 %v3075, %v3080
    %v3082 = vmul.f32 %v3081, 1.442695
    %v3083 = vpow.pop %v3082
    %v3084 = vsel %vm191, %v3083, 0.0
    %3085 = vadd.xlane.f32.xlu0 %v3084
    %v3086 = vpop.xlane.xlu0 %3085
    %v3087 = vrcp.pop %v3086
    %v3088 = vmul.f32 %v3083, %v3087
    %3089 = vrot.lane.b32.xlu0 %v1990, 48
    %v3090 = vpop.permute.xlu0 %3089
    %v3093 = vsel %vm191, %v3088, 0
    %3095 = vmatprep.subr.mxu0 0.0
    %3096 = vmatpush1.msra.mxu0 %v3090
    %3097 = vmatprep.subr.mxu0 0.0
    %3098 = vmatpush1.msra.mxu0 0.0
    %3099 = vmatprep.subr.mxu0 0.0
    %3100 = vmatpush1.msra.mxu0 0.0
    %3101 = vmatprep.subr.mxu0 0.0
    %3102 = vmatpush1.msra.mxu0 0.0
    %3103 = vmatprep.subr.mxu0 0.0
    %3104 = vmatpush1.msra.mxu0 0.0
    %3105 = vmatprep.subr.mxu0 0.0
    %3106 = vmatpush1.msra.mxu0 0.0
    %3107 = vmatprep.subr.mxu0 0.0
    %3108 = vmatpush1.msra.mxu0 0.0
    %3109 = vmatprep.subr.mxu0 0.0
    %3110 = vmatpush1.msra.mxu0 0.0
    %3111 = vmatprep.subr.mxu0 0.0
    %3112 = vmatpush1.msra.mxu0 0.0
    %3113 = vmatprep.subr.mxu0 0.0
    %3114 = vmatpush1.msra.mxu0 0.0
    %3115 = vmatprep.subr.mxu0 0.0
    %3116 = vmatpush1.msra.mxu0 0.0
    %3117 = vmatprep.subr.mxu0 0.0
    %3118 = vmatpush1.msra.mxu0 0.0
    %3119 = vmatprep.subr.mxu0 0.0
    %3120 = vmatpush1.msra.mxu0 0.0
    %3121 = vmatprep.subr.mxu0 0.0
    %3122 = vmatpush1.msra.mxu0 0.0
    %3123 = vmatprep.subr.mxu0 0.0
    %3124 = vmatpush1.msra.mxu0 0.0
    %3125 = vmatprep.subr.mxu0 0.0
    %3126 = vmatpush1.msra.mxu0 0.0
    %3127 = vmatprep.subr.mxu0 0.0
    %3128 = vmatpush1.msra.mxu0 0.0
    %3129 = vmatprep.subr.mxu0 0.0
    %3130 = vmatpush1.msra.mxu0 0.0
    %3131 = vmatprep.subr.mxu0 0.0
    %3132 = vmatpush1.msra.mxu0 0.0
    %3133 = vmatprep.subr.mxu0 0.0
    %3134 = vmatpush1.msra.mxu0 0.0
    %3135 = vmatprep.subr.mxu0 0.0
    %3136 = vmatpush1.msra.mxu0 0.0
    %3137 = vmatprep.subr.mxu0 0.0
    %3138 = vmatpush1.msra.mxu0 0.0
    %3139 = vmatprep.subr.mxu0 0.0
    %3140 = vmatpush1.msra.mxu0 0.0
    %3141 = vmatprep.subr.mxu0 0.0
    %3142 = vmatpush1.msra.mxu0 0.0
    %3143 = vmatprep.subr.mxu0 0.0
    %3144 = vmatpush1.msra.mxu0 0.0
    %3145 = vmatprep.subr.mxu0 0.0
    %3146 = vmatpush1.msra.mxu0 0.0
    %3147 = vmatprep.subr.mxu0 0.0
    %3148 = vmatpush1.msra.mxu0 0.0
    %3149 = vmatprep.subr.mxu0 0.0
    %3150 = vmatpush1.msra.mxu0 0.0
    %3151 = vmatprep.subr.mxu0 0.0
    %3152 = vmatpush1.msra.mxu0 0.0
    %3153 = vmatprep.subr.mxu0 0.0
    %3154 = vmatpush1.msra.mxu0 0.0
    %3155 = vmatprep.subr.mxu0 0.0
    %3156 = vmatpush1.msra.mxu0 0.0
    %3157 = vmatprep.subr.mxu0 0.0
    %3158 = vmatpush1.msra.mxu0 0.0
    %3159 = vmatprep.mubr.f32.mxu0 0.0
    %3160 = vmatmul.mubr.f32.gmra.mrb[0].mxu0 %v3093
    %v3161 = vpop.f32.mrb[0].mxu0
    %v3162 = vadd.f32 0.0, %v3161
    %v3163 = vpop.f32.mrb[0].mxu0
    %3164 = vdwg.mxu0
    %3165 = vrot.lane.b32.xlu0 %v1994, 104
    %v3166 = vpop.permute.xlu0 %3165
    %3167 = vrot.lane.b32.xlu0 %v1990, 72
    %v3168 = vpop.permute.xlu0 %3167
    %v3169 = vsel %vm191, %v3166, 0
    %v3171 = vsel %vm191, %v3168, 0
    %3173 = vmatprep.subr.mxu0 0.0
    %3174 = vmatpush1.xpose.msra.mxu0 %v3171
    %3175 = vmatprep.subr.mxu0 0.0
    %3176 = vmatpush1.xpose.msra.mxu0 0.0
    %3177 = vmatprep.subr.mxu0 0.0
    %3178 = vmatpush1.xpose.msra.mxu0 0.0
    %3179 = vmatprep.subr.mxu0 0.0
    %3180 = vmatpush1.xpose.msra.mxu0 0.0
    %3181 = vmatprep.subr.mxu0 0.0
    %3182 = vmatpush1.xpose.msra.mxu0 0.0
    %3183 = vmatprep.subr.mxu0 0.0
    %3184 = vmatpush1.xpose.msra.mxu0 0.0
    %3185 = vmatprep.subr.mxu0 0.0
    %3186 = vmatpush1.xpose.msra.mxu0 0.0
    %3187 = vmatprep.subr.mxu0 0.0
    %3188 = vmatpush1.xpose.msra.mxu0 0.0
    %3189 = vmatprep.subr.mxu0 0.0
    %3190 = vmatpush1.xpose.msra.mxu0 0.0
    %3191 = vmatprep.subr.mxu0 0.0
    %3192 = vmatpush1.xpose.msra.mxu0 0.0
    %3193 = vmatprep.subr.mxu0 0.0
    %3194 = vmatpush1.xpose.msra.mxu0 0.0
    %3195 = vmatprep.subr.mxu0 0.0
    %3196 = vmatpush1.xpose.msra.mxu0 0.0
    %3197 = vmatprep.subr.mxu0 0.0
    %3198 = vmatpush1.xpose.msra.mxu0 0.0
    %3199 = vmatprep.subr.mxu0 0.0
    %3200 = vmatpush1.xpose.msra.mxu0 0.0
    %3201 = vmatprep.subr.mxu0 0.0
    %3202 = vmatpush1.xpose.msra.mxu0 0.0
    %3203 = vmatprep.subr.mxu0 0.0
    %3204 = vmatpush1.xpose.msra.mxu0 0.0
    %3205 = vmatprep.subr.mxu0 0.0
    %3206 = vmatpush1.xpose.msra.mxu0 0.0
    %3207 = vmatprep.subr.mxu0 0.0
    %3208 = vmatpush1.xpose.msra.mxu0 0.0
    %3209 = vmatprep.subr.mxu0 0.0
    %3210 = vmatpush1.xpose.msra.mxu0 0.0
    %3211 = vmatprep.subr.mxu0 0.0
    %3212 = vmatpush1.xpose.msra.mxu0 0.0
    %3213 = vmatprep.subr.mxu0 0.0
    %3214 = vmatpush1.xpose.msra.mxu0 0.0
    %3215 = vmatprep.subr.mxu0 0.0
    %3216 = vmatpush1.xpose.msra.mxu0 0.0
    %3217 = vmatprep.subr.mxu0 0.0
    %3218 = vmatpush1.xpose.msra.mxu0 0.0
    %3219 = vmatprep.subr.mxu0 0.0
    %3220 = vmatpush1.xpose.msra.mxu0 0.0
    %3221 = vmatprep.subr.mxu0 0.0
    %3222 = vmatpush1.xpose.msra.mxu0 0.0
    %3223 = vmatprep.subr.mxu0 0.0
    %3224 = vmatpush1.xpose.msra.mxu0 0.0
    %3225 = vmatprep.subr.mxu0 0.0
    %3226 = vmatpush1.xpose.msra.mxu0 0.0
    %3227 = vmatprep.subr.mxu0 0.0
    %3228 = vmatpush1.xpose.msra.mxu0 0.0
    %3229 = vmatprep.subr.mxu0 0.0
    %3230 = vmatpush1.xpose.msra.mxu0 0.0
    %3231 = vmatprep.subr.mxu0 0.0
    %3232 = vmatpush1.xpose.msra.mxu0 0.0
    %3233 = vmatprep.subr.mxu0 0.0
    %3234 = vmatpush1.xpose.msra.mxu0 0.0
    %3235 = vmatprep.subr.mxu0 0.0
    %3236 = vmatpush1.xpose.msra.mxu0 0.0
    %3237 = vmatprep.mubr.f32.mxu0 0.0
    %3238 = vmatmul.mubr.f32.gmra.mrb[0].mxu0 %v3169
    %v3239 = vpop.f32.mrb[0].mxu0
    %v3240 = vadd.f32 %v69, %v3239
    %v3241 = vpop.f32.mrb[0].mxu0
    %3242 = vdwg.mxu0
    %v3243 = vsel %vm191, %v3240, -inf
    %3244 = vmax.xlane.f32.xlu0 %v3243
    %v3245 = vpop.xlane.xlu0 %3244
    %v3246 = vsub.f32 %v3240, %v3245
    %v3247 = vmul.f32 %v3246, 1.442695
    %v3248 = vpow.pop %v3247
    %v3249 = vsel %vm191, %v3248, 0.0
    %3250 = vadd.xlane.f32.xlu0 %v3249
    %v3251 = vpop.xlane.xlu0 %3250
    %v3252 = vrcp.pop %v3251
    %v3253 = vmul.f32 %v3248, %v3252
    %3254 = vrot.lane.b32.xlu0 %v1990, 40
    %v3255 = vpop.permute.xlu0 %3254
    %v3258 = vsel %vm191, %v3253, 0
    %3260 = vmatprep.subr.mxu0 0.0
    %3261 = vmatpush1.msra.mxu0 %v3255
    %3262 = vmatprep.subr.mxu0 0.0
    %3263 = vmatpush1.msra.mxu0 0.0
    %3264 = vmatprep.subr.mxu0 0.0
    %3265 = vmatpush1.msra.mxu0 0.0
    %3266 = vmatprep.subr.mxu0 0.0
    %3267 = vmatpush1.msra.mxu0 0.0
    %3268 = vmatprep.subr.mxu0 0.0
    %3269 = vmatpush1.msra.mxu0 0.0
    %3270 = vmatprep.subr.mxu0 0.0
    %3271 = vmatpush1.msra.mxu0 0.0
    %3272 = vmatprep.subr.mxu0 0.0
    %3273 = vmatpush1.msra.mxu0 0.0
    %3274 = vmatprep.subr.mxu0 0.0
    %3275 = vmatpush1.msra.mxu0 0.0
    %3276 = vmatprep.subr.mxu0 0.0
    %3277 = vmatpush1.msra.mxu0 0.0
    %3278 = vmatprep.subr.mxu0 0.0
    %3279 = vmatpush1.msra.mxu0 0.0
    %3280 = vmatprep.subr.mxu0 0.0
    %3281 = vmatpush1.msra.mxu0 0.0
    %3282 = vmatprep.subr.mxu0 0.0
    %3283 = vmatpush1.msra.mxu0 0.0
    %3284 = vmatprep.subr.mxu0 0.0
    %3285 = vmatpush1.msra.mxu0 0.0
    %3286 = vmatprep.subr.mxu0 0.0
    %3287 = vmatpush1.msra.mxu0 0.0
    %3288 = vmatprep.subr.mxu0 0.0
    %3289 = vmatpush1.msra.mxu0 0.0
    %3290 = vmatprep.subr.mxu0 0.0
    %3291 = vmatpush1.msra.mxu0 0.0
    %3292 = vmatprep.subr.mxu0 0.0
    %3293 = vmatpush1.msra.mxu0 0.0
    %3294 = vmatprep.subr.mxu0 0.0
    %3295 = vmatpush1.msra.mxu0 0.0
    %3296 = vmatprep.subr.mxu0 0.0
    %3297 = vmatpush1.msra.mxu0 0.0
    %3298 = vmatprep.subr.mxu0 0.0
    %3299 = vmatpush1.msra.mxu0 0.0
    %3300 = vmatprep.subr.mxu0 0.0
    %3301 = vmatpush1.msra.mxu0 0.0
    %3302 = vmatprep.subr.mxu0 0.0
    %3303 = vmatpush1.msra.mxu0 0.0
    %3304 = vmatprep.subr.mxu0 0.0
    %3305 = vmatpush1.msra.mxu0 0.0
    %3306 = vmatprep.subr.mxu0 0.0
    %3307 = vmatpush1.msra.mxu0 0.0
    %3308 = vmatprep.subr.mxu0 0.0
    %3309 = vmatpush1.msra.mxu0 0.0
    %3310 = vmatprep.subr.mxu0 0.0
    %3311 = vmatpush1.msra.mxu0 0.0
    %3312 = vmatprep.subr.mxu0 0.0
    %3313 = vmatpush1.msra.mxu0 0.0
    %3314 = vmatprep.subr.mxu0 0.0
    %3315 = vmatpush1.msra.mxu0 0.0
    %3316 = vmatprep.subr.mxu0 0.0
    %3317 = vmatpush1.msra.mxu0 0.0
    %3318 = vmatprep.subr.mxu0 0.0
    %3319 = vmatpush1.msra.mxu0 0.0
    %3320 = vmatprep.subr.mxu0 0.0
    %3321 = vmatpush1.msra.mxu0 0.0
    %3322 = vmatprep.subr.mxu0 0.0
    %3323 = vmatpush1.msra.mxu0 0.0
    %3324 = vmatprep.mubr.f32.mxu0 0.0
    %3325 = vmatmul.mubr.f32.gmra.mrb[0].mxu0 %v3258
    %v3326 = vpop.f32.mrb[0].mxu0
    %v3327 = vadd.f32 0.0, %v3326
    %v3328 = vpop.f32.mrb[0].mxu0
    %3329 = vdwg.mxu0
    %3331 = vrot.lane.b32.xlu0 %v2997, 8
    %v3332 = vpop.permute.xlu0 %3331
    %3335 = vrot.lane.b32.xlu0 %v3162, 16
    %v3336 = vpop.permute.xlu0 %3335
    %3339 = vrot.lane.b32.xlu0 %v3327, 24
    %v3340 = vpop.permute.xlu0 %3339
    %v3342 = vsel %vm191, %v2832, %v3332
    %v3343 = vsel %vm862, %v3342, %v3336
    %v3344 = vsel %vm864, %v3343, %v3340
    %v3345 = vlaneseq
    %v3346 = vshrl.u32 %v3345, 7
    %v3347 = vsub.s32 0, %v3346
    %v3348 = vrot.slane %v1901, %v3347
    %v3350 = vsel %vm104, %v2669, 0
    %v3353 = vsel %vm104, %v3344, 0
    %3355 = vmatprep.subr.mxu0 0.0
    %3356 = vmatpush1.msra.mxu0 %v1884
    %3357 = vmatprep.subr.mxu0 0.0
    %3358 = vmatpush1.msra.mxu0 %v1885
    %3359 = vmatprep.subr.mxu0 0.0
    %3360 = vmatpush1.msra.mxu0 %v1886
    %3361 = vmatprep.subr.mxu0 0.0
    %3362 = vmatpush1.msra.mxu0 %v1887
    %3363 = vmatprep.subr.mxu0 0.0
    %3364 = vmatpush1.msra.mxu0 0.0
    %3365 = vmatprep.subr.mxu0 0.0
    %3366 = vmatpush1.msra.mxu0 0.0
    %3367 = vmatprep.subr.mxu0 0.0
    %3368 = vmatpush1.msra.mxu0 0.0
    %3369 = vmatprep.subr.mxu0 0.0
    %3370 = vmatpush1.msra.mxu0 0.0
    %3371 = vmatprep.subr.mxu0 0.0
    %3372 = vmatpush1.msra.mxu0 0.0
    %3373 = vmatprep.subr.mxu0 0.0
    %3374 = vmatpush1.msra.mxu0 0.0
    %3375 = vmatprep.subr.mxu0 0.0
    %3376 = vmatpush1.msra.mxu0 0.0
    %3377 = vmatprep.subr.mxu0 0.0
    %3378 = vmatpush1.msra.mxu0 0.0
    %3379 = vmatprep.subr.mxu0 0.0
    %3380 = vmatpush1.msra.mxu0 0.0
    %3381 = vmatprep.subr.mxu0 0.0
    %3382 = vmatpush1.msra.mxu0 0.0
    %3383 = vmatprep.subr.mxu0 0.0
    %3384 = vmatpush1.msra.mxu0 0.0
    %3385 = vmatprep.subr.mxu0 0.0
    %3386 = vmatpush1.msra.mxu0 0.0
    %3387 = vmatprep.subr.mxu0 0.0
    %3388 = vmatpush1.msra.mxu0 0.0
    %3389 = vmatprep.subr.mxu0 0.0
    %3390 = vmatpush1.msra.mxu0 0.0
    %3391 = vmatprep.subr.mxu0 0.0
    %3392 = vmatpush1.msra.mxu0 0.0
    %3393 = vmatprep.subr.mxu0 0.0
    %3394 = vmatpush1.msra.mxu0 0.0
    %3395 = vmatprep.subr.mxu0 0.0
    %3396 = vmatpush1.msra.mxu0 0.0
    %3397 = vmatprep.subr.mxu0 0.0
    %3398 = vmatpush1.msra.mxu0 0.0
    %3399 = vmatprep.subr.mxu0 0.0
    %3400 = vmatpush1.msra.mxu0 0.0
    %3401 = vmatprep.subr.mxu0 0.0
    %3402 = vmatpush1.msra.mxu0 0.0
    %3403 = vmatprep.subr.mxu0 0.0
    %3404 = vmatpush1.msra.mxu0 0.0
    %3405 = vmatprep.subr.mxu0 0.0
    %3406 = vmatpush1.msra.mxu0 0.0
    %3407 = vmatprep.subr.mxu0 0.0
    %3408 = vmatpush1.msra.mxu0 0.0
    %3409 = vmatprep.subr.mxu0 0.0
    %3410 = vmatpush1.msra.mxu0 0.0
    %3411 = vmatprep.subr.mxu0 0.0
    %3412 = vmatpush1.msra.mxu0 0.0
    %3413 = vmatprep.subr.mxu0 0.0
    %3414 = vmatpush1.msra.mxu0 0.0
    %3415 = vmatprep.subr.mxu0 0.0
    %3416 = vmatpush1.msra.mxu0 0.0
    %3417 = vmatprep.subr.mxu0 0.0
    %3418 = vmatpush1.msra.mxu0 0.0
    %3419 = vmatprep.mubr.f32.mxu0 0.0
    %3420 = vmatmul.mubr.f32.gmra.mrb[0].mxu0 %v3350
    %v3421 = vpop.f32.mrb[0].mxu0
    %v3422 = vadd.f32 %v3348, %v3421
    %v3423 = vpop.f32.mrb[0].mxu0
    %3424 = vmatprep.mubr.f32.mxu0 0.0
    %3425 = vmatmul.mubr.f32.gmra.mrb[0].mxu0 %v3353
    %v3426 = vpop.f32.mrb[0].mxu0
    %v3427 = vadd.f32 %v3348, %v3426
    %v3428 = vpop.f32.mrb[0].mxu0
    %3429 = vdwg.mxu0
    %v3430 = vadd.f32 %v1878, %v3422
    %v3431 = vadd.f32 %v1879, %v3427
    %v3432 = vsel %vm104, %v3430, 0.0
    %3433 = vadd.xlane.f32.xlu0 %v3432
    %v3434 = vpop.xlane.xlu0 %3433
    %v3435 = vsel %vm104, %v3431, 0.0
    %3436 = vadd.xlane.f32.xlu0 %v3435
    %v3437 = vpop.xlane.xlu0 %3436
    %v3438 = vmul.f32 %v3434, %v1634
    %v3439 = vmul.f32 %v3437, %v1634
    %v3440 = vsub.f32 %v3430, %v3438
    %v3441 = vsub.f32 %v3431, %v3439
    %v3442 = vmul.f32 %v3440, %v3440
    %v3443 = vmul.f32 %v3441, %v3441
    %v3444 = vsel %vm104, %v3442, 0.0
    %3445 = vadd.xlane.f32.xlu0 %v3444
    %v3446 = vpop.xlane.xlu0 %3445
    %v3447 = vsel %vm104, %v3443, 0.0
    %3448 = vadd.xlane.f32.xlu0 %v3447
    %v3449 = vpop.xlane.xlu0 %3448
    %v3450 = vmul.f32 %v3446, %v1634
    %v3451 = vmul.f32 %v3449, %v1634
    %v3452 = vadd.f32 %v3450, 1e-05
    %v3453 = vadd.f32 %v3451, 1e-05
    %v3454 = vrsqrt.pop %v3452
    %v3455 = vrsqrt.pop %v3453
    %v3456 = vmul.f32 %v3440, %v3454
    %v3457 = vmul.f32 %v3441, %v3455
    %v3458 = vlaneseq
    %v3459 = vshrl.u32 %v3458, 7
    %v3460 = vsub.s32 0, %v3459
    %v3461 = vrot.slane %v1902, %v3460
    %v3462 = vmul.f32 %v3456, %v3461
    %v3463 = vmul.f32 %v3457, %v3461
    %v3464 = vlaneseq
    %v3465 = vshrl.u32 %v3464, 7
    %v3466 = vsub.s32 0, %v3465
    %v3467 = vrot.slane %v1903, %v3466
    %v3468 = vadd.f32 %v3462, %v3467
    %v3469 = vadd.f32 %v3463, %v3467
    %v3470 = vlaneseq
    %v3471 = vshrl.u32 %v3470, 7
    %v3472 = vsub.s32 0, %v3471
    %v3473 = vrot.slane %v1904, %v3472
    %v3475 = vsel %vm104, %v3468, 0
    %v3478 = vsel %vm104, %v3469, 0
    %3480 = vmatprep.subr.mxu0 0.0
    %3481 = vmatpush1.msra.mxu0 %v1888
    %3482 = vmatprep.subr.mxu0 0.0
    %3483 = vmatpush1.msra.mxu0 %v1889
    %3484 = vmatprep.subr.mxu0 0.0
    %3485 = vmatpush1.msra.mxu0 %v1890
    %3486 = vmatprep.subr.mxu0 0.0
    %3487 = vmatpush1.msra.mxu0 %v1891
    %3488 = vmatprep.subr.mxu0 0.0
    %3489 = vmatpush1.msra.mxu0 0.0
    %3490 = vmatprep.subr.mxu0 0.0
    %3491 = vmatpush1.msra.mxu0 0.0
    %3492 = vmatprep.subr.mxu0 0.0
    %3493 = vmatpush1.msra.mxu0 0.0
    %3494 = vmatprep.subr.mxu0 0.0
    %3495 = vmatpush1.msra.mxu0 0.0
    %3496 = vmatprep.subr.mxu0 0.0
    %3497 = vmatpush1.msra.mxu0 0.0
    %3498 = vmatprep.subr.mxu0 0.0
    %3499 = vmatpush1.msra.mxu0 0.0
    %3500 = vmatprep.subr.mxu0 0.0
    %3501 = vmatpush1.msra.mxu0 0.0
    %3502 = vmatprep.subr.mxu0 0.0
    %3503 = vmatpush1.msra.mxu0 0.0
    %3504 = vmatprep.subr.mxu0 0.0
    %3505 = vmatpush1.msra.mxu0 0.0
    %3506 = vmatprep.subr.mxu0 0.0
    %3507 = vmatpush1.msra.mxu0 0.0
    %3508 = vmatprep.subr.mxu0 0.0
    %3509 = vmatpush1.msra.mxu0 0.0
    %3510 = vmatprep.subr.mxu0 0.0
    %3511 = vmatpush1.msra.mxu0 0.0
    %3512 = vmatprep.subr.mxu0 0.0
    %3513 = vmatpush1.msra.mxu0 0.0
    %3514 = vmatprep.subr.mxu0 0.0
    %3515 = vmatpush1.msra.mxu0 0.0
    %3516 = vmatprep.subr.mxu0 0.0
    %3517 = vmatpush1.msra.mxu0 0.0
    %3518 = vmatprep.subr.mxu0 0.0
    %3519 = vmatpush1.msra.mxu0 0.0
    %3520 = vmatprep.subr.mxu0 0.0
    %3521 = vmatpush1.msra.mxu0 0.0
    %3522 = vmatprep.subr.mxu0 0.0
    %3523 = vmatpush1.msra.mxu0 0.0
    %3524 = vmatprep.subr.mxu0 0.0
    %3525 = vmatpush1.msra.mxu0 0.0
    %3526 = vmatprep.subr.mxu0 0.0
    %3527 = vmatpush1.msra.mxu0 0.0
    %3528 = vmatprep.subr.mxu0 0.0
    %3529 = vmatpush1.msra.mxu0 0.0
    %3530 = vmatprep.subr.mxu0 0.0
    %3531 = vmatpush1.msra.mxu0 0.0
    %3532 = vmatprep.subr.mxu0 0.0
    %3533 = vmatpush1.msra.mxu0 0.0
    %3534 = vmatprep.subr.mxu0 0.0
    %3535 = vmatpush1.msra.mxu0 0.0
    %3536 = vmatprep.subr.mxu0 0.0
    %3537 = vmatpush1.msra.mxu0 0.0
    %3538 = vmatprep.subr.mxu0 0.0
    %3539 = vmatpush1.msra.mxu0 0.0
    %3540 = vmatprep.subr.mxu0 0.0
    %3541 = vmatpush1.msra.mxu0 0.0
    %3542 = vmatprep.subr.mxu0 0.0
    %3543 = vmatpush1.msra.mxu0 0.0
    %3544 = vmatprep.mubr.f32.mxu0 0.0
    %3545 = vmatmul.mubr.f32.gmra.mrb[0].mxu0 %v3475
    %v3546 = vpop.f32.mrb[0].mxu0
    %v3547 = vadd.f32 %v3473, %v3546
    %v3548 = vpop.f32.mrb[0].mxu0
    %3549 = vmatprep.mubr.f32.mxu0 0.0
    %3550 = vmatmul.mubr.f32.gmra.mrb[0].mxu0 %v3478
    %v3551 = vpop.f32.mrb[0].mxu0
    %v3552 = vadd.f32 %v3473, %v3551
    %v3553 = vpop.f32.mrb[0].mxu0
    %3554 = vdwg.mxu0
    %v3555 = vmax.f32 %v3547, 0.0
    %v3556 = vmax.f32 %v3552, 0.0
    %v3557 = vlaneseq
    %v3558 = vshrl.u32 %v3557, 7
    %v3559 = vsub.s32 0, %v3558
    %v3560 = vrot.slane %v1905, %v3559
    %v3562 = vsel %vm1758, %v3555, 0
    %v3565 = vsel %vm1758, %v3556, 0
    %3567 = vmatprep.subr.mxu0 0.0
    %3568 = vmatpush1.msra.mxu0 %v1892
    %3569 = vmatprep.subr.mxu0 0.0
    %3570 = vmatpush1.msra.mxu0 %v1893
    %3571 = vmatprep.subr.mxu0 0.0
    %3572 = vmatpush1.msra.mxu0 %v1894
    %3573 = vmatprep.subr.mxu0 0.0
    %3574 = vmatpush1.msra.mxu0 %v1895
    %3575 = vmatprep.subr.mxu0 0.0
    %3576 = vmatpush1.msra.mxu0 %v1896
    %3577 = vmatprep.subr.mxu0 0.0
    %3578 = vmatpush1.msra.mxu0 %v1897
    %3579 = vmatprep.subr.mxu0 0.0
    %3580 = vmatpush1.msra.mxu0 %v1898
    %3581 = vmatprep.subr.mxu0 0.0
    %3582 = vmatpush1.msra.mxu0 %v1899
    %3583 = vmatprep.subr.mxu0 0.0
    %3584 = vmatpush1.msra.mxu0 0.0
    %3585 = vmatprep.subr.mxu0 0.0
    %3586 = vmatpush1.msra.mxu0 0.0
    %3587 = vmatprep.subr.mxu0 0.0
    %3588 = vmatpush1.msra.mxu0 0.0
    %3589 = vmatprep.subr.mxu0 0.0
    %3590 = vmatpush1.msra.mxu0 0.0
    %3591 = vmatprep.subr.mxu0 0.0
    %3592 = vmatpush1.msra.mxu0 0.0
    %3593 = vmatprep.subr.mxu0 0.0
    %3594 = vmatpush1.msra.mxu0 0.0
    %3595 = vmatprep.subr.mxu0 0.0
    %3596 = vmatpush1.msra.mxu0 0.0
    %3597 = vmatprep.subr.mxu0 0.0
    %3598 = vmatpush1.msra.mxu0 0.0
    %3599 = vmatprep.subr.mxu0 0.0
    %3600 = vmatpush1.msra.mxu0 0.0
    %3601 = vmatprep.subr.mxu0 0.0
    %3602 = vmatpush1.msra.mxu0 0.0
    %3603 = vmatprep.subr.mxu0 0.0
    %3604 = vmatpush1.msra.mxu0 0.0
    %3605 = vmatprep.subr.mxu0 0.0
    %3606 = vmatpush1.msra.mxu0 0.0
    %3607 = vmatprep.subr.mxu0 0.0
    %3608 = vmatpush1.msra.mxu0 0.0
    %3609 = vmatprep.subr.mxu0 0.0
    %3610 = vmatpush1.msra.mxu0 0.0
    %3611 = vmatprep.subr.mxu0 0.0
    %3612 = vmatpush1.msra.mxu0 0.0
    %3613 = vmatprep.subr.mxu0 0.0
    %3614 = vmatpush1.msra.mxu0 0.0
    %3615 = vmatprep.subr.mxu0 0.0
    %3616 = vmatpush1.msra.mxu0 0.0
    %3617 = vmatprep.subr.mxu0 0.0
    %3618 = vmatpush1.msra.mxu0 0.0
    %3619 = vmatprep.subr.mxu0 0.0
    %3620 = vmatpush1.msra.mxu0 0.0
    %3621 = vmatprep.subr.mxu0 0.0
    %3622 = vmatpush1.msra.mxu0 0.0
    %3623 = vmatprep.subr.mxu0 0.0
    %3624 = vmatpush1.msra.mxu0 0.0
    %3625 = vmatprep.subr.mxu0 0.0
    %3626 = vmatpush1.msra.mxu0 0.0
    %3627 = vmatprep.subr.mxu0 0.0
    %3628 = vmatpush1.msra.mxu0 0.0
    %3629 = vmatprep.subr.mxu0 0.0
    %3630 = vmatpush1.msra.mxu0 0.0
    %3631 = vmatprep.mubr.f32.mxu0 0.0
    %3632 = vmatmul.mubr.f32.gmra.mrb[0].mxu0 %v3562
    %v3633 = vpop.f32.mrb[0].mxu0
    %v3634 = vadd.f32 %v3560, %v3633
    %v3635 = vpop.f32.mrb[0].mxu0
    %3636 = vmatprep.mubr.f32.mxu0 0.0
    %3637 = vmatmul.mubr.f32.gmra.mrb[0].mxu0 %v3565
    %v3638 = vpop.f32.mrb[0].mxu0
    %v3639 = vadd.f32 %v3560, %v3638
    %v3640 = vpop.f32.mrb[0].mxu0
    %3641 = vdwg.mxu0
    %v3642 = vadd.f32 %v3468, %v3634
    %v3643 = vadd.f32 %v3469, %v3639
    %v3644 = vsel %vm104, %v3642, 0.0
    %3645 = vadd.xlane.f32.xlu0 %v3644
    %v3646 = vpop.xlane.xlu0 %3645
    %v3647 = vsel %vm104, %v3643, 0.0
    %3648 = vadd.xlane.f32.xlu0 %v3647
    %v3649 = vpop.xlane.xlu0 %3648
    %v3650 = vmul.f32 %v3646, %v1634
    %v3651 = vmul.f32 %v3649, %v1634
    %v3652 = vsub.f32 %v3642, %v3650
    %v3653 = vsub.f32 %v3643, %v3651
    %v3654 = vmul.f32 %v3652, %v3652
    %v3655 = vmul.f32 %v3653, %v3653
    %v3656 = vsel %vm104, %v3654, 0.0
    %3657 = vadd.xlane.f32.xlu0 %v3656
    %v3658 = vpop.xlane.xlu0 %3657
    %v3659 = vsel %vm104, %v3655, 0.0
    %3660 = vadd.xlane.f32.xlu0 %v3659
    %v3661 = vpop.xlane.xlu0 %3660
    %v3662 = vmul.f32 %v3658, %v1634
    %v3663 = vmul.f32 %v3661, %v1634
    %v3664 = vadd.f32 %v3662, 1e-05
    %v3665 = vadd.f32 %v3663, 1e-05
    %v3666 = vrsqrt.pop %v3664
    %v3667 = vrsqrt.pop %v3665
    %v3668 = vmul.f32 %v3652, %v3666
    %v3669 = vmul.f32 %v3653, %v3667
    %v3670 = vlaneseq
    %v3671 = vshrl.u32 %v3670, 7
    %v3672 = vsub.s32 0, %v3671
    %v3673 = vrot.slane %v1906, %v3672
    %v3674 = vmul.f32 %v3668, %v3673
    %v3675 = vmul.f32 %v3669, %v3673
    %v3676 = vlaneseq
    %v3677 = vshrl.u32 %v3676, 7
    %v3678 = vsub.s32 0, %v3677
    %v3679 = vrot.slane %v1907, %v3678
    %v3680 = vadd.f32 %v3674, %v3679
    %v3681 = vadd.f32 %v3675, %v3679
    %vm3682 = vcmp.lt.s32.totalorder %v71, 16
    %v3684 = vrot.slane %v3680, 1
    %v3686 = vsel %vm3682, %v3680, %v3684
    %vm3687 = vcmask 260096
    %3688 = vst.msk [vmem:[%s4] sm:$0x7f] %vm3687, %v3686
    %v3690 = vrot.slane %v3681, 1
    %v3692 = vsel %vm3682, %v3681, %v3690
    %s3693 = scalar_lea.vmem %s4, 8
    %3694 = vst.msk [vmem:[%s3693] sm:$0x7f] %vm3687, %v3692
    // Predicated region
    $region30: #{tpu_custom_call.1} parent=1 // pred_check
      _
    $region31: #{tpu_custom_call.1} parent=1 // pred_check_branch
      %3696 = sbr.rel (0) target = $region33
    $region32: #{tpu_custom_call.1} parent=1 // pred_region
      _
    $region33: #{tpu_custom_call.1} parent=1 // pred_fallthru
      _
    // Predicated region
    $region34: #{tpu_custom_call.1} parent=1 // pred_check
      _
    $region35: #{tpu_custom_call.1} parent=1 // pred_check_branch
      %3698 = sbr.rel (0) target = $region37
    $region36: #{tpu_custom_call.1} parent=1 // pred_region
      _
    $region37: #{tpu_custom_call.1} parent=1 // pred_fallthru
      _
    %3699 = vsyncpa [#allocation3], 1
    %3700 = vsyncpa [#allocation5], 1

</llo_original>
